<compile_context>
chip_gen: v7x
topology: tpu7x:2x2x1
jax: 0.10.0
libtpu: 0.0.40
codegen_flags: <defaults>
</compile_context>

<pallas_src>
import jax
import jax.numpy as jnp
import numpy as np
from jax.experimental import pallas as pl
from jax.experimental.pallas import tpu as pltpu

# --- small, self-consistent hyperparameters (module defaults scaled down) ---
EMBED_DIM = 32
NUM_HEADS = 4
NUM_LAYERS = 2
MLP_RATIO = 4.0
FF_DIM = int(EMBED_DIM * MLP_RATIO)
HEAD_DIM = EMBED_DIM // NUM_HEADS
LN_EPS = 1e-5


# ---------------------------------------------------------------------------
# Shared math helpers (PyTorch Linear convention: W has shape (out, in)).
# ---------------------------------------------------------------------------
def _linear(x, w, b):
    # x: (rows, in), w: (out, in), b: (1, out)
    y = jax.lax.dot_general(x, w, (((1,), (1,)), ((), ())),
                            preferred_element_type=jnp.float32)
    return y + b


def _layer_norm(x, w, b):
    mu = jnp.mean(x, axis=-1, keepdims=True)
    xc = x - mu
    var = jnp.mean(xc * xc, axis=-1, keepdims=True)
    return xc * jax.lax.rsqrt(var + LN_EPS) * w + b


# ---------------------------------------------------------------------------
# Pure-JAX reference (straightforward PyTorch-semantics implementation).
# ---------------------------------------------------------------------------
def _forward_sample(x, p):
    """One sequence through the whole encoder stack.  x: (S, E) float32."""
    (in_w, in_b, out_w, out_b,
     ln1_w, ln1_b, ln2_w, ln2_b,
     lin1_w, lin1_b, lin2_w, lin2_b) = p
    scale = 1.0 / (HEAD_DIM ** 0.5)
    for l in range(NUM_LAYERS):
        qkv = _linear(x, in_w[l], in_b[l])                 # (S, 3E)
        q = qkv[:, :EMBED_DIM]
        k = qkv[:, EMBED_DIM:2 * EMBED_DIM]
        v = qkv[:, 2 * EMBED_DIM:]
        heads = []
        for h in range(NUM_HEADS):
            sl = slice(h * HEAD_DIM, (h + 1) * HEAD_DIM)
            qh = q[:, sl] * scale
            kh = k[:, sl]
            vh = v[:, sl]
            s = jax.lax.dot_general(qh, kh, (((1,), (1,)), ((), ())),
                                    preferred_element_type=jnp.float32)  # (S, S)
            s = s - jnp.max(s, axis=-1, keepdims=True)
            e = jnp.exp(s)
            attn = e / jnp.sum(e, axis=-1, keepdims=True)
            heads.append(jnp.dot(attn, vh, preferred_element_type=jnp.float32))
        ctx = jnp.concatenate(heads, axis=-1)              # (S, E)
        attn_out = _linear(ctx, out_w[l], out_b[l])
        x = _layer_norm(x + attn_out, ln1_w[l], ln1_b[l])  # post-norm residual
        ff = _linear(x, lin1_w[l], lin1_b[l])
        ff = jnp.maximum(ff, 0.0)
        ff = _linear(ff, lin2_w[l], lin2_b[l])
        x = _layer_norm(x + ff, ln2_w[l], ln2_b[l])
    return x


# ---------------------------------------------------------------------------
# Pallas kernel: one grid step processes Bblk samples through the full stack.
# ---------------------------------------------------------------------------
def transformer_kernel(x_ref,
                       inw_ref, inb_ref, wo_ref, ob_ref,
                       ln1w_ref, ln1b_ref, ln2w_ref, ln2b_ref,
                       l1w_ref, l1b_ref, l2w_ref, l2b_ref,
                       o_ref):
    Bblk, S, E = x_ref.shape
    L = inw_ref.shape[0]
    H, D = NUM_HEADS, HEAD_DIM
    M = Bblk * S                                    # total rows in this block
    N = H * Bblk                                    # fused (head, batch) attention axis

    # Leading-dims-only reshape (Bblk, S, E) -> (M, E): same vreg layout, free.
    x = x_ref[...].astype(jnp.float32).reshape(M, E)

    for l in range(L):
        # ---- per-layer weight slices (read inside the loop; keeps live state small)
        inw, inb = inw_ref[l], inb_ref[l]           # (3E, E), (1, 3E)  (Q-scale folded in)
        wo, ob = wo_ref[l], ob_ref[l]               # (H, D, E), (1, E)
        ln1w, ln1b = ln1w_ref[l], ln1b_ref[l]       # (1, E)
        ln2w, ln2b = ln2w_ref[l], ln2b_ref[l]       # (1, E)
        l1w, l1b = l1w_ref[l], l1b_ref[l]           # (FF, E), (1, FF)
        l2w, l2b = l2w_ref[l], l2b_ref[l]           # (E, FF), (1, E)

        # ---- QKV projection: ONE (M, 32) x (32, 96) matmul + one fused bias add.
        qkv = _linear(x, inw, inb)                  # (M, 3E)

        def to_heads(base):
            # Static 8-lane slices per head, stacked on a new leading dim (cheap vreg
            # copies, no matmuls), then a tile-aligned reshape (S = 16 = 2 sublane tiles)
            # to the fused (h, b) attention batch.
            parts = [qkv[:, base + h * D: base + (h + 1) * D] for h in range(H)]
            return jnp.stack(parts, axis=0).reshape(N, S, D)        # (H*Bblk, S, D)

        qh = to_heads(0)                            # scale already folded into Q weights
        kh = to_heads(E)
        vh = to_heads(2 * E)

        # ---- attention: single batched einsum pair over the fused H*Bblk axis
        s = jnp.einsum('nqd,nkd->nqk', qh, kh,
                       preferred_element_type=jnp.float32)           # (N, S, S)
        s = s - jnp.max(s, axis=-1, keepdims=True)
        es = jnp.exp(s)
        # softmax denominator via the (otherwise idle) EUP reciprocal slot
        p = es * pl.reciprocal(jnp.sum(es, axis=-1, keepdims=True), approx=True)
        ctx = jnp.einsum('nqk,nkd->nqd', p, vh,
                         preferred_element_type=jnp.float32)         # (N, S, D)

        # ---- output projection: one head-batched matmul over all M rows + head-sum.
        # (A single (M,32)x(32,32) matmul would need an 8-lane-granular lane concat /
        #  multi-contracting-dim dot_general; kept head-batched for robust lowering.)
        ctx_h = ctx.reshape(H, M, D)                                  # free tile re-index
        po = jnp.einsum('hmd,hde->hme', ctx_h, wo,
                        preferred_element_type=jnp.float32)           # (H, M, E)
        attn_out = jnp.sum(po, axis=0) + ob                           # (M, E)

        # post-norm residual (PyTorch default norm_first=False, dropout = eval id)
        x = _layer_norm(x + attn_out, ln1w, ln1b)

        # ---- feed-forward (ReLU), all rows at once
        ff = _linear(x, l1w, l1b)
        ff = jnp.maximum(ff, 0.0)
        ff = _linear(ff, l2w, l2b)
        x = _layer_norm(x + ff, ln2w, ln2b)

    # Single full-block store; (M, E) -> (Bblk, S, E) is a leading-dim split (free).
    o_ref[...] = x.reshape(Bblk, S, E).astype(o_ref.dtype)


# ---------------------------------------------------------------------------
# Wrapper: wrapper-side (plain XLA) constant folding + one pallas_call.
# ---------------------------------------------------------------------------
def prepare_kernel_params(params):
    """Fold 1/sqrt(D) into the Q rows of the fused in-proj; pre-transpose out_proj."""
    (in_w, in_b, out_w, out_b,
     ln1_w, ln1_b, ln2_w, ln2_b,
     lin1_w, lin1_b, lin2_w, lin2_b) = params
    L, E, H, D = NUM_LAYERS, EMBED_DIM, NUM_HEADS, HEAD_DIM
    scale = 1.0 / (D ** 0.5)

    # in_proj_weight (L, 3E, E): rows [0, E) are the Q projection -> fold scale there.
    in_w_s = jnp.concatenate([in_w[:, :E, :] * scale, in_w[:, E:, :]], axis=1)
    in_b_s = jnp.concatenate([in_b[..., :E] * scale, in_b[..., E:]], axis=-1)

    # out_proj: attn[m, e] = sum_{h,d} ctx[h, m, d] * out_w[e, h*D + d]
    wo = jnp.transpose(out_w.reshape(L, E, H, D), (0, 2, 3, 1))       # (L, H, D, E)

    return (in_w_s, in_b_s, wo, out_b,
            ln1_w, ln1_b, ln2_w, ln2_b, lin1_w, lin1_b, lin2_w, lin2_b)


def simple_transformer_forward(x, params, *, batch_blocks=1):
    """x: (B, H, W, E) -> (B, H*W, E), matching the PyTorch module.

    batch_blocks=1  : single grid step, whole batch in one block (v5e / v6e: 1 TC).
    batch_blocks=2  : 2-step "parallel" grid, one batch half per TensorCore (v7x).
    """
    B, Hh, Ww, E = x.shape
    S = Hh * Ww
    assert B % batch_blocks == 0
    Bblk = B // batch_blocks
    x2 = x.reshape(B, S, E)
    kp = prepare_kernel_params(params)

    def full_spec(arr):
        nd = arr.ndim
        return pl.BlockSpec(arr.shape, lambda i, _nd=nd: (0,) * _nd)

    in_specs = [pl.BlockSpec((Bblk, S, E), lambda i: (i, 0, 0))]
    in_specs += [full_spec(p) for p in kp]

    # Weights (~100 KB total) are fetched once per grid step; at batch_blocks<=2 the
    # duplicate copy is negligible (mark weight specs pl.Buffered(1) if the grid grows).
    out = pl.pallas_call(
        transformer_kernel,
        out_shape=jax.ShapeDtypeStruct((B, S, E), x.dtype),
        grid=(batch_blocks,),
        in_specs=in_specs,
        out_specs=pl.BlockSpec((Bblk, S, E), lambda i: (i, 0, 0)),
        compiler_params=pltpu.CompilerParams(
            dimension_semantics=("parallel",)),
    )(x2, *kp)
    return out


# ---------------------------------------------------------------------------
# Deterministic synthetic parameters (shapes follow nn.TransformerEncoderLayer).
# ---------------------------------------------------------------------------
def init_params(key):
    ks = jax.random.split(key, 6)

    def nrm(k, shape):
        return jax.random.normal(k, shape, jnp.float32) * 0.02

    in_w = nrm(ks[0], (NUM_LAYERS, 3 * EMBED_DIM, EMBED_DIM))   # in_proj_weight
    in_b = nrm(ks[1], (NUM_LAYERS, 1, 3 * EMBED_DIM))           # in_proj_bias
    out_w = nrm(ks[2], (NUM_LAYERS, EMBED_DIM, EMBED_DIM))      # out_proj.weight
    out_b = jnp.zeros((NUM_LAYERS, 1, EMBED_DIM), jnp.float32)  # out_proj.bias
    ln1_w = jnp.ones((NUM_LAYERS, 1, EMBED_DIM), jnp.float32)
    ln1_b = jnp.zeros((NUM_LAYERS, 1, EMBED_DIM), jnp.float32)
    ln2_w = jnp.ones((NUM_LAYERS, 1, EMBED_DIM), jnp.float32)
    ln2_b = jnp.zeros((NUM_LAYERS, 1, EMBED_DIM), jnp.float32)
    lin1_w = nrm(ks[3], (NUM_LAYERS, FF_DIM, EMBED_DIM))        # linear1.weight
    lin1_b = nrm(ks[4], (NUM_LAYERS, 1, FF_DIM))                # linear1.bias
    lin2_w = nrm(ks[5], (NUM_LAYERS, EMBED_DIM, FF_DIM))        # linear2.weight
    lin2_b = jnp.zeros((NUM_LAYERS, 1, EMBED_DIM), jnp.float32) # linear2.bias
    return (in_w, in_b, out_w, out_b,
            ln1_w, ln1_b, ln2_w, ln2_b,
            lin1_w, lin1_b, lin2_w, lin2_b)


def reference_forward(x, params):
    B, H, W, E = x.shape
    x2 = x.reshape(B, H * W, E).astype(jnp.float32)
    return jax.vmap(_forward_sample, in_axes=(0, None))(x2, params)


if __name__ == "__main__":
    key = jax.random.PRNGKey(0)
    kx, kp = jax.random.split(key)

    B, Hh, Ww = 2, 4, 4                                   # seq = 16
    x = jax.random.normal(kx, (B, Hh, Ww, EMBED_DIM), jnp.float32)
    params = init_params(kp)

    out = simple_transformer_forward(x, params)           # batch_blocks=2 on v7x
    out = jax.block_until_ready(out)

    ref = reference_forward(x, params)
    # tolerance accounts for the approximate EUP reciprocal in the softmax denominator
    np.testing.assert_allclose(np.asarray(out), np.asarray(ref),
                               rtol=5e-3, atol=5e-3)
    assert out.shape == (B, Hh * Ww, EMBED_DIM)
    print("KERNEL_OK")
</pallas_src>

<mosaic_0001>
module attributes {stable_mosaic.version = 11 : i64} {
  func.func @transformer_kernel(%arg0: i32, %arg1: memref<2x16x32xf32, #tpu.memory_space<vmem>>, %arg2: memref<2x96x32xf32, #tpu.memory_space<vmem>>, %arg3: memref<2x1x96xf32, #tpu.memory_space<vmem>>, %arg4: memref<2x4x8x32xf32, #tpu.memory_space<vmem>>, %arg5: memref<2x1x32xf32, #tpu.memory_space<vmem>>, %arg6: memref<2x1x32xf32, #tpu.memory_space<vmem>>, %arg7: memref<2x1x32xf32, #tpu.memory_space<vmem>>, %arg8: memref<2x1x32xf32, #tpu.memory_space<vmem>>, %arg9: memref<2x1x32xf32, #tpu.memory_space<vmem>>, %arg10: memref<2x128x32xf32, #tpu.memory_space<vmem>>, %arg11: memref<2x1x128xf32, #tpu.memory_space<vmem>>, %arg12: memref<2x32x128xf32, #tpu.memory_space<vmem>>, %arg13: memref<2x1x32xf32, #tpu.memory_space<vmem>>, %arg14: memref<2x16x32xf32, #tpu.memory_space<vmem>>) attributes {dimension_semantics = [#tpu.dimension_semantics<parallel>], iteration_bounds = array<i64: 1>, scalar_prefetch = 0 : i64, scratch_operands = 0 : i64, tpu.core_type = #tpu.core_type<tc>, window_params = [{transform_indices = @transform_0, window_bounds = array<i64: 2, 16, 32>}, {pipeline_mode = #tpu.pipeline_mode<synchronous>, transform_indices = @transform_1, window_bounds = array<i64: 2, 96, 32>}, {pipeline_mode = #tpu.pipeline_mode<synchronous>, transform_indices = @transform_2, window_bounds = array<i64: 2, 1, 96>}, {pipeline_mode = #tpu.pipeline_mode<synchronous>, transform_indices = @transform_3, window_bounds = array<i64: 2, 4, 8, 32>}, {pipeline_mode = #tpu.pipeline_mode<synchronous>, transform_indices = @transform_4, window_bounds = array<i64: 2, 1, 32>}, {pipeline_mode = #tpu.pipeline_mode<synchronous>, transform_indices = @transform_5, window_bounds = array<i64: 2, 1, 32>}, {pipeline_mode = #tpu.pipeline_mode<synchronous>, transform_indices = @transform_6, window_bounds = array<i64: 2, 1, 32>}, {pipeline_mode = #tpu.pipeline_mode<synchronous>, transform_indices = @transform_7, window_bounds = array<i64: 2, 1, 32>}, {pipeline_mode = #tpu.pipeline_mode<synchronous>, transform_indices = @transform_8, window_bounds = array<i64: 2, 1, 32>}, {pipeline_mode = #tpu.pipeline_mode<synchronous>, transform_indices = @transform_9, window_bounds = array<i64: 2, 128, 32>}, {pipeline_mode = #tpu.pipeline_mode<synchronous>, transform_indices = @transform_10, window_bounds = array<i64: 2, 1, 128>}, {pipeline_mode = #tpu.pipeline_mode<synchronous>, transform_indices = @transform_11, window_bounds = array<i64: 2, 32, 128>}, {pipeline_mode = #tpu.pipeline_mode<synchronous>, transform_indices = @transform_12, window_bounds = array<i64: 2, 1, 32>}, {transform_indices = @transform_13, window_bounds = array<i64: 2, 16, 32>}]} {
    %c0 = arith.constant 0 : index
    %c0_0 = arith.constant 0 : index
    %c0_1 = arith.constant 0 : index
    %0 = vector.load %arg1[%c0, %c0_0, %c0_1] : memref<2x16x32xf32, #tpu.memory_space<vmem>>, vector<2x16x32xf32>
    %1 = vector.shape_cast %0 : vector<2x16x32xf32> to vector<32x32xf32>
    %c0_2 = arith.constant 0 : index
    %c0_3 = arith.constant 0 : index
    %c0_4 = arith.constant 0 : index
    %2 = vector.load %arg2[%c0_2, %c0_3, %c0_4] : memref<2x96x32xf32, #tpu.memory_space<vmem>>, vector<1x96x32xf32>
    %3 = vector.shape_cast %2 : vector<1x96x32xf32> to vector<96x32xf32>
    %c0_5 = arith.constant 0 : index
    %c0_6 = arith.constant 0 : index
    %c0_7 = arith.constant 0 : index
    %4 = vector.load %arg3[%c0_5, %c0_6, %c0_7] : memref<2x1x96xf32, #tpu.memory_space<vmem>>, vector<1x1x96xf32>
    %5 = vector.shape_cast %4 : vector<1x1x96xf32> to vector<1x96xf32>
    %c0_8 = arith.constant 0 : index
    %c0_9 = arith.constant 0 : index
    %c0_10 = arith.constant 0 : index
    %c0_11 = arith.constant 0 : index
    %6 = vector.load %arg4[%c0_8, %c0_9, %c0_10, %c0_11] : memref<2x4x8x32xf32, #tpu.memory_space<vmem>>, vector<1x4x8x32xf32>
    %7 = vector.shape_cast %6 : vector<1x4x8x32xf32> to vector<4x8x32xf32>
    %c0_12 = arith.constant 0 : index
    %c0_13 = arith.constant 0 : index
    %c0_14 = arith.constant 0 : index
    %8 = vector.load %arg5[%c0_12, %c0_13, %c0_14] : memref<2x1x32xf32, #tpu.memory_space<vmem>>, vector<1x1x32xf32>
    %9 = vector.shape_cast %8 : vector<1x1x32xf32> to vector<1x32xf32>
    %c0_15 = arith.constant 0 : index
    %c0_16 = arith.constant 0 : index
    %c0_17 = arith.constant 0 : index
    %10 = vector.load %arg6[%c0_15, %c0_16, %c0_17] : memref<2x1x32xf32, #tpu.memory_space<vmem>>, vector<1x1x32xf32>
    %11 = vector.shape_cast %10 : vector<1x1x32xf32> to vector<1x32xf32>
    %c0_18 = arith.constant 0 : index
    %c0_19 = arith.constant 0 : index
    %c0_20 = arith.constant 0 : index
    %12 = vector.load %arg7[%c0_18, %c0_19, %c0_20] : memref<2x1x32xf32, #tpu.memory_space<vmem>>, vector<1x1x32xf32>
    %13 = vector.shape_cast %12 : vector<1x1x32xf32> to vector<1x32xf32>
    %c0_21 = arith.constant 0 : index
    %c0_22 = arith.constant 0 : index
    %c0_23 = arith.constant 0 : index
    %14 = vector.load %arg8[%c0_21, %c0_22, %c0_23] : memref<2x1x32xf32, #tpu.memory_space<vmem>>, vector<1x1x32xf32>
    %15 = vector.shape_cast %14 : vector<1x1x32xf32> to vector<1x32xf32>
    %c0_24 = arith.constant 0 : index
    %c0_25 = arith.constant 0 : index
    %c0_26 = arith.constant 0 : index
    %16 = vector.load %arg9[%c0_24, %c0_25, %c0_26] : memref<2x1x32xf32, #tpu.memory_space<vmem>>, vector<1x1x32xf32>
    %17 = vector.shape_cast %16 : vector<1x1x32xf32> to vector<1x32xf32>
    %c0_27 = arith.constant 0 : index
    %c0_28 = arith.constant 0 : index
    %c0_29 = arith.constant 0 : index
    %18 = vector.load %arg10[%c0_27, %c0_28, %c0_29] : memref<2x128x32xf32, #tpu.memory_space<vmem>>, vector<1x128x32xf32>
    %19 = vector.shape_cast %18 : vector<1x128x32xf32> to vector<128x32xf32>
    %c0_30 = arith.constant 0 : index
    %c0_31 = arith.constant 0 : index
    %c0_32 = arith.constant 0 : index
    %20 = vector.load %arg11[%c0_30, %c0_31, %c0_32] : memref<2x1x128xf32, #tpu.memory_space<vmem>>, vector<1x1x128xf32>
    %21 = vector.shape_cast %20 : vector<1x1x128xf32> to vector<1x128xf32>
    %c0_33 = arith.constant 0 : index
    %c0_34 = arith.constant 0 : index
    %c0_35 = arith.constant 0 : index
    %22 = vector.load %arg12[%c0_33, %c0_34, %c0_35] : memref<2x32x128xf32, #tpu.memory_space<vmem>>, vector<1x32x128xf32>
    %23 = vector.shape_cast %22 : vector<1x32x128xf32> to vector<32x128xf32>
    %c0_36 = arith.constant 0 : index
    %c0_37 = arith.constant 0 : index
    %c0_38 = arith.constant 0 : index
    %24 = vector.load %arg13[%c0_36, %c0_37, %c0_38] : memref<2x1x32xf32, #tpu.memory_space<vmem>>, vector<1x1x32xf32>
    %25 = vector.shape_cast %24 : vector<1x1x32xf32> to vector<1x32xf32>
    %cst = arith.constant dense<0.000000e+00> : vector<32x96xf32>
    %26 = tpu.matmul %1, %3, %cst {dimension_numbers = #tpu.dot_dimension_numbers<[1], [1], [0], [0], [0, 0, 1, 0], [], []>} : vector<32x32xf32>, vector<96x32xf32>, vector<32x96xf32> -> vector<32x96xf32>
    %27 = vector.broadcast %5 : vector<1x96xf32> to vector<32x96xf32>
    %28 = arith.addf %26, %27 : vector<32x96xf32>
    %29 = vector.extract_strided_slice %28 {offsets = [0, 0], sizes = [32, 8], strides = [1, 1]} : vector<32x96xf32> to vector<32x8xf32>
    %30 = vector.extract_strided_slice %28 {offsets = [0, 8], sizes = [32, 8], strides = [1, 1]} : vector<32x96xf32> to vector<32x8xf32>
    %31 = vector.extract_strided_slice %28 {offsets = [0, 16], sizes = [32, 8], strides = [1, 1]} : vector<32x96xf32> to vector<32x8xf32>
    %32 = vector.extract_strided_slice %28 {offsets = [0, 24], sizes = [32, 8], strides = [1, 1]} : vector<32x96xf32> to vector<32x8xf32>
    %33 = vector.shape_cast %29 : vector<32x8xf32> to vector<1x32x8xf32>
    %34 = vector.shape_cast %30 : vector<32x8xf32> to vector<1x32x8xf32>
    %35 = vector.shape_cast %31 : vector<32x8xf32> to vector<1x32x8xf32>
    %36 = vector.shape_cast %32 : vector<32x8xf32> to vector<1x32x8xf32>
    %37 = tpu.concatenate %33, %34, %35, %36 in 0 : vector<1x32x8xf32>, vector<1x32x8xf32>, vector<1x32x8xf32>, vector<1x32x8xf32> -> vector<4x32x8xf32>
    %38 = vector.shape_cast %37 : vector<4x32x8xf32> to vector<8x16x8xf32>
    %39 = vector.extract_strided_slice %28 {offsets = [0, 32], sizes = [32, 8], strides = [1, 1]} : vector<32x96xf32> to vector<32x8xf32>
    %40 = vector.extract_strided_slice %28 {offsets = [0, 40], sizes = [32, 8], strides = [1, 1]} : vector<32x96xf32> to vector<32x8xf32>
    %41 = vector.extract_strided_slice %28 {offsets = [0, 48], sizes = [32, 8], strides = [1, 1]} : vector<32x96xf32> to vector<32x8xf32>
    %42 = vector.extract_strided_slice %28 {offsets = [0, 56], sizes = [32, 8], strides = [1, 1]} : vector<32x96xf32> to vector<32x8xf32>
    %43 = vector.shape_cast %39 : vector<32x8xf32> to vector<1x32x8xf32>
    %44 = vector.shape_cast %40 : vector<32x8xf32> to vector<1x32x8xf32>
    %45 = vector.shape_cast %41 : vector<32x8xf32> to vector<1x32x8xf32>
    %46 = vector.shape_cast %42 : vector<32x8xf32> to vector<1x32x8xf32>
    %47 = tpu.concatenate %43, %44, %45, %46 in 0 : vector<1x32x8xf32>, vector<1x32x8xf32>, vector<1x32x8xf32>, vector<1x32x8xf32> -> vector<4x32x8xf32>
    %48 = vector.shape_cast %47 : vector<4x32x8xf32> to vector<8x16x8xf32>
    %49 = vector.extract_strided_slice %28 {offsets = [0, 64], sizes = [32, 8], strides = [1, 1]} : vector<32x96xf32> to vector<32x8xf32>
    %50 = vector.extract_strided_slice %28 {offsets = [0, 72], sizes = [32, 8], strides = [1, 1]} : vector<32x96xf32> to vector<32x8xf32>
    %51 = vector.extract_strided_slice %28 {offsets = [0, 80], sizes = [32, 8], strides = [1, 1]} : vector<32x96xf32> to vector<32x8xf32>
    %52 = vector.extract_strided_slice %28 {offsets = [0, 88], sizes = [32, 8], strides = [1, 1]} : vector<32x96xf32> to vector<32x8xf32>
    %53 = vector.shape_cast %49 : vector<32x8xf32> to vector<1x32x8xf32>
    %54 = vector.shape_cast %50 : vector<32x8xf32> to vector<1x32x8xf32>
    %55 = vector.shape_cast %51 : vector<32x8xf32> to vector<1x32x8xf32>
    %56 = vector.shape_cast %52 : vector<32x8xf32> to vector<1x32x8xf32>
    %57 = tpu.concatenate %53, %54, %55, %56 in 0 : vector<1x32x8xf32>, vector<1x32x8xf32>, vector<1x32x8xf32>, vector<1x32x8xf32> -> vector<4x32x8xf32>
    %58 = vector.shape_cast %57 : vector<4x32x8xf32> to vector<8x16x8xf32>
    "tpu.trace_start"() <{level = 10 : i32, message = "nqd,nkd->nqk"}> : () -> ()
    %cst_39 = arith.constant dense<0.000000e+00> : vector<8x16x16xf32>
    %59 = tpu.matmul %38, %48, %cst_39 {dimension_numbers = #tpu.dot_dimension_numbers<[2], [2], [1], [1], [0, 0, 0, 1, 1, 1], [0], [0]>} : vector<8x16x8xf32>, vector<8x16x8xf32>, vector<8x16x16xf32> -> vector<8x16x16xf32>
    "tpu.trace_stop"() : () -> ()
    %cst_40 = arith.constant dense<0xFF800000> : vector<8x16xf32>
    %60 = vector.multi_reduction <maximumf>, %59, %cst_40 [2] : vector<8x16x16xf32> to vector<8x16xf32>
    %61 = vector.shape_cast %60 : vector<8x16xf32> to vector<8x16x1xf32>
    %62 = vector.broadcast %61 : vector<8x16x1xf32> to vector<8x16x16xf32>
    %63 = arith.subf %59, %62 : vector<8x16x16xf32>
    %64 = math.exp %63 : vector<8x16x16xf32>
    %cst_41 = arith.constant dense<0.000000e+00> : vector<8x16xf32>
    %65 = vector.multi_reduction <add>, %64, %cst_41 [2] : vector<8x16x16xf32> to vector<8x16xf32>
    %66 = vector.shape_cast %65 : vector<8x16xf32> to vector<8x16x1xf32>
    %67 = tpu.reciprocal %66 {approx = true} : vector<8x16x1xf32> -> vector<8x16x1xf32>
    %68 = vector.broadcast %67 : vector<8x16x1xf32> to vector<8x16x16xf32>
    %69 = arith.mulf %64, %68 : vector<8x16x16xf32>
    "tpu.trace_start"() <{level = 10 : i32, message = "nqk,nkd->nqd"}> : () -> ()
    %cst_42 = arith.constant dense<0.000000e+00> : vector<8x16x8xf32>
    %70 = tpu.matmul %69, %58, %cst_42 {dimension_numbers = #tpu.dot_dimension_numbers<[2], [1], [1], [2], [0, 0, 0, 1, 1, 2], [0], [0]>} : vector<8x16x16xf32>, vector<8x16x8xf32>, vector<8x16x8xf32> -> vector<8x16x8xf32>
    "tpu.trace_stop"() : () -> ()
    %71 = vector.shape_cast %70 : vector<8x16x8xf32> to vector<4x32x8xf32>
    "tpu.trace_start"() <{level = 10 : i32, message = "hmd,hde->hme"}> : () -> ()
    %cst_43 = arith.constant dense<0.000000e+00> : vector<4x32x32xf32>
    %72 = tpu.matmul %71, %7, %cst_43 {dimension_numbers = #tpu.dot_dimension_numbers<[2], [1], [1], [2], [0, 0, 0, 1, 1, 2], [0], [0]>} : vector<4x32x8xf32>, vector<4x8x32xf32>, vector<4x32x32xf32> -> vector<4x32x32xf32>
    "tpu.trace_stop"() : () -> ()
    %cst_44 = arith.constant dense<0.000000e+00> : vector<32x32xf32>
    %73 = vector.multi_reduction <add>, %72, %cst_44 [0] : vector<4x32x32xf32> to vector<32x32xf32>
    %74 = vector.broadcast %9 : vector<1x32xf32> to vector<32x32xf32>
    %75 = arith.addf %73, %74 : vector<32x32xf32>
    %76 = arith.addf %1, %75 : vector<32x32xf32>
    %cst_45 = arith.constant dense<0.000000e+00> : vector<32xf32>
    %77 = vector.multi_reduction <add>, %76, %cst_45 [1] : vector<32x32xf32> to vector<32xf32>
    %78 = vector.shape_cast %77 : vector<32xf32> to vector<32x1xf32>
    %cst_46 = arith.constant 3.200000e+01 : f32
    %79 = vector.broadcast %cst_46 : f32 to vector<32x1xf32>
    %80 = arith.divf %78, %79 : vector<32x1xf32>
    %81 = vector.broadcast %80 : vector<32x1xf32> to vector<32x32xf32>
    %82 = arith.subf %76, %81 : vector<32x32xf32>
    %83 = arith.mulf %82, %82 : vector<32x32xf32>
    %cst_47 = arith.constant dense<0.000000e+00> : vector<32xf32>
    %84 = vector.multi_reduction <add>, %83, %cst_47 [1] : vector<32x32xf32> to vector<32xf32>
    %85 = vector.shape_cast %84 : vector<32xf32> to vector<32x1xf32>
    %cst_48 = arith.constant 3.200000e+01 : f32
    %86 = vector.broadcast %cst_48 : f32 to vector<32x1xf32>
    %87 = arith.divf %85, %86 : vector<32x1xf32>
    %cst_49 = arith.constant 9.99999974E-6 : f32
    %88 = vector.broadcast %cst_49 : f32 to vector<32x1xf32>
    %89 = arith.addf %87, %88 : vector<32x1xf32>
    %90 = math.rsqrt %89 : vector<32x1xf32>
    %91 = vector.broadcast %90 : vector<32x1xf32> to vector<32x32xf32>
    %92 = arith.mulf %82, %91 : vector<32x32xf32>
    %93 = vector.broadcast %11 : vector<1x32xf32> to vector<32x32xf32>
    %94 = arith.mulf %92, %93 : vector<32x32xf32>
    %95 = vector.broadcast %13 : vector<1x32xf32> to vector<32x32xf32>
    %96 = arith.addf %94, %95 : vector<32x32xf32>
    %cst_50 = arith.constant dense<0.000000e+00> : vector<32x128xf32>
    %97 = tpu.matmul %96, %19, %cst_50 {dimension_numbers = #tpu.dot_dimension_numbers<[1], [1], [0], [0], [0, 0, 1, 0], [], []>} : vector<32x32xf32>, vector<128x32xf32>, vector<32x128xf32> -> vector<32x128xf32>
    %98 = vector.broadcast %21 : vector<1x128xf32> to vector<32x128xf32>
    %99 = arith.addf %97, %98 : vector<32x128xf32>
    %cst_51 = arith.constant 0.000000e+00 : f32
    %100 = vector.broadcast %cst_51 : f32 to vector<32x128xf32>
    %101 = arith.maximumf %99, %100 : vector<32x128xf32>
    %cst_52 = arith.constant dense<0.000000e+00> : vector<32x32xf32>
    %102 = tpu.matmul %101, %23, %cst_52 {dimension_numbers = #tpu.dot_dimension_numbers<[1], [1], [0], [0], [0, 0, 1, 0], [], []>} : vector<32x128xf32>, vector<32x128xf32>, vector<32x32xf32> -> vector<32x32xf32>
    %103 = vector.broadcast %25 : vector<1x32xf32> to vector<32x32xf32>
    %104 = arith.addf %102, %103 : vector<32x32xf32>
    %105 = arith.addf %96, %104 : vector<32x32xf32>
    %cst_53 = arith.constant dense<0.000000e+00> : vector<32xf32>
    %106 = vector.multi_reduction <add>, %105, %cst_53 [1] : vector<32x32xf32> to vector<32xf32>
    %107 = vector.shape_cast %106 : vector<32xf32> to vector<32x1xf32>
    %cst_54 = arith.constant 3.200000e+01 : f32
    %108 = vector.broadcast %cst_54 : f32 to vector<32x1xf32>
    %109 = arith.divf %107, %108 : vector<32x1xf32>
    %110 = vector.broadcast %109 : vector<32x1xf32> to vector<32x32xf32>
    %111 = arith.subf %105, %110 : vector<32x32xf32>
    %112 = arith.mulf %111, %111 : vector<32x32xf32>
    %cst_55 = arith.constant dense<0.000000e+00> : vector<32xf32>
    %113 = vector.multi_reduction <add>, %112, %cst_55 [1] : vector<32x32xf32> to vector<32xf32>
    %114 = vector.shape_cast %113 : vector<32xf32> to vector<32x1xf32>
    %cst_56 = arith.constant 3.200000e+01 : f32
    %115 = vector.broadcast %cst_56 : f32 to vector<32x1xf32>
    %116 = arith.divf %114, %115 : vector<32x1xf32>
    %cst_57 = arith.constant 9.99999974E-6 : f32
    %117 = vector.broadcast %cst_57 : f32 to vector<32x1xf32>
    %118 = arith.addf %116, %117 : vector<32x1xf32>
    %119 = math.rsqrt %118 : vector<32x1xf32>
    %120 = vector.broadcast %119 : vector<32x1xf32> to vector<32x32xf32>
    %121 = arith.mulf %111, %120 : vector<32x32xf32>
    %122 = vector.broadcast %15 : vector<1x32xf32> to vector<32x32xf32>
    %123 = arith.mulf %121, %122 : vector<32x32xf32>
    %124 = vector.broadcast %17 : vector<1x32xf32> to vector<32x32xf32>
    %125 = arith.addf %123, %124 : vector<32x32xf32>
    %c1 = arith.constant 1 : index
    %c0_58 = arith.constant 0 : index
    %c0_59 = arith.constant 0 : index
    %126 = vector.load %arg2[%c1, %c0_58, %c0_59] : memref<2x96x32xf32, #tpu.memory_space<vmem>>, vector<1x96x32xf32>
    %127 = vector.shape_cast %126 : vector<1x96x32xf32> to vector<96x32xf32>
    %c1_60 = arith.constant 1 : index
    %c0_61 = arith.constant 0 : index
    %c0_62 = arith.constant 0 : index
    %128 = vector.load %arg3[%c1_60, %c0_61, %c0_62] : memref<2x1x96xf32, #tpu.memory_space<vmem>>, vector<1x1x96xf32>
    %129 = vector.shape_cast %128 : vector<1x1x96xf32> to vector<1x96xf32>
    %c1_63 = arith.constant 1 : index
    %c0_64 = arith.constant 0 : index
    %c0_65 = arith.constant 0 : index
    %c0_66 = arith.constant 0 : index
    %130 = vector.load %arg4[%c1_63, %c0_64, %c0_65, %c0_66] : memref<2x4x8x32xf32, #tpu.memory_space<vmem>>, vector<1x4x8x32xf32>
    %131 = vector.shape_cast %130 : vector<1x4x8x32xf32> to vector<4x8x32xf32>
    %c1_67 = arith.constant 1 : index
    %c0_68 = arith.constant 0 : index
    %c0_69 = arith.constant 0 : index
    %132 = vector.load %arg5[%c1_67, %c0_68, %c0_69] : memref<2x1x32xf32, #tpu.memory_space<vmem>>, vector<1x1x32xf32>
    %133 = vector.shape_cast %132 : vector<1x1x32xf32> to vector<1x32xf32>
    %c1_70 = arith.constant 1 : index
    %c0_71 = arith.constant 0 : index
    %c0_72 = arith.constant 0 : index
    %134 = vector.load %arg6[%c1_70, %c0_71, %c0_72] : memref<2x1x32xf32, #tpu.memory_space<vmem>>, vector<1x1x32xf32>
    %135 = vector.shape_cast %134 : vector<1x1x32xf32> to vector<1x32xf32>
    %c1_73 = arith.constant 1 : index
    %c0_74 = arith.constant 0 : index
    %c0_75 = arith.constant 0 : index
    %136 = vector.load %arg7[%c1_73, %c0_74, %c0_75] : memref<2x1x32xf32, #tpu.memory_space<vmem>>, vector<1x1x32xf32>
    %137 = vector.shape_cast %136 : vector<1x1x32xf32> to vector<1x32xf32>
    %c1_76 = arith.constant 1 : index
    %c0_77 = arith.constant 0 : index
    %c0_78 = arith.constant 0 : index
    %138 = vector.load %arg8[%c1_76, %c0_77, %c0_78] : memref<2x1x32xf32, #tpu.memory_space<vmem>>, vector<1x1x32xf32>
    %139 = vector.shape_cast %138 : vector<1x1x32xf32> to vector<1x32xf32>
    %c1_79 = arith.constant 1 : index
    %c0_80 = arith.constant 0 : index
    %c0_81 = arith.constant 0 : index
    %140 = vector.load %arg9[%c1_79, %c0_80, %c0_81] : memref<2x1x32xf32, #tpu.memory_space<vmem>>, vector<1x1x32xf32>
    %141 = vector.shape_cast %140 : vector<1x1x32xf32> to vector<1x32xf32>
    %c1_82 = arith.constant 1 : index
    %c0_83 = arith.constant 0 : index
    %c0_84 = arith.constant 0 : index
    %142 = vector.load %arg10[%c1_82, %c0_83, %c0_84] : memref<2x128x32xf32, #tpu.memory_space<vmem>>, vector<1x128x32xf32>
    %143 = vector.shape_cast %142 : vector<1x128x32xf32> to vector<128x32xf32>
    %c1_85 = arith.constant 1 : index
    %c0_86 = arith.constant 0 : index
    %c0_87 = arith.constant 0 : index
    %144 = vector.load %arg11[%c1_85, %c0_86, %c0_87] : memref<2x1x128xf32, #tpu.memory_space<vmem>>, vector<1x1x128xf32>
    %145 = vector.shape_cast %144 : vector<1x1x128xf32> to vector<1x128xf32>
    %c1_88 = arith.constant 1 : index
    %c0_89 = arith.constant 0 : index
    %c0_90 = arith.constant 0 : index
    %146 = vector.load %arg12[%c1_88, %c0_89, %c0_90] : memref<2x32x128xf32, #tpu.memory_space<vmem>>, vector<1x32x128xf32>
    %147 = vector.shape_cast %146 : vector<1x32x128xf32> to vector<32x128xf32>
    %c1_91 = arith.constant 1 : index
    %c0_92 = arith.constant 0 : index
    %c0_93 = arith.constant 0 : index
    %148 = vector.load %arg13[%c1_91, %c0_92, %c0_93] : memref<2x1x32xf32, #tpu.memory_space<vmem>>, vector<1x1x32xf32>
    %149 = vector.shape_cast %148 : vector<1x1x32xf32> to vector<1x32xf32>
    %cst_94 = arith.constant dense<0.000000e+00> : vector<32x96xf32>
    %150 = tpu.matmul %125, %127, %cst_94 {dimension_numbers = #tpu.dot_dimension_numbers<[1], [1], [0], [0], [0, 0, 1, 0], [], []>} : vector<32x32xf32>, vector<96x32xf32>, vector<32x96xf32> -> vector<32x96xf32>
    %151 = vector.broadcast %129 : vector<1x96xf32> to vector<32x96xf32>
    %152 = arith.addf %150, %151 : vector<32x96xf32>
    %153 = vector.extract_strided_slice %152 {offsets = [0, 0], sizes = [32, 8], strides = [1, 1]} : vector<32x96xf32> to vector<32x8xf32>
    %154 = vector.extract_strided_slice %152 {offsets = [0, 8], sizes = [32, 8], strides = [1, 1]} : vector<32x96xf32> to vector<32x8xf32>
    %155 = vector.extract_strided_slice %152 {offsets = [0, 16], sizes = [32, 8], strides = [1, 1]} : vector<32x96xf32> to vector<32x8xf32>
    %156 = vector.extract_strided_slice %152 {offsets = [0, 24], sizes = [32, 8], strides = [1, 1]} : vector<32x96xf32> to vector<32x8xf32>
    %157 = vector.shape_cast %153 : vector<32x8xf32> to vector<1x32x8xf32>
    %158 = vector.shape_cast %154 : vector<32x8xf32> to vector<1x32x8xf32>
    %159 = vector.shape_cast %155 : vector<32x8xf32> to vector<1x32x8xf32>
    %160 = vector.shape_cast %156 : vector<32x8xf32> to vector<1x32x8xf32>
    %161 = tpu.concatenate %157, %158, %159, %160 in 0 : vector<1x32x8xf32>, vector<1x32x8xf32>, vector<1x32x8xf32>, vector<1x32x8xf32> -> vector<4x32x8xf32>
    %162 = vector.shape_cast %161 : vector<4x32x8xf32> to vector<8x16x8xf32>
    %163 = vector.extract_strided_slice %152 {offsets = [0, 32], sizes = [32, 8], strides = [1, 1]} : vector<32x96xf32> to vector<32x8xf32>
    %164 = vector.extract_strided_slice %152 {offsets = [0, 40], sizes = [32, 8], strides = [1, 1]} : vector<32x96xf32> to vector<32x8xf32>
    %165 = vector.extract_strided_slice %152 {offsets = [0, 48], sizes = [32, 8], strides = [1, 1]} : vector<32x96xf32> to vector<32x8xf32>
    %166 = vector.extract_strided_slice %152 {offsets = [0, 56], sizes = [32, 8], strides = [1, 1]} : vector<32x96xf32> to vector<32x8xf32>
    %167 = vector.shape_cast %163 : vector<32x8xf32> to vector<1x32x8xf32>
    %168 = vector.shape_cast %164 : vector<32x8xf32> to vector<1x32x8xf32>
    %169 = vector.shape_cast %165 : vector<32x8xf32> to vector<1x32x8xf32>
    %170 = vector.shape_cast %166 : vector<32x8xf32> to vector<1x32x8xf32>
    %171 = tpu.concatenate %167, %168, %169, %170 in 0 : vector<1x32x8xf32>, vector<1x32x8xf32>, vector<1x32x8xf32>, vector<1x32x8xf32> -> vector<4x32x8xf32>
    %172 = vector.shape_cast %171 : vector<4x32x8xf32> to vector<8x16x8xf32>
    %173 = vector.extract_strided_slice %152 {offsets = [0, 64], sizes = [32, 8], strides = [1, 1]} : vector<32x96xf32> to vector<32x8xf32>
    %174 = vector.extract_strided_slice %152 {offsets = [0, 72], sizes = [32, 8], strides = [1, 1]} : vector<32x96xf32> to vector<32x8xf32>
    %175 = vector.extract_strided_slice %152 {offsets = [0, 80], sizes = [32, 8], strides = [1, 1]} : vector<32x96xf32> to vector<32x8xf32>
    %176 = vector.extract_strided_slice %152 {offsets = [0, 88], sizes = [32, 8], strides = [1, 1]} : vector<32x96xf32> to vector<32x8xf32>
    %177 = vector.shape_cast %173 : vector<32x8xf32> to vector<1x32x8xf32>
    %178 = vector.shape_cast %174 : vector<32x8xf32> to vector<1x32x8xf32>
    %179 = vector.shape_cast %175 : vector<32x8xf32> to vector<1x32x8xf32>
    %180 = vector.shape_cast %176 : vector<32x8xf32> to vector<1x32x8xf32>
    %181 = tpu.concatenate %177, %178, %179, %180 in 0 : vector<1x32x8xf32>, vector<1x32x8xf32>, vector<1x32x8xf32>, vector<1x32x8xf32> -> vector<4x32x8xf32>
    %182 = vector.shape_cast %181 : vector<4x32x8xf32> to vector<8x16x8xf32>
    "tpu.trace_start"() <{level = 10 : i32, message = "nqd,nkd->nqk"}> : () -> ()
    %cst_95 = arith.constant dense<0.000000e+00> : vector<8x16x16xf32>
    %183 = tpu.matmul %162, %172, %cst_95 {dimension_numbers = #tpu.dot_dimension_numbers<[2], [2], [1], [1], [0, 0, 0, 1, 1, 1], [0], [0]>} : vector<8x16x8xf32>, vector<8x16x8xf32>, vector<8x16x16xf32> -> vector<8x16x16xf32>
    "tpu.trace_stop"() : () -> ()
    %cst_96 = arith.constant dense<0xFF800000> : vector<8x16xf32>
    %184 = vector.multi_reduction <maximumf>, %183, %cst_96 [2] : vector<8x16x16xf32> to vector<8x16xf32>
    %185 = vector.shape_cast %184 : vector<8x16xf32> to vector<8x16x1xf32>
    %186 = vector.broadcast %185 : vector<8x16x1xf32> to vector<8x16x16xf32>
    %187 = arith.subf %183, %186 : vector<8x16x16xf32>
    %188 = math.exp %187 : vector<8x16x16xf32>
    %cst_97 = arith.constant dense<0.000000e+00> : vector<8x16xf32>
    %189 = vector.multi_reduction <add>, %188, %cst_97 [2] : vector<8x16x16xf32> to vector<8x16xf32>
    %190 = vector.shape_cast %189 : vector<8x16xf32> to vector<8x16x1xf32>
    %191 = tpu.reciprocal %190 {approx = true} : vector<8x16x1xf32> -> vector<8x16x1xf32>
    %192 = vector.broadcast %191 : vector<8x16x1xf32> to vector<8x16x16xf32>
    %193 = arith.mulf %188, %192 : vector<8x16x16xf32>
    "tpu.trace_start"() <{level = 10 : i32, message = "nqk,nkd->nqd"}> : () -> ()
    %cst_98 = arith.constant dense<0.000000e+00> : vector<8x16x8xf32>
    %194 = tpu.matmul %193, %182, %cst_98 {dimension_numbers = #tpu.dot_dimension_numbers<[2], [1], [1], [2], [0, 0, 0, 1, 1, 2], [0], [0]>} : vector<8x16x16xf32>, vector<8x16x8xf32>, vector<8x16x8xf32> -> vector<8x16x8xf32>
    "tpu.trace_stop"() : () -> ()
    %195 = vector.shape_cast %194 : vector<8x16x8xf32> to vector<4x32x8xf32>
    "tpu.trace_start"() <{level = 10 : i32, message = "hmd,hde->hme"}> : () -> ()
    %cst_99 = arith.constant dense<0.000000e+00> : vector<4x32x32xf32>
    %196 = tpu.matmul %195, %131, %cst_99 {dimension_numbers = #tpu.dot_dimension_numbers<[2], [1], [1], [2], [0, 0, 0, 1, 1, 2], [0], [0]>} : vector<4x32x8xf32>, vector<4x8x32xf32>, vector<4x32x32xf32> -> vector<4x32x32xf32>
    "tpu.trace_stop"() : () -> ()
    %cst_100 = arith.constant dense<0.000000e+00> : vector<32x32xf32>
    %197 = vector.multi_reduction <add>, %196, %cst_100 [0] : vector<4x32x32xf32> to vector<32x32xf32>
    %198 = vector.broadcast %133 : vector<1x32xf32> to vector<32x32xf32>
    %199 = arith.addf %197, %198 : vector<32x32xf32>
    %200 = arith.addf %125, %199 : vector<32x32xf32>
    %cst_101 = arith.constant dense<0.000000e+00> : vector<32xf32>
    %201 = vector.multi_reduction <add>, %200, %cst_101 [1] : vector<32x32xf32> to vector<32xf32>
    %202 = vector.shape_cast %201 : vector<32xf32> to vector<32x1xf32>
    %cst_102 = arith.constant 3.200000e+01 : f32
    %203 = vector.broadcast %cst_102 : f32 to vector<32x1xf32>
    %204 = arith.divf %202, %203 : vector<32x1xf32>
    %205 = vector.broadcast %204 : vector<32x1xf32> to vector<32x32xf32>
    %206 = arith.subf %200, %205 : vector<32x32xf32>
    %207 = arith.mulf %206, %206 : vector<32x32xf32>
    %cst_103 = arith.constant dense<0.000000e+00> : vector<32xf32>
    %208 = vector.multi_reduction <add>, %207, %cst_103 [1] : vector<32x32xf32> to vector<32xf32>
    %209 = vector.shape_cast %208 : vector<32xf32> to vector<32x1xf32>
    %cst_104 = arith.constant 3.200000e+01 : f32
    %210 = vector.broadcast %cst_104 : f32 to vector<32x1xf32>
    %211 = arith.divf %209, %210 : vector<32x1xf32>
    %cst_105 = arith.constant 9.99999974E-6 : f32
    %212 = vector.broadcast %cst_105 : f32 to vector<32x1xf32>
    %213 = arith.addf %211, %212 : vector<32x1xf32>
    %214 = math.rsqrt %213 : vector<32x1xf32>
    %215 = vector.broadcast %214 : vector<32x1xf32> to vector<32x32xf32>
    %216 = arith.mulf %206, %215 : vector<32x32xf32>
    %217 = vector.broadcast %135 : vector<1x32xf32> to vector<32x32xf32>
    %218 = arith.mulf %216, %217 : vector<32x32xf32>
    %219 = vector.broadcast %137 : vector<1x32xf32> to vector<32x32xf32>
    %220 = arith.addf %218, %219 : vector<32x32xf32>
    %cst_106 = arith.constant dense<0.000000e+00> : vector<32x128xf32>
    %221 = tpu.matmul %220, %143, %cst_106 {dimension_numbers = #tpu.dot_dimension_numbers<[1], [1], [0], [0], [0, 0, 1, 0], [], []>} : vector<32x32xf32>, vector<128x32xf32>, vector<32x128xf32> -> vector<32x128xf32>
    %222 = vector.broadcast %145 : vector<1x128xf32> to vector<32x128xf32>
    %223 = arith.addf %221, %222 : vector<32x128xf32>
    %cst_107 = arith.constant 0.000000e+00 : f32
    %224 = vector.broadcast %cst_107 : f32 to vector<32x128xf32>
    %225 = arith.maximumf %223, %224 : vector<32x128xf32>
    %cst_108 = arith.constant dense<0.000000e+00> : vector<32x32xf32>
    %226 = tpu.matmul %225, %147, %cst_108 {dimension_numbers = #tpu.dot_dimension_numbers<[1], [1], [0], [0], [0, 0, 1, 0], [], []>} : vector<32x128xf32>, vector<32x128xf32>, vector<32x32xf32> -> vector<32x32xf32>
    %227 = vector.broadcast %149 : vector<1x32xf32> to vector<32x32xf32>
    %228 = arith.addf %226, %227 : vector<32x32xf32>
    %229 = arith.addf %220, %228 : vector<32x32xf32>
    %cst_109 = arith.constant dense<0.000000e+00> : vector<32xf32>
    %230 = vector.multi_reduction <add>, %229, %cst_109 [1] : vector<32x32xf32> to vector<32xf32>
    %231 = vector.shape_cast %230 : vector<32xf32> to vector<32x1xf32>
    %cst_110 = arith.constant 3.200000e+01 : f32
    %232 = vector.broadcast %cst_110 : f32 to vector<32x1xf32>
    %233 = arith.divf %231, %232 : vector<32x1xf32>
    %234 = vector.broadcast %233 : vector<32x1xf32> to vector<32x32xf32>
    %235 = arith.subf %229, %234 : vector<32x32xf32>
    %236 = arith.mulf %235, %235 : vector<32x32xf32>
    %cst_111 = arith.constant dense<0.000000e+00> : vector<32xf32>
    %237 = vector.multi_reduction <add>, %236, %cst_111 [1] : vector<32x32xf32> to vector<32xf32>
    %238 = vector.shape_cast %237 : vector<32xf32> to vector<32x1xf32>
    %cst_112 = arith.constant 3.200000e+01 : f32
    %239 = vector.broadcast %cst_112 : f32 to vector<32x1xf32>
    %240 = arith.divf %238, %239 : vector<32x1xf32>
    %cst_113 = arith.constant 9.99999974E-6 : f32
    %241 = vector.broadcast %cst_113 : f32 to vector<32x1xf32>
    %242 = arith.addf %240, %241 : vector<32x1xf32>
    %243 = math.rsqrt %242 : vector<32x1xf32>
    %244 = vector.broadcast %243 : vector<32x1xf32> to vector<32x32xf32>
    %245 = arith.mulf %235, %244 : vector<32x32xf32>
    %246 = vector.broadcast %139 : vector<1x32xf32> to vector<32x32xf32>
    %247 = arith.mulf %245, %246 : vector<32x32xf32>
    %248 = vector.broadcast %141 : vector<1x32xf32> to vector<32x32xf32>
    %249 = arith.addf %247, %248 : vector<32x32xf32>
    %250 = vector.shape_cast %249 : vector<32x32xf32> to vector<2x16x32xf32>
    %c0_114 = arith.constant 0 : index
    %c0_115 = arith.constant 0 : index
    %c0_116 = arith.constant 0 : index
    %251 = vector.load %arg14[%c0_114, %c0_115, %c0_116] : memref<2x16x32xf32, #tpu.memory_space<vmem>>, vector<2x16x32xf32>
    tpu.vector_store %arg14[%c0_114, %c0_115, %c0_116], %250 {strides = array<i32>} : memref<2x16x32xf32, #tpu.memory_space<vmem>>, vector<2x16x32xf32>,
    return
  }
  func.func @transform_0(%arg0: i32) -> (i32, i32, i32) {
    %c0_i32 = arith.constant 0 : i32
    %c0_i32_0 = arith.constant 0 : i32
    %c0_i32_1 = arith.constant 0 : i32
    return %arg0, %c0_i32, %c0_i32_0 : i32, i32, i32
  }
  func.func @transform_1(%arg0: i32) -> (i32, i32, i32) {
    %c0_i32 = arith.constant 0 : i32
    %c0_i32_0 = arith.constant 0 : i32
    %c0_i32_1 = arith.constant 0 : i32
    %c0_i32_2 = arith.constant 0 : i32
    return %c0_i32, %c0_i32_0, %c0_i32_1 : i32, i32, i32
  }
  func.func @transform_2(%arg0: i32) -> (i32, i32, i32) {
    %c0_i32 = arith.constant 0 : i32
    %c0_i32_0 = arith.constant 0 : i32
    %c0_i32_1 = arith.constant 0 : i32
    %c0_i32_2 = arith.constant 0 : i32
    return %c0_i32, %c0_i32_0, %c0_i32_1 : i32, i32, i32
  }
  func.func @transform_3(%arg0: i32) -> (i32, i32, i32, i32) {
    %c0_i32 = arith.constant 0 : i32
    %c0_i32_0 = arith.constant 0 : i32
    %c0_i32_1 = arith.constant 0 : i32
    %c0_i32_2 = arith.constant 0 : i32
    %c0_i32_3 = arith.constant 0 : i32
    return %c0_i32, %c0_i32_0, %c0_i32_1, %c0_i32_2 : i32, i32, i32, i32
  }
  func.func @transform_4(%arg0: i32) -> (i32, i32, i32) {
    %c0_i32 = arith.constant 0 : i32
    %c0_i32_0 = arith.constant 0 : i32
    %c0_i32_1 = arith.constant 0 : i32
    %c0_i32_2 = arith.constant 0 : i32
    return %c0_i32, %c0_i32_0, %c0_i32_1 : i32, i32, i32
  }
  func.func @transform_5(%arg0: i32) -> (i32, i32, i32) {
    %c0_i32 = arith.constant 0 : i32
    %c0_i32_0 = arith.constant 0 : i32
    %c0_i32_1 = arith.constant 0 : i32
    %c0_i32_2 = arith.constant 0 : i32
    return %c0_i32, %c0_i32_0, %c0_i32_1 : i32, i32, i32
  }
  func.func @transform_6(%arg0: i32) -> (i32, i32, i32) {
    %c0_i32 = arith.constant 0 : i32
    %c0_i32_0 = arith.constant 0 : i32
    %c0_i32_1 = arith.constant 0 : i32
    %c0_i32_2 = arith.constant 0 : i32
    return %c0_i32, %c0_i32_0, %c0_i32_1 : i32, i32, i32
  }
  func.func @transform_7(%arg0: i32) -> (i32, i32, i32) {
    %c0_i32 = arith.constant 0 : i32
    %c0_i32_0 = arith.constant 0 : i32
    %c0_i32_1 = arith.constant 0 : i32
    %c0_i32_2 = arith.constant 0 : i32
    return %c0_i32, %c0_i32_0, %c0_i32_1 : i32, i32, i32
  }
  func.func @transform_8(%arg0: i32) -> (i32, i32, i32) {
    %c0_i32 = arith.constant 0 : i32
    %c0_i32_0 = arith.constant 0 : i32
    %c0_i32_1 = arith.constant 0 : i32
    %c0_i32_2 = arith.constant 0 : i32
    return %c0_i32, %c0_i32_0, %c0_i32_1 : i32, i32, i32
  }
  func.func @transform_9(%arg0: i32) -> (i32, i32, i32) {
    %c0_i32 = arith.constant 0 : i32
    %c0_i32_0 = arith.constant 0 : i32
    %c0_i32_1 = arith.constant 0 : i32
    %c0_i32_2 = arith.constant 0 : i32
    return %c0_i32, %c0_i32_0, %c0_i32_1 : i32, i32, i32
  }
  func.func @transform_10(%arg0: i32) -> (i32, i32, i32) {
    %c0_i32 = arith.constant 0 : i32
    %c0_i32_0 = arith.constant 0 : i32
    %c0_i32_1 = arith.constant 0 : i32
    %c0_i32_2 = arith.constant 0 : i32
    return %c0_i32, %c0_i32_0, %c0_i32_1 : i32, i32, i32
  }
  func.func @transform_11(%arg0: i32) -> (i32, i32, i32) {
    %c0_i32 = arith.constant 0 : i32
    %c0_i32_0 = arith.constant 0 : i32
    %c0_i32_1 = arith.constant 0 : i32
    %c0_i32_2 = arith.constant 0 : i32
    return %c0_i32, %c0_i32_0, %c0_i32_1 : i32, i32, i32
  }
  func.func @transform_12(%arg0: i32) -> (i32, i32, i32) {
    %c0_i32 = arith.constant 0 : i32
    %c0_i32_0 = arith.constant 0 : i32
    %c0_i32_1 = arith.constant 0 : i32
    %c0_i32_2 = arith.constant 0 : i32
    return %c0_i32, %c0_i32_0, %c0_i32_1 : i32, i32, i32
  }
  func.func @transform_13(%arg0: i32) -> (i32, i32, i32) {
    %c0_i32 = arith.constant 0 : i32
    %c0_i32_0 = arith.constant 0 : i32
    %c0_i32_1 = arith.constant 0 : i32
    return %arg0, %c0_i32, %c0_i32_0 : i32, i32, i32
  }
}

</mosaic_0001>

<llo_original>
// kernel: tpu_custom_call.1
$region0: #{tpu_custom_call.1}
  #allocation0 [shape = 'u32[]', space=smem, size = 0x4, offset = 0x4, fixed_abs, tag = 'smem constant byte address 0x4 - core index']
  #allocation1 [shape = 'u32[144,128]{1,0:T(1,128)}', space=vmem, size = 0x12000, scoped, tag = 'internal scratch']
  %s0 = inlined_call_operand.vmem [shape: f32[2,16,32], index: 0, kind: input, shape index: {}]
  %s1 = inlined_call_operand.vmem [shape: f32[2,96,32], index: 1, kind: input, shape index: {}]
  %s2 = inlined_call_operand.vmem [shape: f32[2,1,96], index: 2, kind: input, shape index: {}]
  %s3 = inlined_call_operand.vmem [shape: f32[2,4,8,32], index: 3, kind: input, shape index: {}]
  %s4 = inlined_call_operand.vmem [shape: f32[2,1,32], index: 4, kind: input, shape index: {}]
  %s5 = inlined_call_operand.vmem [shape: f32[2,1,32], index: 5, kind: input, shape index: {}]
  %s6 = inlined_call_operand.vmem [shape: f32[2,1,32], index: 6, kind: input, shape index: {}]
  %s7 = inlined_call_operand.vmem [shape: f32[2,1,32], index: 7, kind: input, shape index: {}]
  %s8 = inlined_call_operand.vmem [shape: f32[2,1,32], index: 8, kind: input, shape index: {}]
  %s9 = inlined_call_operand.vmem [shape: f32[2,128,32], index: 9, kind: input, shape index: {}]
  %s10 = inlined_call_operand.vmem [shape: f32[2,1,128], index: 10, kind: input, shape index: {}]
  %s11 = inlined_call_operand.vmem [shape: f32[2,32,128], index: 11, kind: input, shape index: {}]
  %s12 = inlined_call_operand.vmem [shape: f32[2,1,32], index: 12, kind: input, shape index: {}]
  %s13 = inlined_call_operand.hbm [shape: f32[2,16,32], index: 13, kind: output, shape index: {}]
  %s14 = sld [smem:[#allocation0]]
  $region62: #{tpu_custom_call.1} parent=0
    _
  %s16 = ssub.s32 1, %s14
  %s17 = scalar_select 0, %s16, %s14
  $region1: #{tpu_custom_call.1} parent=0
    #allocation2 [shape = 'u8[16384]{0}', space=vmem, size = 0x4000, scoped, tag = 'output window, operand 0, single buffered']
    #allocation3 [shape = 's32[1]{0}', space=sflag, size = 0x4, scoped, tag = 'scoped memory for tpu_custom_call.1']
    %18 = vsyncpa [#allocation3], 0
    // Predicated region
    $region2: #{tpu_custom_call.1} parent=1 // pred_check
      _
    $region3: #{tpu_custom_call.1} parent=1 // pred_check_branch
      %20 = sbr.rel (0) target = $region5
    $region4: #{tpu_custom_call.1} parent=1 // pred_region
      _
    $region5: #{tpu_custom_call.1} parent=1 // pred_fallthru
      _
    // Predicated region
    $region6: #{tpu_custom_call.1} parent=1 // pred_check
      _
    $region7: #{tpu_custom_call.1} parent=1 // pred_check_branch
      %22 = sbr.rel (0) target = $region9
    $region8: #{tpu_custom_call.1} parent=1 // pred_region
      _
    $region9: #{tpu_custom_call.1} parent=1 // pred_fallthru
      _
    // Predicated region
    $region10: #{tpu_custom_call.1} parent=1 // pred_check
      _
    $region11: #{tpu_custom_call.1} parent=1 // pred_check_branch
      %24 = sbr.rel (0) target = $region13
    $region12: #{tpu_custom_call.1} parent=1 // pred_region
      _
    $region13: #{tpu_custom_call.1} parent=1 // pred_fallthru
      _
    // Predicated region
    $region14: #{tpu_custom_call.1} parent=1 // pred_check
      _
    $region15: #{tpu_custom_call.1} parent=1 // pred_check_branch
      %26 = sbr.rel (0) target = $region17
    $region16: #{tpu_custom_call.1} parent=1 // pred_region
      _
    $region17: #{tpu_custom_call.1} parent=1 // pred_fallthru
      _
    // Predicated region
    $region18: #{tpu_custom_call.1} parent=1 // pred_check
      _
    $region19: #{tpu_custom_call.1} parent=1 // pred_check_branch
      %28 = sbr.rel (0) target = $region21
    $region20: #{tpu_custom_call.1} parent=1 // pred_region
      _
    $region21: #{tpu_custom_call.1} parent=1 // pred_fallthru
      _
    // Predicated region
    $region22: #{tpu_custom_call.1} parent=1 // pred_check
      _
    $region23: #{tpu_custom_call.1} parent=1 // pred_check_branch
      %30 = sbr.rel (0) target = $region25
    $region24: #{tpu_custom_call.1} parent=1 // pred_region
      _
    $region25: #{tpu_custom_call.1} parent=1 // pred_fallthru
      _
    // Predicated region
    $region26: #{tpu_custom_call.1} parent=1 // pred_check
      _
    $region27: #{tpu_custom_call.1} parent=1 // pred_check_branch
      %32 = sbr.rel (0) target = $region29
    $region28: #{tpu_custom_call.1} parent=1 // pred_region
      _
    $region29: #{tpu_custom_call.1} parent=1 // pred_fallthru
      _
    // Predicated region
    $region30: #{tpu_custom_call.1} parent=1 // pred_check
      _
    $region31: #{tpu_custom_call.1} parent=1 // pred_check_branch
      %34 = sbr.rel (0) target = $region33
    $region32: #{tpu_custom_call.1} parent=1 // pred_region
      _
    $region33: #{tpu_custom_call.1} parent=1 // pred_fallthru
      _
    // Predicated region
    $region34: #{tpu_custom_call.1} parent=1 // pred_check
      _
    $region35: #{tpu_custom_call.1} parent=1 // pred_check_branch
      %36 = sbr.rel (0) target = $region37
    $region36: #{tpu_custom_call.1} parent=1 // pred_region
      _
    $region37: #{tpu_custom_call.1} parent=1 // pred_fallthru
      _
    // Predicated region
    $region38: #{tpu_custom_call.1} parent=1 // pred_check
      _
    $region39: #{tpu_custom_call.1} parent=1 // pred_check_branch
      %38 = sbr.rel (0) target = $region41
    $region40: #{tpu_custom_call.1} parent=1 // pred_region
      _
    $region41: #{tpu_custom_call.1} parent=1 // pred_fallthru
      _
    // Predicated region
    $region42: #{tpu_custom_call.1} parent=1 // pred_check
      _
    $region43: #{tpu_custom_call.1} parent=1 // pred_check_branch
      %40 = sbr.rel (0) target = $region45
    $region44: #{tpu_custom_call.1} parent=1 // pred_region
      _
    $region45: #{tpu_custom_call.1} parent=1 // pred_fallthru
      _
    // Predicated region
    $region46: #{tpu_custom_call.1} parent=1 // pred_check
      _
    $region47: #{tpu_custom_call.1} parent=1 // pred_check_branch
      %42 = sbr.rel (0) target = $region49
    $region48: #{tpu_custom_call.1} parent=1 // pred_region
      _
    $region49: #{tpu_custom_call.1} parent=1 // pred_fallthru
      _
    // Predicated region
    $region50: #{tpu_custom_call.1} parent=1 // pred_check
      _
    $region51: #{tpu_custom_call.1} parent=1 // pred_check_branch
      %44 = sbr.rel (0) target = $region53
    $region52: #{tpu_custom_call.1} parent=1 // pred_region
      _
    $region53: #{tpu_custom_call.1} parent=1 // pred_fallthru
      _
    %v45 = vld [vmem:[%s0] sm:$0xff]
    %v46 = vld [vmem:[%s0 + $0x8] sm:$0xff]
    %v47 = vld [vmem:[%s0 + $0x10] sm:$0xff]
    %v48 = vld [vmem:[%s0 + $0x18] sm:$0xff]
    %v49 = vld [vmem:[%s1] sm:$0xff]
    %v50 = vld [vmem:[%s1 + $0x8] sm:$0xff]
    %v51 = vld [vmem:[%s1 + $0x10] sm:$0xff]
    %v52 = vld [vmem:[%s1 + $0x18] sm:$0xff]
    %v53 = vld [vmem:[%s1 + $0x20] sm:$0xff]
    %v54 = vld [vmem:[%s1 + $0x28] sm:$0xff]
    %v55 = vld [vmem:[%s1 + $0x30] sm:$0xff]
    %v56 = vld [vmem:[%s1 + $0x38] sm:$0xff]
    %v57 = vld [vmem:[%s1 + $0x40] sm:$0xff]
    %v58 = vld [vmem:[%s1 + $0x48] sm:$0xff]
    %v59 = vld [vmem:[%s1 + $0x50] sm:$0xff]
    %v60 = vld [vmem:[%s1 + $0x58] sm:$0xff]
    %v61 = vld [vmem:[%s2] sm:$0x1]
    %v62 = vld [vmem:[%s3] sm:$0xff]
    %v63 = vld [vmem:[%s3 + $0x8] sm:$0xff]
    %v64 = vld [vmem:[%s3 + $0x10] sm:$0xff]
    %v65 = vld [vmem:[%s3 + $0x18] sm:$0xff]
    %v66 = vld [vmem:[%s4] sm:$0x1]
    %v67 = vld [vmem:[%s5] sm:$0x1]
    %v68 = vld [vmem:[%s6] sm:$0x1]
    %v69 = vld [vmem:[%s7] sm:$0x1]
    %v70 = vld [vmem:[%s8] sm:$0x1]
    %v71 = vld [vmem:[%s9] sm:$0xff]
    %v72 = vld [vmem:[%s9 + $0x8] sm:$0xff]
    %v73 = vld [vmem:[%s9 + $0x10] sm:$0xff]
    %v74 = vld [vmem:[%s9 + $0x18] sm:$0xff]
    %v75 = vld [vmem:[%s9 + $0x20] sm:$0xff]
    %v76 = vld [vmem:[%s9 + $0x28] sm:$0xff]
    %v77 = vld [vmem:[%s9 + $0x30] sm:$0xff]
    %v78 = vld [vmem:[%s9 + $0x38] sm:$0xff]
    %v79 = vld [vmem:[%s9 + $0x40] sm:$0xff]
    %v80 = vld [vmem:[%s9 + $0x48] sm:$0xff]
    %v81 = vld [vmem:[%s9 + $0x50] sm:$0xff]
    %v82 = vld [vmem:[%s9 + $0x58] sm:$0xff]
    %v83 = vld [vmem:[%s9 + $0x60] sm:$0xff]
    %v84 = vld [vmem:[%s9 + $0x68] sm:$0xff]
    %v85 = vld [vmem:[%s9 + $0x70] sm:$0xff]
    %v86 = vld [vmem:[%s9 + $0x78] sm:$0xff]
    %v87 = vld [vmem:[%s10] sm:$0x1]
    %v88 = vld [vmem:[%s11] sm:$0xff]
    %v89 = vld [vmem:[%s11 + $0x8] sm:$0xff]
    %v90 = vld [vmem:[%s11 + $0x10] sm:$0xff]
    %v91 = vld [vmem:[%s11 + $0x18] sm:$0xff]
    %v92 = vld [vmem:[%s12] sm:$0x1]
    %v94 = vlaneseq
    %v95 = vshrl.u32 %v94, 7
    %v96 = vsub.s32 0, %v95
    %v97 = vrot.slane %v61, %v96
    %vm99 = vcmask 261120
    %v101 = vsel %vm99, %v45, 0
    %v104 = vsel %vm99, %v46, 0
    %v107 = vsel %vm99, %v47, 0
    %v110 = vsel %vm99, %v48, 0
    %v113 = vsel %vm99, %v49, 0
    %v116 = vsel %vm99, %v50, 0
    %v119 = vsel %vm99, %v51, 0
    %v122 = vsel %vm99, %v52, 0
    %v125 = vsel %vm99, %v53, 0
    %v128 = vsel %vm99, %v54, 0
    %v131 = vsel %vm99, %v55, 0
    %v134 = vsel %vm99, %v56, 0
    %v137 = vsel %vm99, %v57, 0
    %v140 = vsel %vm99, %v58, 0
    %v143 = vsel %vm99, %v59, 0
    %v146 = vsel %vm99, %v60, 0
    %148 = vmatprep.subr.mxu0 0.0
    %149 = vmatpush1.xpose.msra.mxu0 %v113
    %150 = vmatprep.subr.mxu0 0.0
    %151 = vmatpush1.xpose.msra.mxu0 %v116
    %152 = vmatprep.subr.mxu0 0.0
    %153 = vmatpush1.xpose.msra.mxu0 %v119
    %154 = vmatprep.subr.mxu0 0.0
    %155 = vmatpush1.xpose.msra.mxu0 %v122
    %156 = vmatprep.subr.mxu0 0.0
    %157 = vmatpush1.xpose.msra.mxu0 %v125
    %158 = vmatprep.subr.mxu0 0.0
    %159 = vmatpush1.xpose.msra.mxu0 %v128
    %160 = vmatprep.subr.mxu0 0.0
    %161 = vmatpush1.xpose.msra.mxu0 %v131
    %162 = vmatprep.subr.mxu0 0.0
    %163 = vmatpush1.xpose.msra.mxu0 %v134
    %164 = vmatprep.subr.mxu0 0.0
    %165 = vmatpush1.xpose.msra.mxu0 %v137
    %166 = vmatprep.subr.mxu0 0.0
    %167 = vmatpush1.xpose.msra.mxu0 %v140
    %168 = vmatprep.subr.mxu0 0.0
    %169 = vmatpush1.xpose.msra.mxu0 %v143
    %170 = vmatprep.subr.mxu0 0.0
    %171 = vmatpush1.xpose.msra.mxu0 %v146
    %172 = vmatprep.subr.mxu0 0.0
    %173 = vmatpush1.xpose.msra.mxu0 0.0
    %174 = vmatprep.subr.mxu0 0.0
    %175 = vmatpush1.xpose.msra.mxu0 0.0
    %176 = vmatprep.subr.mxu0 0.0
    %177 = vmatpush1.xpose.msra.mxu0 0.0
    %178 = vmatprep.subr.mxu0 0.0
    %179 = vmatpush1.xpose.msra.mxu0 0.0
    %180 = vmatprep.subr.mxu0 0.0
    %181 = vmatpush1.xpose.msra.mxu0 0.0
    %182 = vmatprep.subr.mxu0 0.0
    %183 = vmatpush1.xpose.msra.mxu0 0.0
    %184 = vmatprep.subr.mxu0 0.0
    %185 = vmatpush1.xpose.msra.mxu0 0.0
    %186 = vmatprep.subr.mxu0 0.0
    %187 = vmatpush1.xpose.msra.mxu0 0.0
    %188 = vmatprep.subr.mxu0 0.0
    %189 = vmatpush1.xpose.msra.mxu0 0.0
    %190 = vmatprep.subr.mxu0 0.0
    %191 = vmatpush1.xpose.msra.mxu0 0.0
    %192 = vmatprep.subr.mxu0 0.0
    %193 = vmatpush1.xpose.msra.mxu0 0.0
    %194 = vmatprep.subr.mxu0 0.0
    %195 = vmatpush1.xpose.msra.mxu0 0.0
    %196 = vmatprep.subr.mxu0 0.0
    %197 = vmatpush1.xpose.msra.mxu0 0.0
    %198 = vmatprep.subr.mxu0 0.0
    %199 = vmatpush1.xpose.msra.mxu0 0.0
    %200 = vmatprep.subr.mxu0 0.0
    %201 = vmatpush1.xpose.msra.mxu0 0.0
    %202 = vmatprep.subr.mxu0 0.0
    %203 = vmatpush1.xpose.msra.mxu0 0.0
    %204 = vmatprep.subr.mxu0 0.0
    %205 = vmatpush1.xpose.msra.mxu0 0.0
    %206 = vmatprep.subr.mxu0 0.0
    %207 = vmatpush1.xpose.msra.mxu0 0.0
    %208 = vmatprep.subr.mxu0 0.0
    %209 = vmatpush1.xpose.msra.mxu0 0.0
    %210 = vmatprep.subr.mxu0 0.0
    %211 = vmatpush1.xpose.msra.mxu0 0.0
    %212 = vmatprep.mubr.f32.mxu0 0.0
    %213 = vmatmul.mubr.f32.gmra.mrb[0].mxu0 %v101
    %v214 = vpop.f32.mrb[0].mxu0
    %v215 = vadd.f32 %v97, %v214
    %v216 = vpop.f32.mrb[0].mxu0
    %217 = vmatprep.mubr.f32.mxu0 0.0
    %218 = vmatmul.mubr.f32.gmra.mrb[0].mxu0 %v104
    %v219 = vpop.f32.mrb[0].mxu0
    %v220 = vadd.f32 %v97, %v219
    %v221 = vpop.f32.mrb[0].mxu0
    %222 = vmatprep.mubr.f32.mxu0 0.0
    %223 = vmatmul.mubr.f32.gmra.mrb[0].mxu0 %v107
    %v224 = vpop.f32.mrb[0].mxu0
    %v225 = vadd.f32 %v97, %v224
    %v226 = vpop.f32.mrb[0].mxu0
    %227 = vmatprep.mubr.f32.mxu0 0.0
    %228 = vmatmul.mubr.f32.gmra.mrb[0].mxu0 %v110
    %v229 = vpop.f32.mrb[0].mxu0
    %v230 = vadd.f32 %v97, %v229
    %v231 = vpop.f32.mrb[0].mxu0
    %232 = vdwg.mxu0
    %237 = vrot.lane.b32.xlu0 %v215, 120
    %v238 = vpop.permute.xlu0 %237
    %239 = vrot.lane.b32.xlu0 %v220, 120
    %v240 = vpop.permute.xlu0 %239
    %241 = vrot.lane.b32.xlu0 %v225, 120
    %v242 = vpop.permute.xlu0 %241
    %243 = vrot.lane.b32.xlu0 %v230, 120
    %v244 = vpop.permute.xlu0 %243
    %245 = vrot.lane.b32.xlu0 %v215, 112
    %v246 = vpop.permute.xlu0 %245
    %247 = vrot.lane.b32.xlu0 %v220, 112
    %v248 = vpop.permute.xlu0 %247
    %249 = vrot.lane.b32.xlu0 %v225, 112
    %v250 = vpop.permute.xlu0 %249
    %251 = vrot.lane.b32.xlu0 %v230, 112
    %v252 = vpop.permute.xlu0 %251
    %253 = vrot.lane.b32.xlu0 %v215, 104
    %v254 = vpop.permute.xlu0 %253
    %255 = vrot.lane.b32.xlu0 %v220, 104
    %v256 = vpop.permute.xlu0 %255
    %257 = vrot.lane.b32.xlu0 %v225, 104
    %v258 = vpop.permute.xlu0 %257
    %259 = vrot.lane.b32.xlu0 %v230, 104
    %v260 = vpop.permute.xlu0 %259
    %261 = vrot.lane.b32.xlu0 %v215, 96
    %v262 = vpop.permute.xlu0 %261
    %263 = vrot.lane.b32.xlu0 %v220, 96
    %v264 = vpop.permute.xlu0 %263
    %vm265 = vcmask 64512
    %v266 = vsel %vm265, %v215, 0
    %v268 = vsel %vm265, %v220, 0
    %v270 = vsel %vm265, %v262, 0
    %v272 = vsel %vm265, %v264, 0
    %274 = vmatprep.subr.mxu0 0.0
    %275 = vmatpush1.xpose.msra.mxu0 %v270
    %276 = vmatprep.subr.mxu0 0.0
    %277 = vmatpush1.xpose.msra.mxu0 %v272
    %278 = vmatprep.subr.mxu0 0.0
    %279 = vmatpush1.xpose.msra.mxu0 0.0
    %280 = vmatprep.subr.mxu0 0.0
    %281 = vmatpush1.xpose.msra.mxu0 0.0
    %282 = vmatprep.subr.mxu0 0.0
    %283 = vmatpush1.xpose.msra.mxu0 0.0
    %284 = vmatprep.subr.mxu0 0.0
    %285 = vmatpush1.xpose.msra.mxu0 0.0
    %286 = vmatprep.subr.mxu0 0.0
    %287 = vmatpush1.xpose.msra.mxu0 0.0
    %288 = vmatprep.subr.mxu0 0.0
    %289 = vmatpush1.xpose.msra.mxu0 0.0
    %290 = vmatprep.subr.mxu0 0.0
    %291 = vmatpush1.xpose.msra.mxu0 0.0
    %292 = vmatprep.subr.mxu0 0.0
    %293 = vmatpush1.xpose.msra.mxu0 0.0
    %294 = vmatprep.subr.mxu0 0.0
    %295 = vmatpush1.xpose.msra.mxu0 0.0
    %296 = vmatprep.subr.mxu0 0.0
    %297 = vmatpush1.xpose.msra.mxu0 0.0
    %298 = vmatprep.subr.mxu0 0.0
    %299 = vmatpush1.xpose.msra.mxu0 0.0
    %300 = vmatprep.subr.mxu0 0.0
    %301 = vmatpush1.xpose.msra.mxu0 0.0
    %302 = vmatprep.subr.mxu0 0.0
    %303 = vmatpush1.xpose.msra.mxu0 0.0
    %304 = vmatprep.subr.mxu0 0.0
    %305 = vmatpush1.xpose.msra.mxu0 0.0
    %306 = vmatprep.subr.mxu0 0.0
    %307 = vmatpush1.xpose.msra.mxu0 0.0
    %308 = vmatprep.subr.mxu0 0.0
    %309 = vmatpush1.xpose.msra.mxu0 0.0
    %310 = vmatprep.subr.mxu0 0.0
    %311 = vmatpush1.xpose.msra.mxu0 0.0
    %312 = vmatprep.subr.mxu0 0.0
    %313 = vmatpush1.xpose.msra.mxu0 0.0
    %314 = vmatprep.subr.mxu0 0.0
    %315 = vmatpush1.xpose.msra.mxu0 0.0
    %316 = vmatprep.subr.mxu0 0.0
    %317 = vmatpush1.xpose.msra.mxu0 0.0
    %318 = vmatprep.subr.mxu0 0.0
    %319 = vmatpush1.xpose.msra.mxu0 0.0
    %320 = vmatprep.subr.mxu0 0.0
    %321 = vmatpush1.xpose.msra.mxu0 0.0
    %322 = vmatprep.subr.mxu0 0.0
    %323 = vmatpush1.xpose.msra.mxu0 0.0
    %324 = vmatprep.subr.mxu0 0.0
    %325 = vmatpush1.xpose.msra.mxu0 0.0
    %326 = vmatprep.subr.mxu0 0.0
    %327 = vmatpush1.xpose.msra.mxu0 0.0
    %328 = vmatprep.subr.mxu0 0.0
    %329 = vmatpush1.xpose.msra.mxu0 0.0
    %330 = vmatprep.subr.mxu0 0.0
    %331 = vmatpush1.xpose.msra.mxu0 0.0
    %332 = vmatprep.subr.mxu0 0.0
    %333 = vmatpush1.xpose.msra.mxu0 0.0
    %334 = vmatprep.subr.mxu0 0.0
    %335 = vmatpush1.xpose.msra.mxu0 0.0
    %336 = vmatprep.subr.mxu0 0.0
    %337 = vmatpush1.xpose.msra.mxu0 0.0
    %338 = vmatprep.mubr.f32.mxu0 0.0
    %339 = vmatmul.mubr.f32.gmra.mrb[0].mxu0 %v266
    %v340 = vpop.f32.mrb[0].mxu0
    %v341 = vadd.f32 0.0, %v340
    %v342 = vpop.f32.mrb[0].mxu0
    %343 = vmatprep.mubr.f32.mxu0 0.0
    %344 = vmatmul.mubr.f32.gmra.mrb[0].mxu0 %v268
    %v345 = vpop.f32.mrb[0].mxu0
    %v346 = vadd.f32 0.0, %v345
    %v347 = vpop.f32.mrb[0].mxu0
    %348 = vdwg.mxu0
    %349 = vrot.lane.b32.xlu0 %v225, 96
    %v350 = vpop.permute.xlu0 %349
    %351 = vrot.lane.b32.xlu0 %v230, 96
    %v352 = vpop.permute.xlu0 %351
    %v353 = vsel %vm265, %v225, 0
    %v355 = vsel %vm265, %v230, 0
    %v357 = vsel %vm265, %v350, 0
    %v359 = vsel %vm265, %v352, 0
    %361 = vmatprep.subr.mxu0 0.0
    %362 = vmatpush1.xpose.msra.mxu0 %v357
    %363 = vmatprep.subr.mxu0 0.0
    %364 = vmatpush1.xpose.msra.mxu0 %v359
    %365 = vmatprep.subr.mxu0 0.0
    %366 = vmatpush1.xpose.msra.mxu0 0.0
    %367 = vmatprep.subr.mxu0 0.0
    %368 = vmatpush1.xpose.msra.mxu0 0.0
    %369 = vmatprep.subr.mxu0 0.0
    %370 = vmatpush1.xpose.msra.mxu0 0.0
    %371 = vmatprep.subr.mxu0 0.0
    %372 = vmatpush1.xpose.msra.mxu0 0.0
    %373 = vmatprep.subr.mxu0 0.0
    %374 = vmatpush1.xpose.msra.mxu0 0.0
    %375 = vmatprep.subr.mxu0 0.0
    %376 = vmatpush1.xpose.msra.mxu0 0.0
    %377 = vmatprep.subr.mxu0 0.0
    %378 = vmatpush1.xpose.msra.mxu0 0.0
    %379 = vmatprep.subr.mxu0 0.0
    %380 = vmatpush1.xpose.msra.mxu0 0.0
    %381 = vmatprep.subr.mxu0 0.0
    %382 = vmatpush1.xpose.msra.mxu0 0.0
    %383 = vmatprep.subr.mxu0 0.0
    %384 = vmatpush1.xpose.msra.mxu0 0.0
    %385 = vmatprep.subr.mxu0 0.0
    %386 = vmatpush1.xpose.msra.mxu0 0.0
    %387 = vmatprep.subr.mxu0 0.0
    %388 = vmatpush1.xpose.msra.mxu0 0.0
    %389 = vmatprep.subr.mxu0 0.0
    %390 = vmatpush1.xpose.msra.mxu0 0.0
    %391 = vmatprep.subr.mxu0 0.0
    %392 = vmatpush1.xpose.msra.mxu0 0.0
    %393 = vmatprep.subr.mxu0 0.0
    %394 = vmatpush1.xpose.msra.mxu0 0.0
    %395 = vmatprep.subr.mxu0 0.0
    %396 = vmatpush1.xpose.msra.mxu0 0.0
    %397 = vmatprep.subr.mxu0 0.0
    %398 = vmatpush1.xpose.msra.mxu0 0.0
    %399 = vmatprep.subr.mxu0 0.0
    %400 = vmatpush1.xpose.msra.mxu0 0.0
    %401 = vmatprep.subr.mxu0 0.0
    %402 = vmatpush1.xpose.msra.mxu0 0.0
    %403 = vmatprep.subr.mxu0 0.0
    %404 = vmatpush1.xpose.msra.mxu0 0.0
    %405 = vmatprep.subr.mxu0 0.0
    %406 = vmatpush1.xpose.msra.mxu0 0.0
    %407 = vmatprep.subr.mxu0 0.0
    %408 = vmatpush1.xpose.msra.mxu0 0.0
    %409 = vmatprep.subr.mxu0 0.0
    %410 = vmatpush1.xpose.msra.mxu0 0.0
    %411 = vmatprep.subr.mxu0 0.0
    %412 = vmatpush1.xpose.msra.mxu0 0.0
    %413 = vmatprep.subr.mxu0 0.0
    %414 = vmatpush1.xpose.msra.mxu0 0.0
    %415 = vmatprep.subr.mxu0 0.0
    %416 = vmatpush1.xpose.msra.mxu0 0.0
    %417 = vmatprep.subr.mxu0 0.0
    %418 = vmatpush1.xpose.msra.mxu0 0.0
    %419 = vmatprep.subr.mxu0 0.0
    %420 = vmatpush1.xpose.msra.mxu0 0.0
    %421 = vmatprep.subr.mxu0 0.0
    %422 = vmatpush1.xpose.msra.mxu0 0.0
    %423 = vmatprep.subr.mxu0 0.0
    %424 = vmatpush1.xpose.msra.mxu0 0.0
    %425 = vmatprep.mubr.f32.mxu0 0.0
    %426 = vmatmul.mubr.f32.gmra.mrb[0].mxu0 %v353
    %v427 = vpop.f32.mrb[0].mxu0
    %v428 = vadd.f32 0.0, %v427
    %v429 = vpop.f32.mrb[0].mxu0
    %430 = vmatprep.mubr.f32.mxu0 0.0
    %431 = vmatmul.mubr.f32.gmra.mrb[0].mxu0 %v355
    %v432 = vpop.f32.mrb[0].mxu0
    %v433 = vadd.f32 0.0, %v432
    %v434 = vpop.f32.mrb[0].mxu0
    %435 = vdwg.mxu0
    %436 = vrot.lane.b32.xlu0 %v238, 96
    %v437 = vpop.permute.xlu0 %436
    %438 = vrot.lane.b32.xlu0 %v240, 96
    %v439 = vpop.permute.xlu0 %438
    %v440 = vsel %vm265, %v238, 0
    %v442 = vsel %vm265, %v240, 0
    %v444 = vsel %vm265, %v437, 0
    %v446 = vsel %vm265, %v439, 0
    %448 = vmatprep.subr.mxu0 0.0
    %449 = vmatpush1.xpose.msra.mxu0 %v444
    %450 = vmatprep.subr.mxu0 0.0
    %451 = vmatpush1.xpose.msra.mxu0 %v446
    %452 = vmatprep.subr.mxu0 0.0
    %453 = vmatpush1.xpose.msra.mxu0 0.0
    %454 = vmatprep.subr.mxu0 0.0
    %455 = vmatpush1.xpose.msra.mxu0 0.0
    %456 = vmatprep.subr.mxu0 0.0
    %457 = vmatpush1.xpose.msra.mxu0 0.0
    %458 = vmatprep.subr.mxu0 0.0
    %459 = vmatpush1.xpose.msra.mxu0 0.0
    %460 = vmatprep.subr.mxu0 0.0
    %461 = vmatpush1.xpose.msra.mxu0 0.0
    %462 = vmatprep.subr.mxu0 0.0
    %463 = vmatpush1.xpose.msra.mxu0 0.0
    %464 = vmatprep.subr.mxu0 0.0
    %465 = vmatpush1.xpose.msra.mxu0 0.0
    %466 = vmatprep.subr.mxu0 0.0
    %467 = vmatpush1.xpose.msra.mxu0 0.0
    %468 = vmatprep.subr.mxu0 0.0
    %469 = vmatpush1.xpose.msra.mxu0 0.0
    %470 = vmatprep.subr.mxu0 0.0
    %471 = vmatpush1.xpose.msra.mxu0 0.0
    %472 = vmatprep.subr.mxu0 0.0
    %473 = vmatpush1.xpose.msra.mxu0 0.0
    %474 = vmatprep.subr.mxu0 0.0
    %475 = vmatpush1.xpose.msra.mxu0 0.0
    %476 = vmatprep.subr.mxu0 0.0
    %477 = vmatpush1.xpose.msra.mxu0 0.0
    %478 = vmatprep.subr.mxu0 0.0
    %479 = vmatpush1.xpose.msra.mxu0 0.0
    %480 = vmatprep.subr.mxu0 0.0
    %481 = vmatpush1.xpose.msra.mxu0 0.0
    %482 = vmatprep.subr.mxu0 0.0
    %483 = vmatpush1.xpose.msra.mxu0 0.0
    %484 = vmatprep.subr.mxu0 0.0
    %485 = vmatpush1.xpose.msra.mxu0 0.0
    %486 = vmatprep.subr.mxu0 0.0
    %487 = vmatpush1.xpose.msra.mxu0 0.0
    %488 = vmatprep.subr.mxu0 0.0
    %489 = vmatpush1.xpose.msra.mxu0 0.0
    %490 = vmatprep.subr.mxu0 0.0
    %491 = vmatpush1.xpose.msra.mxu0 0.0
    %492 = vmatprep.subr.mxu0 0.0
    %493 = vmatpush1.xpose.msra.mxu0 0.0
    %494 = vmatprep.subr.mxu0 0.0
    %495 = vmatpush1.xpose.msra.mxu0 0.0
    %496 = vmatprep.subr.mxu0 0.0
    %497 = vmatpush1.xpose.msra.mxu0 0.0
    %498 = vmatprep.subr.mxu0 0.0
    %499 = vmatpush1.xpose.msra.mxu0 0.0
    %500 = vmatprep.subr.mxu0 0.0
    %501 = vmatpush1.xpose.msra.mxu0 0.0
    %502 = vmatprep.subr.mxu0 0.0
    %503 = vmatpush1.xpose.msra.mxu0 0.0
    %504 = vmatprep.subr.mxu0 0.0
    %505 = vmatpush1.xpose.msra.mxu0 0.0
    %506 = vmatprep.subr.mxu0 0.0
    %507 = vmatpush1.xpose.msra.mxu0 0.0
    %508 = vmatprep.subr.mxu0 0.0
    %509 = vmatpush1.xpose.msra.mxu0 0.0
    %510 = vmatprep.subr.mxu0 0.0
    %511 = vmatpush1.xpose.msra.mxu0 0.0
    %512 = vmatprep.mubr.f32.mxu0 0.0
    %513 = vmatmul.mubr.f32.gmra.mrb[0].mxu0 %v440
    %v514 = vpop.f32.mrb[0].mxu0
    %v515 = vadd.f32 0.0, %v514
    %v516 = vpop.f32.mrb[0].mxu0
    %517 = vmatprep.mubr.f32.mxu0 0.0
    %518 = vmatmul.mubr.f32.gmra.mrb[0].mxu0 %v442
    %v519 = vpop.f32.mrb[0].mxu0
    %v520 = vadd.f32 0.0, %v519
    %v521 = vpop.f32.mrb[0].mxu0
    %522 = vdwg.mxu0
    %523 = vrot.lane.b32.xlu0 %v242, 96
    %v524 = vpop.permute.xlu0 %523
    %525 = vrot.lane.b32.xlu0 %v244, 96
    %v526 = vpop.permute.xlu0 %525
    %v527 = vsel %vm265, %v242, 0
    %v529 = vsel %vm265, %v244, 0
    %v531 = vsel %vm265, %v524, 0
    %v533 = vsel %vm265, %v526, 0
    %535 = vmatprep.subr.mxu0 0.0
    %536 = vmatpush1.xpose.msra.mxu0 %v531
    %537 = vmatprep.subr.mxu0 0.0
    %538 = vmatpush1.xpose.msra.mxu0 %v533
    %539 = vmatprep.subr.mxu0 0.0
    %540 = vmatpush1.xpose.msra.mxu0 0.0
    %541 = vmatprep.subr.mxu0 0.0
    %542 = vmatpush1.xpose.msra.mxu0 0.0
    %543 = vmatprep.subr.mxu0 0.0
    %544 = vmatpush1.xpose.msra.mxu0 0.0
    %545 = vmatprep.subr.mxu0 0.0
    %546 = vmatpush1.xpose.msra.mxu0 0.0
    %547 = vmatprep.subr.mxu0 0.0
    %548 = vmatpush1.xpose.msra.mxu0 0.0
    %549 = vmatprep.subr.mxu0 0.0
    %550 = vmatpush1.xpose.msra.mxu0 0.0
    %551 = vmatprep.subr.mxu0 0.0
    %552 = vmatpush1.xpose.msra.mxu0 0.0
    %553 = vmatprep.subr.mxu0 0.0
    %554 = vmatpush1.xpose.msra.mxu0 0.0
    %555 = vmatprep.subr.mxu0 0.0
    %556 = vmatpush1.xpose.msra.mxu0 0.0
    %557 = vmatprep.subr.mxu0 0.0
    %558 = vmatpush1.xpose.msra.mxu0 0.0
    %559 = vmatprep.subr.mxu0 0.0
    %560 = vmatpush1.xpose.msra.mxu0 0.0
    %561 = vmatprep.subr.mxu0 0.0
    %562 = vmatpush1.xpose.msra.mxu0 0.0
    %563 = vmatprep.subr.mxu0 0.0
    %564 = vmatpush1.xpose.msra.mxu0 0.0
    %565 = vmatprep.subr.mxu0 0.0
    %566 = vmatpush1.xpose.msra.mxu0 0.0
    %567 = vmatprep.subr.mxu0 0.0
    %568 = vmatpush1.xpose.msra.mxu0 0.0
    %569 = vmatprep.subr.mxu0 0.0
    %570 = vmatpush1.xpose.msra.mxu0 0.0
    %571 = vmatprep.subr.mxu0 0.0
    %572 = vmatpush1.xpose.msra.mxu0 0.0
    %573 = vmatprep.subr.mxu0 0.0
    %574 = vmatpush1.xpose.msra.mxu0 0.0
    %575 = vmatprep.subr.mxu0 0.0
    %576 = vmatpush1.xpose.msra.mxu0 0.0
    %577 = vmatprep.subr.mxu0 0.0
    %578 = vmatpush1.xpose.msra.mxu0 0.0
    %579 = vmatprep.subr.mxu0 0.0
    %580 = vmatpush1.xpose.msra.mxu0 0.0
    %581 = vmatprep.subr.mxu0 0.0
    %582 = vmatpush1.xpose.msra.mxu0 0.0
    %583 = vmatprep.subr.mxu0 0.0
    %584 = vmatpush1.xpose.msra.mxu0 0.0
    %585 = vmatprep.subr.mxu0 0.0
    %586 = vmatpush1.xpose.msra.mxu0 0.0
    %587 = vmatprep.subr.mxu0 0.0
    %588 = vmatpush1.xpose.msra.mxu0 0.0
    %589 = vmatprep.subr.mxu0 0.0
    %590 = vmatpush1.xpose.msra.mxu0 0.0
    %591 = vmatprep.subr.mxu0 0.0
    %592 = vmatpush1.xpose.msra.mxu0 0.0
    %593 = vmatprep.subr.mxu0 0.0
    %594 = vmatpush1.xpose.msra.mxu0 0.0
    %595 = vmatprep.subr.mxu0 0.0
    %596 = vmatpush1.xpose.msra.mxu0 0.0
    %597 = vmatprep.subr.mxu0 0.0
    %598 = vmatpush1.xpose.msra.mxu0 0.0
    %599 = vmatprep.mubr.f32.mxu0 0.0
    %600 = vmatmul.mubr.f32.gmra.mrb[0].mxu0 %v527
    %v601 = vpop.f32.mrb[0].mxu0
    %v602 = vadd.f32 0.0, %v601
    %v603 = vpop.f32.mrb[0].mxu0
    %604 = vmatprep.mubr.f32.mxu0 0.0
    %605 = vmatmul.mubr.f32.gmra.mrb[0].mxu0 %v529
    %v606 = vpop.f32.mrb[0].mxu0
    %v607 = vadd.f32 0.0, %v606
    %v608 = vpop.f32.mrb[0].mxu0
    %609 = vdwg.mxu0
    %610 = vrot.lane.b32.xlu0 %v246, 96
    %v611 = vpop.permute.xlu0 %610
    %612 = vrot.lane.b32.xlu0 %v248, 96
    %v613 = vpop.permute.xlu0 %612
    %v614 = vsel %vm265, %v246, 0
    %v616 = vsel %vm265, %v248, 0
    %v618 = vsel %vm265, %v611, 0
    %v620 = vsel %vm265, %v613, 0
    %622 = vmatprep.subr.mxu0 0.0
    %623 = vmatpush1.xpose.msra.mxu0 %v618
    %624 = vmatprep.subr.mxu0 0.0
    %625 = vmatpush1.xpose.msra.mxu0 %v620
    %626 = vmatprep.subr.mxu0 0.0
    %627 = vmatpush1.xpose.msra.mxu0 0.0
    %628 = vmatprep.subr.mxu0 0.0
    %629 = vmatpush1.xpose.msra.mxu0 0.0
    %630 = vmatprep.subr.mxu0 0.0
    %631 = vmatpush1.xpose.msra.mxu0 0.0
    %632 = vmatprep.subr.mxu0 0.0
    %633 = vmatpush1.xpose.msra.mxu0 0.0
    %634 = vmatprep.subr.mxu0 0.0
    %635 = vmatpush1.xpose.msra.mxu0 0.0
    %636 = vmatprep.subr.mxu0 0.0
    %637 = vmatpush1.xpose.msra.mxu0 0.0
    %638 = vmatprep.subr.mxu0 0.0
    %639 = vmatpush1.xpose.msra.mxu0 0.0
    %640 = vmatprep.subr.mxu0 0.0
    %641 = vmatpush1.xpose.msra.mxu0 0.0
    %642 = vmatprep.subr.mxu0 0.0
    %643 = vmatpush1.xpose.msra.mxu0 0.0
    %644 = vmatprep.subr.mxu0 0.0
    %645 = vmatpush1.xpose.msra.mxu0 0.0
    %646 = vmatprep.subr.mxu0 0.0
    %647 = vmatpush1.xpose.msra.mxu0 0.0
    %648 = vmatprep.subr.mxu0 0.0
    %649 = vmatpush1.xpose.msra.mxu0 0.0
    %650 = vmatprep.subr.mxu0 0.0
    %651 = vmatpush1.xpose.msra.mxu0 0.0
    %652 = vmatprep.subr.mxu0 0.0
    %653 = vmatpush1.xpose.msra.mxu0 0.0
    %654 = vmatprep.subr.mxu0 0.0
    %655 = vmatpush1.xpose.msra.mxu0 0.0
    %656 = vmatprep.subr.mxu0 0.0
    %657 = vmatpush1.xpose.msra.mxu0 0.0
    %658 = vmatprep.subr.mxu0 0.0
    %659 = vmatpush1.xpose.msra.mxu0 0.0
    %660 = vmatprep.subr.mxu0 0.0
    %661 = vmatpush1.xpose.msra.mxu0 0.0
    %662 = vmatprep.subr.mxu0 0.0
    %663 = vmatpush1.xpose.msra.mxu0 0.0
    %664 = vmatprep.subr.mxu0 0.0
    %665 = vmatpush1.xpose.msra.mxu0 0.0
    %666 = vmatprep.subr.mxu0 0.0
    %667 = vmatpush1.xpose.msra.mxu0 0.0
    %668 = vmatprep.subr.mxu0 0.0
    %669 = vmatpush1.xpose.msra.mxu0 0.0
    %670 = vmatprep.subr.mxu0 0.0
    %671 = vmatpush1.xpose.msra.mxu0 0.0
    %672 = vmatprep.subr.mxu0 0.0
    %673 = vmatpush1.xpose.msra.mxu0 0.0
    %674 = vmatprep.subr.mxu0 0.0
    %675 = vmatpush1.xpose.msra.mxu0 0.0
    %676 = vmatprep.subr.mxu0 0.0
    %677 = vmatpush1.xpose.msra.mxu0 0.0
    %678 = vmatprep.subr.mxu0 0.0
    %679 = vmatpush1.xpose.msra.mxu0 0.0
    %680 = vmatprep.subr.mxu0 0.0
    %681 = vmatpush1.xpose.msra.mxu0 0.0
    %682 = vmatprep.subr.mxu0 0.0
    %683 = vmatpush1.xpose.msra.mxu0 0.0
    %684 = vmatprep.subr.mxu0 0.0
    %685 = vmatpush1.xpose.msra.mxu0 0.0
    %686 = vmatprep.mubr.f32.mxu0 0.0
    %687 = vmatmul.mubr.f32.gmra.mrb[0].mxu0 %v614
    %v688 = vpop.f32.mrb[0].mxu0
    %v689 = vadd.f32 0.0, %v688
    %v690 = vpop.f32.mrb[0].mxu0
    %691 = vmatprep.mubr.f32.mxu0 0.0
    %692 = vmatmul.mubr.f32.gmra.mrb[0].mxu0 %v616
    %v693 = vpop.f32.mrb[0].mxu0
    %v694 = vadd.f32 0.0, %v693
    %v695 = vpop.f32.mrb[0].mxu0
    %696 = vdwg.mxu0
    %697 = vrot.lane.b32.xlu0 %v250, 96
    %v698 = vpop.permute.xlu0 %697
    %699 = vrot.lane.b32.xlu0 %v252, 96
    %v700 = vpop.permute.xlu0 %699
    %v701 = vsel %vm265, %v250, 0
    %v703 = vsel %vm265, %v252, 0
    %v705 = vsel %vm265, %v698, 0
    %v707 = vsel %vm265, %v700, 0
    %709 = vmatprep.subr.mxu0 0.0
    %710 = vmatpush1.xpose.msra.mxu0 %v705
    %711 = vmatprep.subr.mxu0 0.0
    %712 = vmatpush1.xpose.msra.mxu0 %v707
    %713 = vmatprep.subr.mxu0 0.0
    %714 = vmatpush1.xpose.msra.mxu0 0.0
    %715 = vmatprep.subr.mxu0 0.0
    %716 = vmatpush1.xpose.msra.mxu0 0.0
    %717 = vmatprep.subr.mxu0 0.0
    %718 = vmatpush1.xpose.msra.mxu0 0.0
    %719 = vmatprep.subr.mxu0 0.0
    %720 = vmatpush1.xpose.msra.mxu0 0.0
    %721 = vmatprep.subr.mxu0 0.0
    %722 = vmatpush1.xpose.msra.mxu0 0.0
    %723 = vmatprep.subr.mxu0 0.0
    %724 = vmatpush1.xpose.msra.mxu0 0.0
    %725 = vmatprep.subr.mxu0 0.0
    %726 = vmatpush1.xpose.msra.mxu0 0.0
    %727 = vmatprep.subr.mxu0 0.0
    %728 = vmatpush1.xpose.msra.mxu0 0.0
    %729 = vmatprep.subr.mxu0 0.0
    %730 = vmatpush1.xpose.msra.mxu0 0.0
    %731 = vmatprep.subr.mxu0 0.0
    %732 = vmatpush1.xpose.msra.mxu0 0.0
    %733 = vmatprep.subr.mxu0 0.0
    %734 = vmatpush1.xpose.msra.mxu0 0.0
    %735 = vmatprep.subr.mxu0 0.0
    %736 = vmatpush1.xpose.msra.mxu0 0.0
    %737 = vmatprep.subr.mxu0 0.0
    %738 = vmatpush1.xpose.msra.mxu0 0.0
    %739 = vmatprep.subr.mxu0 0.0
    %740 = vmatpush1.xpose.msra.mxu0 0.0
    %741 = vmatprep.subr.mxu0 0.0
    %742 = vmatpush1.xpose.msra.mxu0 0.0
    %743 = vmatprep.subr.mxu0 0.0
    %744 = vmatpush1.xpose.msra.mxu0 0.0
    %745 = vmatprep.subr.mxu0 0.0
    %746 = vmatpush1.xpose.msra.mxu0 0.0
    %747 = vmatprep.subr.mxu0 0.0
    %748 = vmatpush1.xpose.msra.mxu0 0.0
    %749 = vmatprep.subr.mxu0 0.0
    %750 = vmatpush1.xpose.msra.mxu0 0.0
    %751 = vmatprep.subr.mxu0 0.0
    %752 = vmatpush1.xpose.msra.mxu0 0.0
    %753 = vmatprep.subr.mxu0 0.0
    %754 = vmatpush1.xpose.msra.mxu0 0.0
    %755 = vmatprep.subr.mxu0 0.0
    %756 = vmatpush1.xpose.msra.mxu0 0.0
    %757 = vmatprep.subr.mxu0 0.0
    %758 = vmatpush1.xpose.msra.mxu0 0.0
    %759 = vmatprep.subr.mxu0 0.0
    %760 = vmatpush1.xpose.msra.mxu0 0.0
    %761 = vmatprep.subr.mxu0 0.0
    %762 = vmatpush1.xpose.msra.mxu0 0.0
    %763 = vmatprep.subr.mxu0 0.0
    %764 = vmatpush1.xpose.msra.mxu0 0.0
    %765 = vmatprep.subr.mxu0 0.0
    %766 = vmatpush1.xpose.msra.mxu0 0.0
    %767 = vmatprep.subr.mxu0 0.0
    %768 = vmatpush1.xpose.msra.mxu0 0.0
    %769 = vmatprep.subr.mxu0 0.0
    %770 = vmatpush1.xpose.msra.mxu0 0.0
    %771 = vmatprep.subr.mxu0 0.0
    %772 = vmatpush1.xpose.msra.mxu0 0.0
    %773 = vmatprep.mubr.f32.mxu0 0.0
    %774 = vmatmul.mubr.f32.gmra.mrb[0].mxu0 %v701
    %v775 = vpop.f32.mrb[0].mxu0
    %v776 = vadd.f32 0.0, %v775
    %v777 = vpop.f32.mrb[0].mxu0
    %778 = vmatprep.mubr.f32.mxu0 0.0
    %779 = vmatmul.mubr.f32.gmra.mrb[0].mxu0 %v703
    %v780 = vpop.f32.mrb[0].mxu0
    %v781 = vadd.f32 0.0, %v780
    %v782 = vpop.f32.mrb[0].mxu0
    %783 = vdwg.mxu0
    %784 = vrot.lane.b32.xlu0 %v254, 96
    %v785 = vpop.permute.xlu0 %784
    %786 = vrot.lane.b32.xlu0 %v256, 96
    %v787 = vpop.permute.xlu0 %786
    %v788 = vsel %vm265, %v254, 0
    %v790 = vsel %vm265, %v256, 0
    %v792 = vsel %vm265, %v785, 0
    %v794 = vsel %vm265, %v787, 0
    %796 = vmatprep.subr.mxu0 0.0
    %797 = vmatpush1.xpose.msra.mxu0 %v792
    %798 = vmatprep.subr.mxu0 0.0
    %799 = vmatpush1.xpose.msra.mxu0 %v794
    %800 = vmatprep.subr.mxu0 0.0
    %801 = vmatpush1.xpose.msra.mxu0 0.0
    %802 = vmatprep.subr.mxu0 0.0
    %803 = vmatpush1.xpose.msra.mxu0 0.0
    %804 = vmatprep.subr.mxu0 0.0
    %805 = vmatpush1.xpose.msra.mxu0 0.0
    %806 = vmatprep.subr.mxu0 0.0
    %807 = vmatpush1.xpose.msra.mxu0 0.0
    %808 = vmatprep.subr.mxu0 0.0
    %809 = vmatpush1.xpose.msra.mxu0 0.0
    %810 = vmatprep.subr.mxu0 0.0
    %811 = vmatpush1.xpose.msra.mxu0 0.0
    %812 = vmatprep.subr.mxu0 0.0
    %813 = vmatpush1.xpose.msra.mxu0 0.0
    %814 = vmatprep.subr.mxu0 0.0
    %815 = vmatpush1.xpose.msra.mxu0 0.0
    %816 = vmatprep.subr.mxu0 0.0
    %817 = vmatpush1.xpose.msra.mxu0 0.0
    %818 = vmatprep.subr.mxu0 0.0
    %819 = vmatpush1.xpose.msra.mxu0 0.0
    %820 = vmatprep.subr.mxu0 0.0
    %821 = vmatpush1.xpose.msra.mxu0 0.0
    %822 = vmatprep.subr.mxu0 0.0
    %823 = vmatpush1.xpose.msra.mxu0 0.0
    %824 = vmatprep.subr.mxu0 0.0
    %825 = vmatpush1.xpose.msra.mxu0 0.0
    %826 = vmatprep.subr.mxu0 0.0
    %827 = vmatpush1.xpose.msra.mxu0 0.0
    %828 = vmatprep.subr.mxu0 0.0
    %829 = vmatpush1.xpose.msra.mxu0 0.0
    %830 = vmatprep.subr.mxu0 0.0
    %831 = vmatpush1.xpose.msra.mxu0 0.0
    %832 = vmatprep.subr.mxu0 0.0
    %833 = vmatpush1.xpose.msra.mxu0 0.0
    %834 = vmatprep.subr.mxu0 0.0
    %835 = vmatpush1.xpose.msra.mxu0 0.0
    %836 = vmatprep.subr.mxu0 0.0
    %837 = vmatpush1.xpose.msra.mxu0 0.0
    %838 = vmatprep.subr.mxu0 0.0
    %839 = vmatpush1.xpose.msra.mxu0 0.0
    %840 = vmatprep.subr.mxu0 0.0
    %841 = vmatpush1.xpose.msra.mxu0 0.0
    %842 = vmatprep.subr.mxu0 0.0
    %843 = vmatpush1.xpose.msra.mxu0 0.0
    %844 = vmatprep.subr.mxu0 0.0
    %845 = vmatpush1.xpose.msra.mxu0 0.0
    %846 = vmatprep.subr.mxu0 0.0
    %847 = vmatpush1.xpose.msra.mxu0 0.0
    %848 = vmatprep.subr.mxu0 0.0
    %849 = vmatpush1.xpose.msra.mxu0 0.0
    %850 = vmatprep.subr.mxu0 0.0
    %851 = vmatpush1.xpose.msra.mxu0 0.0
    %852 = vmatprep.subr.mxu0 0.0
    %853 = vmatpush1.xpose.msra.mxu0 0.0
    %854 = vmatprep.subr.mxu0 0.0
    %855 = vmatpush1.xpose.msra.mxu0 0.0
    %856 = vmatprep.subr.mxu0 0.0
    %857 = vmatpush1.xpose.msra.mxu0 0.0
    %858 = vmatprep.subr.mxu0 0.0
    %859 = vmatpush1.xpose.msra.mxu0 0.0
    %860 = vmatprep.mubr.f32.mxu0 0.0
    %861 = vmatmul.mubr.f32.gmra.mrb[0].mxu0 %v788
    %v862 = vpop.f32.mrb[0].mxu0
    %v863 = vadd.f32 0.0, %v862
    %v864 = vpop.f32.mrb[0].mxu0
    %865 = vmatprep.mubr.f32.mxu0 0.0
    %866 = vmatmul.mubr.f32.gmra.mrb[0].mxu0 %v790
    %v867 = vpop.f32.mrb[0].mxu0
    %v868 = vadd.f32 0.0, %v867
    %v869 = vpop.f32.mrb[0].mxu0
    %870 = vdwg.mxu0
    %871 = vrot.lane.b32.xlu0 %v258, 96
    %v872 = vpop.permute.xlu0 %871
    %873 = vrot.lane.b32.xlu0 %v260, 96
    %v874 = vpop.permute.xlu0 %873
    %v875 = vsel %vm265, %v258, 0
    %v877 = vsel %vm265, %v260, 0
    %v879 = vsel %vm265, %v872, 0
    %v881 = vsel %vm265, %v874, 0
    %883 = vmatprep.subr.mxu0 0.0
    %884 = vmatpush1.xpose.msra.mxu0 %v879
    %885 = vmatprep.subr.mxu0 0.0
    %886 = vmatpush1.xpose.msra.mxu0 %v881
    %887 = vmatprep.subr.mxu0 0.0
    %888 = vmatpush1.xpose.msra.mxu0 0.0
    %889 = vmatprep.subr.mxu0 0.0
    %890 = vmatpush1.xpose.msra.mxu0 0.0
    %891 = vmatprep.subr.mxu0 0.0
    %892 = vmatpush1.xpose.msra.mxu0 0.0
    %893 = vmatprep.subr.mxu0 0.0
    %894 = vmatpush1.xpose.msra.mxu0 0.0
    %895 = vmatprep.subr.mxu0 0.0
    %896 = vmatpush1.xpose.msra.mxu0 0.0
    %897 = vmatprep.subr.mxu0 0.0
    %898 = vmatpush1.xpose.msra.mxu0 0.0
    %899 = vmatprep.subr.mxu0 0.0
    %900 = vmatpush1.xpose.msra.mxu0 0.0
    %901 = vmatprep.subr.mxu0 0.0
    %902 = vmatpush1.xpose.msra.mxu0 0.0
    %903 = vmatprep.subr.mxu0 0.0
    %904 = vmatpush1.xpose.msra.mxu0 0.0
    %905 = vmatprep.subr.mxu0 0.0
    %906 = vmatpush1.xpose.msra.mxu0 0.0
    %907 = vmatprep.subr.mxu0 0.0
    %908 = vmatpush1.xpose.msra.mxu0 0.0
    %909 = vmatprep.subr.mxu0 0.0
    %910 = vmatpush1.xpose.msra.mxu0 0.0
    %911 = vmatprep.subr.mxu0 0.0
    %912 = vmatpush1.xpose.msra.mxu0 0.0
    %913 = vmatprep.subr.mxu0 0.0
    %914 = vmatpush1.xpose.msra.mxu0 0.0
    %915 = vmatprep.subr.mxu0 0.0
    %916 = vmatpush1.xpose.msra.mxu0 0.0
    %917 = vmatprep.subr.mxu0 0.0
    %918 = vmatpush1.xpose.msra.mxu0 0.0
    %919 = vmatprep.subr.mxu0 0.0
    %920 = vmatpush1.xpose.msra.mxu0 0.0
    %921 = vmatprep.subr.mxu0 0.0
    %922 = vmatpush1.xpose.msra.mxu0 0.0
    %923 = vmatprep.subr.mxu0 0.0
    %924 = vmatpush1.xpose.msra.mxu0 0.0
    %925 = vmatprep.subr.mxu0 0.0
    %926 = vmatpush1.xpose.msra.mxu0 0.0
    %927 = vmatprep.subr.mxu0 0.0
    %928 = vmatpush1.xpose.msra.mxu0 0.0
    %929 = vmatprep.subr.mxu0 0.0
    %930 = vmatpush1.xpose.msra.mxu0 0.0
    %931 = vmatprep.subr.mxu0 0.0
    %932 = vmatpush1.xpose.msra.mxu0 0.0
    %933 = vmatprep.subr.mxu0 0.0
    %934 = vmatpush1.xpose.msra.mxu0 0.0
    %935 = vmatprep.subr.mxu0 0.0
    %936 = vmatpush1.xpose.msra.mxu0 0.0
    %937 = vmatprep.subr.mxu0 0.0
    %938 = vmatpush1.xpose.msra.mxu0 0.0
    %939 = vmatprep.subr.mxu0 0.0
    %940 = vmatpush1.xpose.msra.mxu0 0.0
    %941 = vmatprep.subr.mxu0 0.0
    %942 = vmatpush1.xpose.msra.mxu0 0.0
    %943 = vmatprep.subr.mxu0 0.0
    %944 = vmatpush1.xpose.msra.mxu0 0.0
    %945 = vmatprep.subr.mxu0 0.0
    %946 = vmatpush1.xpose.msra.mxu0 0.0
    %947 = vmatprep.mubr.f32.mxu0 0.0
    %948 = vmatmul.mubr.f32.gmra.mrb[0].mxu0 %v875
    %v949 = vpop.f32.mrb[0].mxu0
    %v950 = vadd.f32 0.0, %v949
    %v951 = vpop.f32.mrb[0].mxu0
    %952 = vmatprep.mubr.f32.mxu0 0.0
    %953 = vmatmul.mubr.f32.gmra.mrb[0].mxu0 %v877
    %v954 = vpop.f32.mrb[0].mxu0
    %v955 = vadd.f32 0.0, %v954
    %v956 = vpop.f32.mrb[0].mxu0
    %957 = vdwg.mxu0
    %vm958 = vcmask 130048
    %v959 = vsel %vm958, %v341, -inf
    %960 = vmax.xlane.f32.xlu0 %v959
    %v961 = vpop.xlane.xlu0 %960
    %v962 = vsel %vm958, %v346, -inf
    %963 = vmax.xlane.f32.xlu0 %v962
    %v964 = vpop.xlane.xlu0 %963
    %v965 = vsel %vm958, %v428, -inf
    %966 = vmax.xlane.f32.xlu0 %v965
    %v967 = vpop.xlane.xlu0 %966
    %v968 = vsel %vm958, %v433, -inf
    %969 = vmax.xlane.f32.xlu0 %v968
    %v970 = vpop.xlane.xlu0 %969
    %v971 = vsel %vm958, %v515, -inf
    %972 = vmax.xlane.f32.xlu0 %v971
    %v973 = vpop.xlane.xlu0 %972
    %v974 = vsel %vm958, %v520, -inf
    %975 = vmax.xlane.f32.xlu0 %v974
    %v976 = vpop.xlane.xlu0 %975
    %v977 = vsel %vm958, %v602, -inf
    %978 = vmax.xlane.f32.xlu0 %v977
    %v979 = vpop.xlane.xlu0 %978
    %v980 = vsel %vm958, %v607, -inf
    %981 = vmax.xlane.f32.xlu0 %v980
    %v982 = vpop.xlane.xlu0 %981
    %v983 = vsel %vm958, %v689, -inf
    %984 = vmax.xlane.f32.xlu0 %v983
    %v985 = vpop.xlane.xlu0 %984
    %v986 = vsel %vm958, %v694, -inf
    %987 = vmax.xlane.f32.xlu0 %v986
    %v988 = vpop.xlane.xlu0 %987
    %v989 = vsel %vm958, %v776, -inf
    %990 = vmax.xlane.f32.xlu0 %v989
    %v991 = vpop.xlane.xlu0 %990
    %v992 = vsel %vm958, %v781, -inf
    %993 = vmax.xlane.f32.xlu0 %v992
    %v994 = vpop.xlane.xlu0 %993
    %v995 = vsel %vm958, %v863, -inf
    %996 = vmax.xlane.f32.xlu0 %v995
    %v997 = vpop.xlane.xlu0 %996
    %v998 = vsel %vm958, %v868, -inf
    %999 = vmax.xlane.f32.xlu0 %v998
    %v1000 = vpop.xlane.xlu0 %999
    %v1001 = vsel %vm958, %v950, -inf
    %1002 = vmax.xlane.f32.xlu0 %v1001
    %v1003 = vpop.xlane.xlu0 %1002
    %v1004 = vsel %vm958, %v955, -inf
    %1005 = vmax.xlane.f32.xlu0 %v1004
    %v1006 = vpop.xlane.xlu0 %1005
    %v1007 = vsub.f32 %v341, %v961
    %v1008 = vsub.f32 %v346, %v964
    %v1009 = vsub.f32 %v428, %v967
    %v1010 = vsub.f32 %v433, %v970
    %v1011 = vsub.f32 %v515, %v973
    %v1012 = vsub.f32 %v520, %v976
    %v1013 = vsub.f32 %v602, %v979
    %v1014 = vsub.f32 %v607, %v982
    %v1015 = vsub.f32 %v689, %v985
    %v1016 = vsub.f32 %v694, %v988
    %v1017 = vsub.f32 %v776, %v991
    %v1018 = vsub.f32 %v781, %v994
    %v1019 = vsub.f32 %v863, %v997
    %v1020 = vsub.f32 %v868, %v1000
    %v1021 = vsub.f32 %v950, %v1003
    %v1022 = vsub.f32 %v955, %v1006
    %v1023 = vmul.f32 %v1007, 1.442695
    %v1024 = vpow.pop %v1023
    %v1025 = vmul.f32 %v1008, 1.442695
    %v1026 = vpow.pop %v1025
    %v1027 = vmul.f32 %v1009, 1.442695
    %v1028 = vpow.pop %v1027
    %v1029 = vmul.f32 %v1010, 1.442695
    %v1030 = vpow.pop %v1029
    %v1031 = vmul.f32 %v1011, 1.442695
    %v1032 = vpow.pop %v1031
    %v1033 = vmul.f32 %v1012, 1.442695
    %v1034 = vpow.pop %v1033
    %v1035 = vmul.f32 %v1013, 1.442695
    %v1036 = vpow.pop %v1035
    %v1037 = vmul.f32 %v1014, 1.442695
    %v1038 = vpow.pop %v1037
    %v1039 = vmul.f32 %v1015, 1.442695
    %v1040 = vpow.pop %v1039
    %v1041 = vmul.f32 %v1016, 1.442695
    %v1042 = vpow.pop %v1041
    %v1043 = vmul.f32 %v1017, 1.442695
    %v1044 = vpow.pop %v1043
    %v1045 = vmul.f32 %v1018, 1.442695
    %v1046 = vpow.pop %v1045
    %v1047 = vmul.f32 %v1019, 1.442695
    %v1048 = vpow.pop %v1047
    %v1049 = vmul.f32 %v1020, 1.442695
    %v1050 = vpow.pop %v1049
    %v1051 = vmul.f32 %v1021, 1.442695
    %v1052 = vpow.pop %v1051
    %v1053 = vmul.f32 %v1022, 1.442695
    %v1054 = vpow.pop %v1053
    %v1055 = vsel %vm958, %v1024, 0.0
    %1056 = vadd.xlane.f32.xlu0 %v1055
    %v1057 = vpop.xlane.xlu0 %1056
    %v1058 = vsel %vm958, %v1026, 0.0
    %1059 = vadd.xlane.f32.xlu0 %v1058
    %v1060 = vpop.xlane.xlu0 %1059
    %v1061 = vsel %vm958, %v1028, 0.0
    %1062 = vadd.xlane.f32.xlu0 %v1061
    %v1063 = vpop.xlane.xlu0 %1062
    %v1064 = vsel %vm958, %v1030, 0.0
    %1065 = vadd.xlane.f32.xlu0 %v1064
    %v1066 = vpop.xlane.xlu0 %1065
    %v1067 = vsel %vm958, %v1032, 0.0
    %1068 = vadd.xlane.f32.xlu0 %v1067
    %v1069 = vpop.xlane.xlu0 %1068
    %v1070 = vsel %vm958, %v1034, 0.0
    %1071 = vadd.xlane.f32.xlu0 %v1070
    %v1072 = vpop.xlane.xlu0 %1071
    %v1073 = vsel %vm958, %v1036, 0.0
    %1074 = vadd.xlane.f32.xlu0 %v1073
    %v1075 = vpop.xlane.xlu0 %1074
    %v1076 = vsel %vm958, %v1038, 0.0
    %1077 = vadd.xlane.f32.xlu0 %v1076
    %v1078 = vpop.xlane.xlu0 %1077
    %v1079 = vsel %vm958, %v1040, 0.0
    %1080 = vadd.xlane.f32.xlu0 %v1079
    %v1081 = vpop.xlane.xlu0 %1080
    %v1082 = vsel %vm958, %v1042, 0.0
    %1083 = vadd.xlane.f32.xlu0 %v1082
    %v1084 = vpop.xlane.xlu0 %1083
    %v1085 = vsel %vm958, %v1044, 0.0
    %1086 = vadd.xlane.f32.xlu0 %v1085
    %v1087 = vpop.xlane.xlu0 %1086
    %v1088 = vsel %vm958, %v1046, 0.0
    %1089 = vadd.xlane.f32.xlu0 %v1088
    %v1090 = vpop.xlane.xlu0 %1089
    %v1091 = vsel %vm958, %v1048, 0.0
    %1092 = vadd.xlane.f32.xlu0 %v1091
    %v1093 = vpop.xlane.xlu0 %1092
    %v1094 = vsel %vm958, %v1050, 0.0
    %1095 = vadd.xlane.f32.xlu0 %v1094
    %v1096 = vpop.xlane.xlu0 %1095
    %v1097 = vsel %vm958, %v1052, 0.0
    %1098 = vadd.xlane.f32.xlu0 %v1097
    %v1099 = vpop.xlane.xlu0 %1098
    %v1100 = vsel %vm958, %v1054, 0.0
    %1101 = vadd.xlane.f32.xlu0 %v1100
    %v1102 = vpop.xlane.xlu0 %1101
    %v1103 = vrcp.pop %v1057
    %v1104 = vrcp.pop %v1060
    %v1105 = vrcp.pop %v1063
    %v1106 = vrcp.pop %v1066
    %v1107 = vrcp.pop %v1069
    %v1108 = vrcp.pop %v1072
    %v1109 = vrcp.pop %v1075
    %v1110 = vrcp.pop %v1078
    %v1111 = vrcp.pop %v1081
    %v1112 = vrcp.pop %v1084
    %v1113 = vrcp.pop %v1087
    %v1114 = vrcp.pop %v1090
    %v1115 = vrcp.pop %v1093
    %v1116 = vrcp.pop %v1096
    %v1117 = vrcp.pop %v1099
    %v1118 = vrcp.pop %v1102
    %v1119 = vmul.f32 %v1024, %v1103
    %v1120 = vmul.f32 %v1026, %v1104
    %v1121 = vmul.f32 %v1028, %v1105
    %v1122 = vmul.f32 %v1030, %v1106
    %v1123 = vmul.f32 %v1032, %v1107
    %v1124 = vmul.f32 %v1034, %v1108
    %v1125 = vmul.f32 %v1036, %v1109
    %v1126 = vmul.f32 %v1038, %v1110
    %v1127 = vmul.f32 %v1040, %v1111
    %v1128 = vmul.f32 %v1042, %v1112
    %v1129 = vmul.f32 %v1044, %v1113
    %v1130 = vmul.f32 %v1046, %v1114
    %v1131 = vmul.f32 %v1048, %v1115
    %v1132 = vmul.f32 %v1050, %v1116
    %v1133 = vmul.f32 %v1052, %v1117
    %v1134 = vmul.f32 %v1054, %v1118
    %1135 = vrot.lane.b32.xlu0 %v215, 64
    %v1136 = vpop.permute.xlu0 %1135
    %1137 = vrot.lane.b32.xlu0 %v220, 64
    %v1138 = vpop.permute.xlu0 %1137
    %v1142 = vsel %vm958, %v1119, 0
    %v1145 = vsel %vm958, %v1120, 0
    %1147 = vmatprep.subr.mxu0 0.0
    %1148 = vmatpush1.msra.mxu0 %v1136
    %1149 = vmatprep.subr.mxu0 0.0
    %1150 = vmatpush1.msra.mxu0 %v1138
    %1151 = vmatprep.subr.mxu0 0.0
    %1152 = vmatpush1.msra.mxu0 0.0
    %1153 = vmatprep.subr.mxu0 0.0
    %1154 = vmatpush1.msra.mxu0 0.0
    %1155 = vmatprep.subr.mxu0 0.0
    %1156 = vmatpush1.msra.mxu0 0.0
    %1157 = vmatprep.subr.mxu0 0.0
    %1158 = vmatpush1.msra.mxu0 0.0
    %1159 = vmatprep.subr.mxu0 0.0
    %1160 = vmatpush1.msra.mxu0 0.0
    %1161 = vmatprep.subr.mxu0 0.0
    %1162 = vmatpush1.msra.mxu0 0.0
    %1163 = vmatprep.subr.mxu0 0.0
    %1164 = vmatpush1.msra.mxu0 0.0
    %1165 = vmatprep.subr.mxu0 0.0
    %1166 = vmatpush1.msra.mxu0 0.0
    %1167 = vmatprep.subr.mxu0 0.0
    %1168 = vmatpush1.msra.mxu0 0.0
    %1169 = vmatprep.subr.mxu0 0.0
    %1170 = vmatpush1.msra.mxu0 0.0
    %1171 = vmatprep.subr.mxu0 0.0
    %1172 = vmatpush1.msra.mxu0 0.0
    %1173 = vmatprep.subr.mxu0 0.0
    %1174 = vmatpush1.msra.mxu0 0.0
    %1175 = vmatprep.subr.mxu0 0.0
    %1176 = vmatpush1.msra.mxu0 0.0
    %1177 = vmatprep.subr.mxu0 0.0
    %1178 = vmatpush1.msra.mxu0 0.0
    %1179 = vmatprep.subr.mxu0 0.0
    %1180 = vmatpush1.msra.mxu0 0.0
    %1181 = vmatprep.subr.mxu0 0.0
    %1182 = vmatpush1.msra.mxu0 0.0
    %1183 = vmatprep.subr.mxu0 0.0
    %1184 = vmatpush1.msra.mxu0 0.0
    %1185 = vmatprep.subr.mxu0 0.0
    %1186 = vmatpush1.msra.mxu0 0.0
    %1187 = vmatprep.subr.mxu0 0.0
    %1188 = vmatpush1.msra.mxu0 0.0
    %1189 = vmatprep.subr.mxu0 0.0
    %1190 = vmatpush1.msra.mxu0 0.0
    %1191 = vmatprep.subr.mxu0 0.0
    %1192 = vmatpush1.msra.mxu0 0.0
    %1193 = vmatprep.subr.mxu0 0.0
    %1194 = vmatpush1.msra.mxu0 0.0
    %1195 = vmatprep.subr.mxu0 0.0
    %1196 = vmatpush1.msra.mxu0 0.0
    %1197 = vmatprep.subr.mxu0 0.0
    %1198 = vmatpush1.msra.mxu0 0.0
    %1199 = vmatprep.subr.mxu0 0.0
    %1200 = vmatpush1.msra.mxu0 0.0
    %1201 = vmatprep.subr.mxu0 0.0
    %1202 = vmatpush1.msra.mxu0 0.0
    %1203 = vmatprep.subr.mxu0 0.0
    %1204 = vmatpush1.msra.mxu0 0.0
    %1205 = vmatprep.subr.mxu0 0.0
    %1206 = vmatpush1.msra.mxu0 0.0
    %1207 = vmatprep.subr.mxu0 0.0
    %1208 = vmatpush1.msra.mxu0 0.0
    %1209 = vmatprep.subr.mxu0 0.0
    %1210 = vmatpush1.msra.mxu0 0.0
    %1211 = vmatprep.mubr.f32.mxu0 0.0
    %1212 = vmatmul.mubr.f32.gmra.mrb[0].mxu0 %v1142
    %v1213 = vpop.f32.mrb[0].mxu0
    %v1214 = vadd.f32 0.0, %v1213
    %v1215 = vpop.f32.mrb[0].mxu0
    %1216 = vmatprep.mubr.f32.mxu0 0.0
    %1217 = vmatmul.mubr.f32.gmra.mrb[0].mxu0 %v1145
    %v1218 = vpop.f32.mrb[0].mxu0
    %v1219 = vadd.f32 0.0, %v1218
    %v1220 = vpop.f32.mrb[0].mxu0
    %1221 = vdwg.mxu0
    %1222 = vrot.lane.b32.xlu0 %v225, 64
    %v1223 = vpop.permute.xlu0 %1222
    %1224 = vrot.lane.b32.xlu0 %v230, 64
    %v1225 = vpop.permute.xlu0 %1224
    %v1229 = vsel %vm958, %v1121, 0
    %v1232 = vsel %vm958, %v1122, 0
    %1234 = vmatprep.subr.mxu0 0.0
    %1235 = vmatpush1.msra.mxu0 %v1223
    %1236 = vmatprep.subr.mxu0 0.0
    %1237 = vmatpush1.msra.mxu0 %v1225
    %1238 = vmatprep.subr.mxu0 0.0
    %1239 = vmatpush1.msra.mxu0 0.0
    %1240 = vmatprep.subr.mxu0 0.0
    %1241 = vmatpush1.msra.mxu0 0.0
    %1242 = vmatprep.subr.mxu0 0.0
    %1243 = vmatpush1.msra.mxu0 0.0
    %1244 = vmatprep.subr.mxu0 0.0
    %1245 = vmatpush1.msra.mxu0 0.0
    %1246 = vmatprep.subr.mxu0 0.0
    %1247 = vmatpush1.msra.mxu0 0.0
    %1248 = vmatprep.subr.mxu0 0.0
    %1249 = vmatpush1.msra.mxu0 0.0
    %1250 = vmatprep.subr.mxu0 0.0
    %1251 = vmatpush1.msra.mxu0 0.0
    %1252 = vmatprep.subr.mxu0 0.0
    %1253 = vmatpush1.msra.mxu0 0.0
    %1254 = vmatprep.subr.mxu0 0.0
    %1255 = vmatpush1.msra.mxu0 0.0
    %1256 = vmatprep.subr.mxu0 0.0
    %1257 = vmatpush1.msra.mxu0 0.0
    %1258 = vmatprep.subr.mxu0 0.0
    %1259 = vmatpush1.msra.mxu0 0.0
    %1260 = vmatprep.subr.mxu0 0.0
    %1261 = vmatpush1.msra.mxu0 0.0
    %1262 = vmatprep.subr.mxu0 0.0
    %1263 = vmatpush1.msra.mxu0 0.0
    %1264 = vmatprep.subr.mxu0 0.0
    %1265 = vmatpush1.msra.mxu0 0.0
    %1266 = vmatprep.subr.mxu0 0.0
    %1267 = vmatpush1.msra.mxu0 0.0
    %1268 = vmatprep.subr.mxu0 0.0
    %1269 = vmatpush1.msra.mxu0 0.0
    %1270 = vmatprep.subr.mxu0 0.0
    %1271 = vmatpush1.msra.mxu0 0.0
    %1272 = vmatprep.subr.mxu0 0.0
    %1273 = vmatpush1.msra.mxu0 0.0
    %1274 = vmatprep.subr.mxu0 0.0
    %1275 = vmatpush1.msra.mxu0 0.0
    %1276 = vmatprep.subr.mxu0 0.0
    %1277 = vmatpush1.msra.mxu0 0.0
    %1278 = vmatprep.subr.mxu0 0.0
    %1279 = vmatpush1.msra.mxu0 0.0
    %1280 = vmatprep.subr.mxu0 0.0
    %1281 = vmatpush1.msra.mxu0 0.0
    %1282 = vmatprep.subr.mxu0 0.0
    %1283 = vmatpush1.msra.mxu0 0.0
    %1284 = vmatprep.subr.mxu0 0.0
    %1285 = vmatpush1.msra.mxu0 0.0
    %1286 = vmatprep.subr.mxu0 0.0
    %1287 = vmatpush1.msra.mxu0 0.0
    %1288 = vmatprep.subr.mxu0 0.0
    %1289 = vmatpush1.msra.mxu0 0.0
    %1290 = vmatprep.subr.mxu0 0.0
    %1291 = vmatpush1.msra.mxu0 0.0
    %1292 = vmatprep.subr.mxu0 0.0
    %1293 = vmatpush1.msra.mxu0 0.0
    %1294 = vmatprep.subr.mxu0 0.0
    %1295 = vmatpush1.msra.mxu0 0.0
    %1296 = vmatprep.subr.mxu0 0.0
    %1297 = vmatpush1.msra.mxu0 0.0
    %1298 = vmatprep.mubr.f32.mxu0 0.0
    %1299 = vmatmul.mubr.f32.gmra.mrb[0].mxu0 %v1229
    %v1300 = vpop.f32.mrb[0].mxu0
    %v1301 = vadd.f32 0.0, %v1300
    %v1302 = vpop.f32.mrb[0].mxu0
    %1303 = vmatprep.mubr.f32.mxu0 0.0
    %1304 = vmatmul.mubr.f32.gmra.mrb[0].mxu0 %v1232
    %v1305 = vpop.f32.mrb[0].mxu0
    %v1306 = vadd.f32 0.0, %v1305
    %v1307 = vpop.f32.mrb[0].mxu0
    %1308 = vdwg.mxu0
    %1309 = vrot.lane.b32.xlu0 %v238, 64
    %v1310 = vpop.permute.xlu0 %1309
    %1311 = vrot.lane.b32.xlu0 %v240, 64
    %v1312 = vpop.permute.xlu0 %1311
    %v1316 = vsel %vm958, %v1123, 0
    %v1319 = vsel %vm958, %v1124, 0
    %1321 = vmatprep.subr.mxu0 0.0
    %1322 = vmatpush1.msra.mxu0 %v1310
    %1323 = vmatprep.subr.mxu0 0.0
    %1324 = vmatpush1.msra.mxu0 %v1312
    %1325 = vmatprep.subr.mxu0 0.0
    %1326 = vmatpush1.msra.mxu0 0.0
    %1327 = vmatprep.subr.mxu0 0.0
    %1328 = vmatpush1.msra.mxu0 0.0
    %1329 = vmatprep.subr.mxu0 0.0
    %1330 = vmatpush1.msra.mxu0 0.0
    %1331 = vmatprep.subr.mxu0 0.0
    %1332 = vmatpush1.msra.mxu0 0.0
    %1333 = vmatprep.subr.mxu0 0.0
    %1334 = vmatpush1.msra.mxu0 0.0
    %1335 = vmatprep.subr.mxu0 0.0
    %1336 = vmatpush1.msra.mxu0 0.0
    %1337 = vmatprep.subr.mxu0 0.0
    %1338 = vmatpush1.msra.mxu0 0.0
    %1339 = vmatprep.subr.mxu0 0.0
    %1340 = vmatpush1.msra.mxu0 0.0
    %1341 = vmatprep.subr.mxu0 0.0
    %1342 = vmatpush1.msra.mxu0 0.0
    %1343 = vmatprep.subr.mxu0 0.0
    %1344 = vmatpush1.msra.mxu0 0.0
    %1345 = vmatprep.subr.mxu0 0.0
    %1346 = vmatpush1.msra.mxu0 0.0
    %1347 = vmatprep.subr.mxu0 0.0
    %1348 = vmatpush1.msra.mxu0 0.0
    %1349 = vmatprep.subr.mxu0 0.0
    %1350 = vmatpush1.msra.mxu0 0.0
    %1351 = vmatprep.subr.mxu0 0.0
    %1352 = vmatpush1.msra.mxu0 0.0
    %1353 = vmatprep.subr.mxu0 0.0
    %1354 = vmatpush1.msra.mxu0 0.0
    %1355 = vmatprep.subr.mxu0 0.0
    %1356 = vmatpush1.msra.mxu0 0.0
    %1357 = vmatprep.subr.mxu0 0.0
    %1358 = vmatpush1.msra.mxu0 0.0
    %1359 = vmatprep.subr.mxu0 0.0
    %1360 = vmatpush1.msra.mxu0 0.0
    %1361 = vmatprep.subr.mxu0 0.0
    %1362 = vmatpush1.msra.mxu0 0.0
    %1363 = vmatprep.subr.mxu0 0.0
    %1364 = vmatpush1.msra.mxu0 0.0
    %1365 = vmatprep.subr.mxu0 0.0
    %1366 = vmatpush1.msra.mxu0 0.0
    %1367 = vmatprep.subr.mxu0 0.0
    %1368 = vmatpush1.msra.mxu0 0.0
    %1369 = vmatprep.subr.mxu0 0.0
    %1370 = vmatpush1.msra.mxu0 0.0
    %1371 = vmatprep.subr.mxu0 0.0
    %1372 = vmatpush1.msra.mxu0 0.0
    %1373 = vmatprep.subr.mxu0 0.0
    %1374 = vmatpush1.msra.mxu0 0.0
    %1375 = vmatprep.subr.mxu0 0.0
    %1376 = vmatpush1.msra.mxu0 0.0
    %1377 = vmatprep.subr.mxu0 0.0
    %1378 = vmatpush1.msra.mxu0 0.0
    %1379 = vmatprep.subr.mxu0 0.0
    %1380 = vmatpush1.msra.mxu0 0.0
    %1381 = vmatprep.subr.mxu0 0.0
    %1382 = vmatpush1.msra.mxu0 0.0
    %1383 = vmatprep.subr.mxu0 0.0
    %1384 = vmatpush1.msra.mxu0 0.0
    %1385 = vmatprep.mubr.f32.mxu0 0.0
    %1386 = vmatmul.mubr.f32.gmra.mrb[0].mxu0 %v1316
    %v1387 = vpop.f32.mrb[0].mxu0
    %v1388 = vadd.f32 0.0, %v1387
    %v1389 = vpop.f32.mrb[0].mxu0
    %1390 = vmatprep.mubr.f32.mxu0 0.0
    %1391 = vmatmul.mubr.f32.gmra.mrb[0].mxu0 %v1319
    %v1392 = vpop.f32.mrb[0].mxu0
    %v1393 = vadd.f32 0.0, %v1392
    %v1394 = vpop.f32.mrb[0].mxu0
    %1395 = vdwg.mxu0
    %1396 = vrot.lane.b32.xlu0 %v242, 64
    %v1397 = vpop.permute.xlu0 %1396
    %1398 = vrot.lane.b32.xlu0 %v244, 64
    %v1399 = vpop.permute.xlu0 %1398
    %v1403 = vsel %vm958, %v1125, 0
    %v1406 = vsel %vm958, %v1126, 0
    %1408 = vmatprep.subr.mxu0 0.0
    %1409 = vmatpush1.msra.mxu0 %v1397
    %1410 = vmatprep.subr.mxu0 0.0
    %1411 = vmatpush1.msra.mxu0 %v1399
    %1412 = vmatprep.subr.mxu0 0.0
    %1413 = vmatpush1.msra.mxu0 0.0
    %1414 = vmatprep.subr.mxu0 0.0
    %1415 = vmatpush1.msra.mxu0 0.0
    %1416 = vmatprep.subr.mxu0 0.0
    %1417 = vmatpush1.msra.mxu0 0.0
    %1418 = vmatprep.subr.mxu0 0.0
    %1419 = vmatpush1.msra.mxu0 0.0
    %1420 = vmatprep.subr.mxu0 0.0
    %1421 = vmatpush1.msra.mxu0 0.0
    %1422 = vmatprep.subr.mxu0 0.0
    %1423 = vmatpush1.msra.mxu0 0.0
    %1424 = vmatprep.subr.mxu0 0.0
    %1425 = vmatpush1.msra.mxu0 0.0
    %1426 = vmatprep.subr.mxu0 0.0
    %1427 = vmatpush1.msra.mxu0 0.0
    %1428 = vmatprep.subr.mxu0 0.0
    %1429 = vmatpush1.msra.mxu0 0.0
    %1430 = vmatprep.subr.mxu0 0.0
    %1431 = vmatpush1.msra.mxu0 0.0
    %1432 = vmatprep.subr.mxu0 0.0
    %1433 = vmatpush1.msra.mxu0 0.0
    %1434 = vmatprep.subr.mxu0 0.0
    %1435 = vmatpush1.msra.mxu0 0.0
    %1436 = vmatprep.subr.mxu0 0.0
    %1437 = vmatpush1.msra.mxu0 0.0
    %1438 = vmatprep.subr.mxu0 0.0
    %1439 = vmatpush1.msra.mxu0 0.0
    %1440 = vmatprep.subr.mxu0 0.0
    %1441 = vmatpush1.msra.mxu0 0.0
    %1442 = vmatprep.subr.mxu0 0.0
    %1443 = vmatpush1.msra.mxu0 0.0
    %1444 = vmatprep.subr.mxu0 0.0
    %1445 = vmatpush1.msra.mxu0 0.0
    %1446 = vmatprep.subr.mxu0 0.0
    %1447 = vmatpush1.msra.mxu0 0.0
    %1448 = vmatprep.subr.mxu0 0.0
    %1449 = vmatpush1.msra.mxu0 0.0
    %1450 = vmatprep.subr.mxu0 0.0
    %1451 = vmatpush1.msra.mxu0 0.0
    %1452 = vmatprep.subr.mxu0 0.0
    %1453 = vmatpush1.msra.mxu0 0.0
    %1454 = vmatprep.subr.mxu0 0.0
    %1455 = vmatpush1.msra.mxu0 0.0
    %1456 = vmatprep.subr.mxu0 0.0
    %1457 = vmatpush1.msra.mxu0 0.0
    %1458 = vmatprep.subr.mxu0 0.0
    %1459 = vmatpush1.msra.mxu0 0.0
    %1460 = vmatprep.subr.mxu0 0.0
    %1461 = vmatpush1.msra.mxu0 0.0
    %1462 = vmatprep.subr.mxu0 0.0
    %1463 = vmatpush1.msra.mxu0 0.0
    %1464 = vmatprep.subr.mxu0 0.0
    %1465 = vmatpush1.msra.mxu0 0.0
    %1466 = vmatprep.subr.mxu0 0.0
    %1467 = vmatpush1.msra.mxu0 0.0
    %1468 = vmatprep.subr.mxu0 0.0
    %1469 = vmatpush1.msra.mxu0 0.0
    %1470 = vmatprep.subr.mxu0 0.0
    %1471 = vmatpush1.msra.mxu0 0.0
    %1472 = vmatprep.mubr.f32.mxu0 0.0
    %1473 = vmatmul.mubr.f32.gmra.mrb[0].mxu0 %v1403
    %v1474 = vpop.f32.mrb[0].mxu0
    %v1475 = vadd.f32 0.0, %v1474
    %v1476 = vpop.f32.mrb[0].mxu0
    %1477 = vmatprep.mubr.f32.mxu0 0.0
    %1478 = vmatmul.mubr.f32.gmra.mrb[0].mxu0 %v1406
    %v1479 = vpop.f32.mrb[0].mxu0
    %v1480 = vadd.f32 0.0, %v1479
    %v1481 = vpop.f32.mrb[0].mxu0
    %1482 = vdwg.mxu0
    %1483 = vrot.lane.b32.xlu0 %v246, 64
    %v1484 = vpop.permute.xlu0 %1483
    %1485 = vrot.lane.b32.xlu0 %v248, 64
    %v1486 = vpop.permute.xlu0 %1485
    %v1490 = vsel %vm958, %v1127, 0
    %v1493 = vsel %vm958, %v1128, 0
    %1495 = vmatprep.subr.mxu0 0.0
    %1496 = vmatpush1.msra.mxu0 %v1484
    %1497 = vmatprep.subr.mxu0 0.0
    %1498 = vmatpush1.msra.mxu0 %v1486
    %1499 = vmatprep.subr.mxu0 0.0
    %1500 = vmatpush1.msra.mxu0 0.0
    %1501 = vmatprep.subr.mxu0 0.0
    %1502 = vmatpush1.msra.mxu0 0.0
    %1503 = vmatprep.subr.mxu0 0.0
    %1504 = vmatpush1.msra.mxu0 0.0
    %1505 = vmatprep.subr.mxu0 0.0
    %1506 = vmatpush1.msra.mxu0 0.0
    %1507 = vmatprep.subr.mxu0 0.0
    %1508 = vmatpush1.msra.mxu0 0.0
    %1509 = vmatprep.subr.mxu0 0.0
    %1510 = vmatpush1.msra.mxu0 0.0
    %1511 = vmatprep.subr.mxu0 0.0
    %1512 = vmatpush1.msra.mxu0 0.0
    %1513 = vmatprep.subr.mxu0 0.0
    %1514 = vmatpush1.msra.mxu0 0.0
    %1515 = vmatprep.subr.mxu0 0.0
    %1516 = vmatpush1.msra.mxu0 0.0
    %1517 = vmatprep.subr.mxu0 0.0
    %1518 = vmatpush1.msra.mxu0 0.0
    %1519 = vmatprep.subr.mxu0 0.0
    %1520 = vmatpush1.msra.mxu0 0.0
    %1521 = vmatprep.subr.mxu0 0.0
    %1522 = vmatpush1.msra.mxu0 0.0
    %1523 = vmatprep.subr.mxu0 0.0
    %1524 = vmatpush1.msra.mxu0 0.0
    %1525 = vmatprep.subr.mxu0 0.0
    %1526 = vmatpush1.msra.mxu0 0.0
    %1527 = vmatprep.subr.mxu0 0.0
    %1528 = vmatpush1.msra.mxu0 0.0
    %1529 = vmatprep.subr.mxu0 0.0
    %1530 = vmatpush1.msra.mxu0 0.0
    %1531 = vmatprep.subr.mxu0 0.0
    %1532 = vmatpush1.msra.mxu0 0.0
    %1533 = vmatprep.subr.mxu0 0.0
    %1534 = vmatpush1.msra.mxu0 0.0
    %1535 = vmatprep.subr.mxu0 0.0
    %1536 = vmatpush1.msra.mxu0 0.0
    %1537 = vmatprep.subr.mxu0 0.0
    %1538 = vmatpush1.msra.mxu0 0.0
    %1539 = vmatprep.subr.mxu0 0.0
    %1540 = vmatpush1.msra.mxu0 0.0
    %1541 = vmatprep.subr.mxu0 0.0
    %1542 = vmatpush1.msra.mxu0 0.0
    %1543 = vmatprep.subr.mxu0 0.0
    %1544 = vmatpush1.msra.mxu0 0.0
    %1545 = vmatprep.subr.mxu0 0.0
    %1546 = vmatpush1.msra.mxu0 0.0
    %1547 = vmatprep.subr.mxu0 0.0
    %1548 = vmatpush1.msra.mxu0 0.0
    %1549 = vmatprep.subr.mxu0 0.0
    %1550 = vmatpush1.msra.mxu0 0.0
    %1551 = vmatprep.subr.mxu0 0.0
    %1552 = vmatpush1.msra.mxu0 0.0
    %1553 = vmatprep.subr.mxu0 0.0
    %1554 = vmatpush1.msra.mxu0 0.0
    %1555 = vmatprep.subr.mxu0 0.0
    %1556 = vmatpush1.msra.mxu0 0.0
    %1557 = vmatprep.subr.mxu0 0.0
    %1558 = vmatpush1.msra.mxu0 0.0
    %1559 = vmatprep.mubr.f32.mxu0 0.0
    %1560 = vmatmul.mubr.f32.gmra.mrb[0].mxu0 %v1490
    %v1561 = vpop.f32.mrb[0].mxu0
    %v1562 = vadd.f32 0.0, %v1561
    %v1563 = vpop.f32.mrb[0].mxu0
    %1564 = vmatprep.mubr.f32.mxu0 0.0
    %1565 = vmatmul.mubr.f32.gmra.mrb[0].mxu0 %v1493
    %v1566 = vpop.f32.mrb[0].mxu0
    %v1567 = vadd.f32 0.0, %v1566
    %v1568 = vpop.f32.mrb[0].mxu0
    %1569 = vdwg.mxu0
    %1570 = vrot.lane.b32.xlu0 %v250, 64
    %v1571 = vpop.permute.xlu0 %1570
    %1572 = vrot.lane.b32.xlu0 %v252, 64
    %v1573 = vpop.permute.xlu0 %1572
    %v1577 = vsel %vm958, %v1129, 0
    %v1580 = vsel %vm958, %v1130, 0
    %1582 = vmatprep.subr.mxu0 0.0
    %1583 = vmatpush1.msra.mxu0 %v1571
    %1584 = vmatprep.subr.mxu0 0.0
    %1585 = vmatpush1.msra.mxu0 %v1573
    %1586 = vmatprep.subr.mxu0 0.0
    %1587 = vmatpush1.msra.mxu0 0.0
    %1588 = vmatprep.subr.mxu0 0.0
    %1589 = vmatpush1.msra.mxu0 0.0
    %1590 = vmatprep.subr.mxu0 0.0
    %1591 = vmatpush1.msra.mxu0 0.0
    %1592 = vmatprep.subr.mxu0 0.0
    %1593 = vmatpush1.msra.mxu0 0.0
    %1594 = vmatprep.subr.mxu0 0.0
    %1595 = vmatpush1.msra.mxu0 0.0
    %1596 = vmatprep.subr.mxu0 0.0
    %1597 = vmatpush1.msra.mxu0 0.0
    %1598 = vmatprep.subr.mxu0 0.0
    %1599 = vmatpush1.msra.mxu0 0.0
    %1600 = vmatprep.subr.mxu0 0.0
    %1601 = vmatpush1.msra.mxu0 0.0
    %1602 = vmatprep.subr.mxu0 0.0
    %1603 = vmatpush1.msra.mxu0 0.0
    %1604 = vmatprep.subr.mxu0 0.0
    %1605 = vmatpush1.msra.mxu0 0.0
    %1606 = vmatprep.subr.mxu0 0.0
    %1607 = vmatpush1.msra.mxu0 0.0
    %1608 = vmatprep.subr.mxu0 0.0
    %1609 = vmatpush1.msra.mxu0 0.0
    %1610 = vmatprep.subr.mxu0 0.0
    %1611 = vmatpush1.msra.mxu0 0.0
    %1612 = vmatprep.subr.mxu0 0.0
    %1613 = vmatpush1.msra.mxu0 0.0
    %1614 = vmatprep.subr.mxu0 0.0
    %1615 = vmatpush1.msra.mxu0 0.0
    %1616 = vmatprep.subr.mxu0 0.0
    %1617 = vmatpush1.msra.mxu0 0.0
    %1618 = vmatprep.subr.mxu0 0.0
    %1619 = vmatpush1.msra.mxu0 0.0
    %1620 = vmatprep.subr.mxu0 0.0
    %1621 = vmatpush1.msra.mxu0 0.0
    %1622 = vmatprep.subr.mxu0 0.0
    %1623 = vmatpush1.msra.mxu0 0.0
    %1624 = vmatprep.subr.mxu0 0.0
    %1625 = vmatpush1.msra.mxu0 0.0
    %1626 = vmatprep.subr.mxu0 0.0
    %1627 = vmatpush1.msra.mxu0 0.0
    %1628 = vmatprep.subr.mxu0 0.0
    %1629 = vmatpush1.msra.mxu0 0.0
    %1630 = vmatprep.subr.mxu0 0.0
    %1631 = vmatpush1.msra.mxu0 0.0
    %1632 = vmatprep.subr.mxu0 0.0
    %1633 = vmatpush1.msra.mxu0 0.0
    %1634 = vmatprep.subr.mxu0 0.0
    %1635 = vmatpush1.msra.mxu0 0.0
    %1636 = vmatprep.subr.mxu0 0.0
    %1637 = vmatpush1.msra.mxu0 0.0
    %1638 = vmatprep.subr.mxu0 0.0
    %1639 = vmatpush1.msra.mxu0 0.0
    %1640 = vmatprep.subr.mxu0 0.0
    %1641 = vmatpush1.msra.mxu0 0.0
    %1642 = vmatprep.subr.mxu0 0.0
    %1643 = vmatpush1.msra.mxu0 0.0
    %1644 = vmatprep.subr.mxu0 0.0
    %1645 = vmatpush1.msra.mxu0 0.0
    %1646 = vmatprep.mubr.f32.mxu0 0.0
    %1647 = vmatmul.mubr.f32.gmra.mrb[0].mxu0 %v1577
    %v1648 = vpop.f32.mrb[0].mxu0
    %v1649 = vadd.f32 0.0, %v1648
    %v1650 = vpop.f32.mrb[0].mxu0
    %1651 = vmatprep.mubr.f32.mxu0 0.0
    %1652 = vmatmul.mubr.f32.gmra.mrb[0].mxu0 %v1580
    %v1653 = vpop.f32.mrb[0].mxu0
    %v1654 = vadd.f32 0.0, %v1653
    %v1655 = vpop.f32.mrb[0].mxu0
    %1656 = vdwg.mxu0
    %1657 = vrot.lane.b32.xlu0 %v254, 64
    %v1658 = vpop.permute.xlu0 %1657
    %1659 = vrot.lane.b32.xlu0 %v256, 64
    %v1660 = vpop.permute.xlu0 %1659
    %v1664 = vsel %vm958, %v1131, 0
    %v1667 = vsel %vm958, %v1132, 0
    %1669 = vmatprep.subr.mxu0 0.0
    %1670 = vmatpush1.msra.mxu0 %v1658
    %1671 = vmatprep.subr.mxu0 0.0
    %1672 = vmatpush1.msra.mxu0 %v1660
    %1673 = vmatprep.subr.mxu0 0.0
    %1674 = vmatpush1.msra.mxu0 0.0
    %1675 = vmatprep.subr.mxu0 0.0
    %1676 = vmatpush1.msra.mxu0 0.0
    %1677 = vmatprep.subr.mxu0 0.0
    %1678 = vmatpush1.msra.mxu0 0.0
    %1679 = vmatprep.subr.mxu0 0.0
    %1680 = vmatpush1.msra.mxu0 0.0
    %1681 = vmatprep.subr.mxu0 0.0
    %1682 = vmatpush1.msra.mxu0 0.0
    %1683 = vmatprep.subr.mxu0 0.0
    %1684 = vmatpush1.msra.mxu0 0.0
    %1685 = vmatprep.subr.mxu0 0.0
    %1686 = vmatpush1.msra.mxu0 0.0
    %1687 = vmatprep.subr.mxu0 0.0
    %1688 = vmatpush1.msra.mxu0 0.0
    %1689 = vmatprep.subr.mxu0 0.0
    %1690 = vmatpush1.msra.mxu0 0.0
    %1691 = vmatprep.subr.mxu0 0.0
    %1692 = vmatpush1.msra.mxu0 0.0
    %1693 = vmatprep.subr.mxu0 0.0
    %1694 = vmatpush1.msra.mxu0 0.0
    %1695 = vmatprep.subr.mxu0 0.0
    %1696 = vmatpush1.msra.mxu0 0.0
    %1697 = vmatprep.subr.mxu0 0.0
    %1698 = vmatpush1.msra.mxu0 0.0
    %1699 = vmatprep.subr.mxu0 0.0
    %1700 = vmatpush1.msra.mxu0 0.0
    %1701 = vmatprep.subr.mxu0 0.0
    %1702 = vmatpush1.msra.mxu0 0.0
    %1703 = vmatprep.subr.mxu0 0.0
    %1704 = vmatpush1.msra.mxu0 0.0
    %1705 = vmatprep.subr.mxu0 0.0
    %1706 = vmatpush1.msra.mxu0 0.0
    %1707 = vmatprep.subr.mxu0 0.0
    %1708 = vmatpush1.msra.mxu0 0.0
    %1709 = vmatprep.subr.mxu0 0.0
    %1710 = vmatpush1.msra.mxu0 0.0
    %1711 = vmatprep.subr.mxu0 0.0
    %1712 = vmatpush1.msra.mxu0 0.0
    %1713 = vmatprep.subr.mxu0 0.0
    %1714 = vmatpush1.msra.mxu0 0.0
    %1715 = vmatprep.subr.mxu0 0.0
    %1716 = vmatpush1.msra.mxu0 0.0
    %1717 = vmatprep.subr.mxu0 0.0
    %1718 = vmatpush1.msra.mxu0 0.0
    %1719 = vmatprep.subr.mxu0 0.0
    %1720 = vmatpush1.msra.mxu0 0.0
    %1721 = vmatprep.subr.mxu0 0.0
    %1722 = vmatpush1.msra.mxu0 0.0
    %1723 = vmatprep.subr.mxu0 0.0
    %1724 = vmatpush1.msra.mxu0 0.0
    %1725 = vmatprep.subr.mxu0 0.0
    %1726 = vmatpush1.msra.mxu0 0.0
    %1727 = vmatprep.subr.mxu0 0.0
    %1728 = vmatpush1.msra.mxu0 0.0
    %1729 = vmatprep.subr.mxu0 0.0
    %1730 = vmatpush1.msra.mxu0 0.0
    %1731 = vmatprep.subr.mxu0 0.0
    %1732 = vmatpush1.msra.mxu0 0.0
    %1733 = vmatprep.mubr.f32.mxu0 0.0
    %1734 = vmatmul.mubr.f32.gmra.mrb[0].mxu0 %v1664
    %v1735 = vpop.f32.mrb[0].mxu0
    %v1736 = vadd.f32 0.0, %v1735
    %v1737 = vpop.f32.mrb[0].mxu0
    %1738 = vmatprep.mubr.f32.mxu0 0.0
    %1739 = vmatmul.mubr.f32.gmra.mrb[0].mxu0 %v1667
    %v1740 = vpop.f32.mrb[0].mxu0
    %v1741 = vadd.f32 0.0, %v1740
    %v1742 = vpop.f32.mrb[0].mxu0
    %1743 = vdwg.mxu0
    %1744 = vrot.lane.b32.xlu0 %v258, 64
    %v1745 = vpop.permute.xlu0 %1744
    %1746 = vrot.lane.b32.xlu0 %v260, 64
    %v1747 = vpop.permute.xlu0 %1746
    %v1751 = vsel %vm958, %v1133, 0
    %v1754 = vsel %vm958, %v1134, 0
    %1756 = vmatprep.subr.mxu0 0.0
    %1757 = vmatpush1.msra.mxu0 %v1745
    %1758 = vmatprep.subr.mxu0 0.0
    %1759 = vmatpush1.msra.mxu0 %v1747
    %1760 = vmatprep.subr.mxu0 0.0
    %1761 = vmatpush1.msra.mxu0 0.0
    %1762 = vmatprep.subr.mxu0 0.0
    %1763 = vmatpush1.msra.mxu0 0.0
    %1764 = vmatprep.subr.mxu0 0.0
    %1765 = vmatpush1.msra.mxu0 0.0
    %1766 = vmatprep.subr.mxu0 0.0
    %1767 = vmatpush1.msra.mxu0 0.0
    %1768 = vmatprep.subr.mxu0 0.0
    %1769 = vmatpush1.msra.mxu0 0.0
    %1770 = vmatprep.subr.mxu0 0.0
    %1771 = vmatpush1.msra.mxu0 0.0
    %1772 = vmatprep.subr.mxu0 0.0
    %1773 = vmatpush1.msra.mxu0 0.0
    %1774 = vmatprep.subr.mxu0 0.0
    %1775 = vmatpush1.msra.mxu0 0.0
    %1776 = vmatprep.subr.mxu0 0.0
    %1777 = vmatpush1.msra.mxu0 0.0
    %1778 = vmatprep.subr.mxu0 0.0
    %1779 = vmatpush1.msra.mxu0 0.0
    %1780 = vmatprep.subr.mxu0 0.0
    %1781 = vmatpush1.msra.mxu0 0.0
    %1782 = vmatprep.subr.mxu0 0.0
    %1783 = vmatpush1.msra.mxu0 0.0
    %1784 = vmatprep.subr.mxu0 0.0
    %1785 = vmatpush1.msra.mxu0 0.0
    %1786 = vmatprep.subr.mxu0 0.0
    %1787 = vmatpush1.msra.mxu0 0.0
    %1788 = vmatprep.subr.mxu0 0.0
    %1789 = vmatpush1.msra.mxu0 0.0
    %1790 = vmatprep.subr.mxu0 0.0
    %1791 = vmatpush1.msra.mxu0 0.0
    %1792 = vmatprep.subr.mxu0 0.0
    %1793 = vmatpush1.msra.mxu0 0.0
    %1794 = vmatprep.subr.mxu0 0.0
    %1795 = vmatpush1.msra.mxu0 0.0
    %1796 = vmatprep.subr.mxu0 0.0
    %1797 = vmatpush1.msra.mxu0 0.0
    %1798 = vmatprep.subr.mxu0 0.0
    %1799 = vmatpush1.msra.mxu0 0.0
    %1800 = vmatprep.subr.mxu0 0.0
    %1801 = vmatpush1.msra.mxu0 0.0
    %1802 = vmatprep.subr.mxu0 0.0
    %1803 = vmatpush1.msra.mxu0 0.0
    %1804 = vmatprep.subr.mxu0 0.0
    %1805 = vmatpush1.msra.mxu0 0.0
    %1806 = vmatprep.subr.mxu0 0.0
    %1807 = vmatpush1.msra.mxu0 0.0
    %1808 = vmatprep.subr.mxu0 0.0
    %1809 = vmatpush1.msra.mxu0 0.0
    %1810 = vmatprep.subr.mxu0 0.0
    %1811 = vmatpush1.msra.mxu0 0.0
    %1812 = vmatprep.subr.mxu0 0.0
    %1813 = vmatpush1.msra.mxu0 0.0
    %1814 = vmatprep.subr.mxu0 0.0
    %1815 = vmatpush1.msra.mxu0 0.0
    %1816 = vmatprep.subr.mxu0 0.0
    %1817 = vmatpush1.msra.mxu0 0.0
    %1818 = vmatprep.subr.mxu0 0.0
    %1819 = vmatpush1.msra.mxu0 0.0
    %1820 = vmatprep.mubr.f32.mxu0 0.0
    %1821 = vmatmul.mubr.f32.gmra.mrb[0].mxu0 %v1751
    %v1822 = vpop.f32.mrb[0].mxu0
    %v1823 = vadd.f32 0.0, %v1822
    %v1824 = vpop.f32.mrb[0].mxu0
    %1825 = vmatprep.mubr.f32.mxu0 0.0
    %1826 = vmatmul.mubr.f32.gmra.mrb[0].mxu0 %v1754
    %v1827 = vpop.f32.mrb[0].mxu0
    %v1828 = vadd.f32 0.0, %v1827
    %v1829 = vpop.f32.mrb[0].mxu0
    %1830 = vdwg.mxu0
    %v1832 = vsel %vm265, %v1214, 0
    %v1835 = vsel %vm265, %v1219, 0
    %v1838 = vsel %vm265, %v1301, 0
    %v1841 = vsel %vm265, %v1306, 0
    %1843 = vmatprep.subr.mxu0 0.0
    %1844 = vmatpush1.msra.mxu0 %v62
    %1845 = vmatprep.subr.mxu0 0.0
    %1846 = vmatpush1.msra.mxu0 0.0
    %1847 = vmatprep.subr.mxu0 0.0
    %1848 = vmatpush1.msra.mxu0 0.0
    %1849 = vmatprep.subr.mxu0 0.0
    %1850 = vmatpush1.msra.mxu0 0.0
    %1851 = vmatprep.subr.mxu0 0.0
    %1852 = vmatpush1.msra.mxu0 0.0
    %1853 = vmatprep.subr.mxu0 0.0
    %1854 = vmatpush1.msra.mxu0 0.0
    %1855 = vmatprep.subr.mxu0 0.0
    %1856 = vmatpush1.msra.mxu0 0.0
    %1857 = vmatprep.subr.mxu0 0.0
    %1858 = vmatpush1.msra.mxu0 0.0
    %1859 = vmatprep.subr.mxu0 0.0
    %1860 = vmatpush1.msra.mxu0 0.0
    %1861 = vmatprep.subr.mxu0 0.0
    %1862 = vmatpush1.msra.mxu0 0.0
    %1863 = vmatprep.subr.mxu0 0.0
    %1864 = vmatpush1.msra.mxu0 0.0
    %1865 = vmatprep.subr.mxu0 0.0
    %1866 = vmatpush1.msra.mxu0 0.0
    %1867 = vmatprep.subr.mxu0 0.0
    %1868 = vmatpush1.msra.mxu0 0.0
    %1869 = vmatprep.subr.mxu0 0.0
    %1870 = vmatpush1.msra.mxu0 0.0
    %1871 = vmatprep.subr.mxu0 0.0
    %1872 = vmatpush1.msra.mxu0 0.0
    %1873 = vmatprep.subr.mxu0 0.0
    %1874 = vmatpush1.msra.mxu0 0.0
    %1875 = vmatprep.subr.mxu0 0.0
    %1876 = vmatpush1.msra.mxu0 0.0
    %1877 = vmatprep.subr.mxu0 0.0
    %1878 = vmatpush1.msra.mxu0 0.0
    %1879 = vmatprep.subr.mxu0 0.0
    %1880 = vmatpush1.msra.mxu0 0.0
    %1881 = vmatprep.subr.mxu0 0.0
    %1882 = vmatpush1.msra.mxu0 0.0
    %1883 = vmatprep.subr.mxu0 0.0
    %1884 = vmatpush1.msra.mxu0 0.0
    %1885 = vmatprep.subr.mxu0 0.0
    %1886 = vmatpush1.msra.mxu0 0.0
    %1887 = vmatprep.subr.mxu0 0.0
    %1888 = vmatpush1.msra.mxu0 0.0
    %1889 = vmatprep.subr.mxu0 0.0
    %1890 = vmatpush1.msra.mxu0 0.0
    %1891 = vmatprep.subr.mxu0 0.0
    %1892 = vmatpush1.msra.mxu0 0.0
    %1893 = vmatprep.subr.mxu0 0.0
    %1894 = vmatpush1.msra.mxu0 0.0
    %1895 = vmatprep.subr.mxu0 0.0
    %1896 = vmatpush1.msra.mxu0 0.0
    %1897 = vmatprep.subr.mxu0 0.0
    %1898 = vmatpush1.msra.mxu0 0.0
    %1899 = vmatprep.subr.mxu0 0.0
    %1900 = vmatpush1.msra.mxu0 0.0
    %1901 = vmatprep.subr.mxu0 0.0
    %1902 = vmatpush1.msra.mxu0 0.0
    %1903 = vmatprep.subr.mxu0 0.0
    %1904 = vmatpush1.msra.mxu0 0.0
    %1905 = vmatprep.subr.mxu0 0.0
    %1906 = vmatpush1.msra.mxu0 0.0
    %1907 = vmatprep.mubr.f32.mxu0 0.0
    %1908 = vmatmul.mubr.f32.gmra.mrb[0].mxu0 %v1832
    %v1909 = vpop.f32.mrb[0].mxu0
    %v1910 = vadd.f32 0.0, %v1909
    %v1911 = vpop.f32.mrb[0].mxu0
    %1912 = vmatprep.mubr.f32.mxu0 0.0
    %1913 = vmatmul.mubr.f32.gmra.mrb[0].mxu0 %v1835
    %v1914 = vpop.f32.mrb[0].mxu0
    %v1915 = vadd.f32 0.0, %v1914
    %v1916 = vpop.f32.mrb[0].mxu0
    %1917 = vmatprep.mubr.f32.mxu0 0.0
    %1918 = vmatmul.mubr.f32.gmra.mrb[0].mxu0 %v1838
    %v1919 = vpop.f32.mrb[0].mxu0
    %v1920 = vadd.f32 0.0, %v1919
    %v1921 = vpop.f32.mrb[0].mxu0
    %1922 = vmatprep.mubr.f32.mxu0 0.0
    %1923 = vmatmul.mubr.f32.gmra.mrb[0].mxu0 %v1841
    %v1924 = vpop.f32.mrb[0].mxu0
    %v1925 = vadd.f32 0.0, %v1924
    %v1926 = vpop.f32.mrb[0].mxu0
    %1927 = vdwg.mxu0
    %v1929 = vsel %vm265, %v1388, 0
    %v1932 = vsel %vm265, %v1393, 0
    %v1935 = vsel %vm265, %v1475, 0
    %v1938 = vsel %vm265, %v1480, 0
    %1940 = vmatprep.subr.mxu0 0.0
    %1941 = vmatpush1.msra.mxu0 %v63
    %1942 = vmatprep.subr.mxu0 0.0
    %1943 = vmatpush1.msra.mxu0 0.0
    %1944 = vmatprep.subr.mxu0 0.0
    %1945 = vmatpush1.msra.mxu0 0.0
    %1946 = vmatprep.subr.mxu0 0.0
    %1947 = vmatpush1.msra.mxu0 0.0
    %1948 = vmatprep.subr.mxu0 0.0
    %1949 = vmatpush1.msra.mxu0 0.0
    %1950 = vmatprep.subr.mxu0 0.0
    %1951 = vmatpush1.msra.mxu0 0.0
    %1952 = vmatprep.subr.mxu0 0.0
    %1953 = vmatpush1.msra.mxu0 0.0
    %1954 = vmatprep.subr.mxu0 0.0
    %1955 = vmatpush1.msra.mxu0 0.0
    %1956 = vmatprep.subr.mxu0 0.0
    %1957 = vmatpush1.msra.mxu0 0.0
    %1958 = vmatprep.subr.mxu0 0.0
    %1959 = vmatpush1.msra.mxu0 0.0
    %1960 = vmatprep.subr.mxu0 0.0
    %1961 = vmatpush1.msra.mxu0 0.0
    %1962 = vmatprep.subr.mxu0 0.0
    %1963 = vmatpush1.msra.mxu0 0.0
    %1964 = vmatprep.subr.mxu0 0.0
    %1965 = vmatpush1.msra.mxu0 0.0
    %1966 = vmatprep.subr.mxu0 0.0
    %1967 = vmatpush1.msra.mxu0 0.0
    %1968 = vmatprep.subr.mxu0 0.0
    %1969 = vmatpush1.msra.mxu0 0.0
    %1970 = vmatprep.subr.mxu0 0.0
    %1971 = vmatpush1.msra.mxu0 0.0
    %1972 = vmatprep.subr.mxu0 0.0
    %1973 = vmatpush1.msra.mxu0 0.0
    %1974 = vmatprep.subr.mxu0 0.0
    %1975 = vmatpush1.msra.mxu0 0.0
    %1976 = vmatprep.subr.mxu0 0.0
    %1977 = vmatpush1.msra.mxu0 0.0
    %1978 = vmatprep.subr.mxu0 0.0
    %1979 = vmatpush1.msra.mxu0 0.0
    %1980 = vmatprep.subr.mxu0 0.0
    %1981 = vmatpush1.msra.mxu0 0.0
    %1982 = vmatprep.subr.mxu0 0.0
    %1983 = vmatpush1.msra.mxu0 0.0
    %1984 = vmatprep.subr.mxu0 0.0
    %1985 = vmatpush1.msra.mxu0 0.0
    %1986 = vmatprep.subr.mxu0 0.0
    %1987 = vmatpush1.msra.mxu0 0.0
    %1988 = vmatprep.subr.mxu0 0.0
    %1989 = vmatpush1.msra.mxu0 0.0
    %1990 = vmatprep.subr.mxu0 0.0
    %1991 = vmatpush1.msra.mxu0 0.0
    %1992 = vmatprep.subr.mxu0 0.0
    %1993 = vmatpush1.msra.mxu0 0.0
    %1994 = vmatprep.subr.mxu0 0.0
    %1995 = vmatpush1.msra.mxu0 0.0
    %1996 = vmatprep.subr.mxu0 0.0
    %1997 = vmatpush1.msra.mxu0 0.0
    %1998 = vmatprep.subr.mxu0 0.0
    %1999 = vmatpush1.msra.mxu0 0.0
    %2000 = vmatprep.subr.mxu0 0.0
    %2001 = vmatpush1.msra.mxu0 0.0
    %2002 = vmatprep.subr.mxu0 0.0
    %2003 = vmatpush1.msra.mxu0 0.0
    %2004 = vmatprep.mubr.f32.mxu0 0.0
    %2005 = vmatmul.mubr.f32.gmra.mrb[0].mxu0 %v1929
    %v2006 = vpop.f32.mrb[0].mxu0
    %v2007 = vadd.f32 0.0, %v2006
    %v2008 = vpop.f32.mrb[0].mxu0
    %2009 = vmatprep.mubr.f32.mxu0 0.0
    %2010 = vmatmul.mubr.f32.gmra.mrb[0].mxu0 %v1932
    %v2011 = vpop.f32.mrb[0].mxu0
    %v2012 = vadd.f32 0.0, %v2011
    %v2013 = vpop.f32.mrb[0].mxu0
    %2014 = vmatprep.mubr.f32.mxu0 0.0
    %2015 = vmatmul.mubr.f32.gmra.mrb[0].mxu0 %v1935
    %v2016 = vpop.f32.mrb[0].mxu0
    %v2017 = vadd.f32 0.0, %v2016
    %v2018 = vpop.f32.mrb[0].mxu0
    %2019 = vmatprep.mubr.f32.mxu0 0.0
    %2020 = vmatmul.mubr.f32.gmra.mrb[0].mxu0 %v1938
    %v2021 = vpop.f32.mrb[0].mxu0
    %v2022 = vadd.f32 0.0, %v2021
    %v2023 = vpop.f32.mrb[0].mxu0
    %2024 = vdwg.mxu0
    %v2026 = vsel %vm265, %v1562, 0
    %v2029 = vsel %vm265, %v1567, 0
    %v2032 = vsel %vm265, %v1649, 0
    %v2035 = vsel %vm265, %v1654, 0
    %2037 = vmatprep.subr.mxu0 0.0
    %2038 = vmatpush1.msra.mxu0 %v64
    %2039 = vmatprep.subr.mxu0 0.0
    %2040 = vmatpush1.msra.mxu0 0.0
    %2041 = vmatprep.subr.mxu0 0.0
    %2042 = vmatpush1.msra.mxu0 0.0
    %2043 = vmatprep.subr.mxu0 0.0
    %2044 = vmatpush1.msra.mxu0 0.0
    %2045 = vmatprep.subr.mxu0 0.0
    %2046 = vmatpush1.msra.mxu0 0.0
    %2047 = vmatprep.subr.mxu0 0.0
    %2048 = vmatpush1.msra.mxu0 0.0
    %2049 = vmatprep.subr.mxu0 0.0
    %2050 = vmatpush1.msra.mxu0 0.0
    %2051 = vmatprep.subr.mxu0 0.0
    %2052 = vmatpush1.msra.mxu0 0.0
    %2053 = vmatprep.subr.mxu0 0.0
    %2054 = vmatpush1.msra.mxu0 0.0
    %2055 = vmatprep.subr.mxu0 0.0
    %2056 = vmatpush1.msra.mxu0 0.0
    %2057 = vmatprep.subr.mxu0 0.0
    %2058 = vmatpush1.msra.mxu0 0.0
    %2059 = vmatprep.subr.mxu0 0.0
    %2060 = vmatpush1.msra.mxu0 0.0
    %2061 = vmatprep.subr.mxu0 0.0
    %2062 = vmatpush1.msra.mxu0 0.0
    %2063 = vmatprep.subr.mxu0 0.0
    %2064 = vmatpush1.msra.mxu0 0.0
    %2065 = vmatprep.subr.mxu0 0.0
    %2066 = vmatpush1.msra.mxu0 0.0
    %2067 = vmatprep.subr.mxu0 0.0
    %2068 = vmatpush1.msra.mxu0 0.0
    %2069 = vmatprep.subr.mxu0 0.0
    %2070 = vmatpush1.msra.mxu0 0.0
    %2071 = vmatprep.subr.mxu0 0.0
    %2072 = vmatpush1.msra.mxu0 0.0
    %2073 = vmatprep.subr.mxu0 0.0
    %2074 = vmatpush1.msra.mxu0 0.0
    %2075 = vmatprep.subr.mxu0 0.0
    %2076 = vmatpush1.msra.mxu0 0.0
    %2077 = vmatprep.subr.mxu0 0.0
    %2078 = vmatpush1.msra.mxu0 0.0
    %2079 = vmatprep.subr.mxu0 0.0
    %2080 = vmatpush1.msra.mxu0 0.0
    %2081 = vmatprep.subr.mxu0 0.0
    %2082 = vmatpush1.msra.mxu0 0.0
    %2083 = vmatprep.subr.mxu0 0.0
    %2084 = vmatpush1.msra.mxu0 0.0
    %2085 = vmatprep.subr.mxu0 0.0
    %2086 = vmatpush1.msra.mxu0 0.0
    %2087 = vmatprep.subr.mxu0 0.0
    %2088 = vmatpush1.msra.mxu0 0.0
    %2089 = vmatprep.subr.mxu0 0.0
    %2090 = vmatpush1.msra.mxu0 0.0
    %2091 = vmatprep.subr.mxu0 0.0
    %2092 = vmatpush1.msra.mxu0 0.0
    %2093 = vmatprep.subr.mxu0 0.0
    %2094 = vmatpush1.msra.mxu0 0.0
    %2095 = vmatprep.subr.mxu0 0.0
    %2096 = vmatpush1.msra.mxu0 0.0
    %2097 = vmatprep.subr.mxu0 0.0
    %2098 = vmatpush1.msra.mxu0 0.0
    %2099 = vmatprep.subr.mxu0 0.0
    %2100 = vmatpush1.msra.mxu0 0.0
    %2101 = vmatprep.mubr.f32.mxu0 0.0
    %2102 = vmatmul.mubr.f32.gmra.mrb[0].mxu0 %v2026
    %v2103 = vpop.f32.mrb[0].mxu0
    %v2104 = vadd.f32 0.0, %v2103
    %v2105 = vpop.f32.mrb[0].mxu0
    %2106 = vmatprep.mubr.f32.mxu0 0.0
    %2107 = vmatmul.mubr.f32.gmra.mrb[0].mxu0 %v2029
    %v2108 = vpop.f32.mrb[0].mxu0
    %v2109 = vadd.f32 0.0, %v2108
    %v2110 = vpop.f32.mrb[0].mxu0
    %2111 = vmatprep.mubr.f32.mxu0 0.0
    %2112 = vmatmul.mubr.f32.gmra.mrb[0].mxu0 %v2032
    %v2113 = vpop.f32.mrb[0].mxu0
    %v2114 = vadd.f32 0.0, %v2113
    %v2115 = vpop.f32.mrb[0].mxu0
    %2116 = vmatprep.mubr.f32.mxu0 0.0
    %2117 = vmatmul.mubr.f32.gmra.mrb[0].mxu0 %v2035
    %v2118 = vpop.f32.mrb[0].mxu0
    %v2119 = vadd.f32 0.0, %v2118
    %v2120 = vpop.f32.mrb[0].mxu0
    %2121 = vdwg.mxu0
    %v2123 = vsel %vm265, %v1736, 0
    %v2126 = vsel %vm265, %v1741, 0
    %v2129 = vsel %vm265, %v1823, 0
    %v2132 = vsel %vm265, %v1828, 0
    %2134 = vmatprep.subr.mxu0 0.0
    %2135 = vmatpush1.msra.mxu0 %v65
    %2136 = vmatprep.subr.mxu0 0.0
    %2137 = vmatpush1.msra.mxu0 0.0
    %2138 = vmatprep.subr.mxu0 0.0
    %2139 = vmatpush1.msra.mxu0 0.0
    %2140 = vmatprep.subr.mxu0 0.0
    %2141 = vmatpush1.msra.mxu0 0.0
    %2142 = vmatprep.subr.mxu0 0.0
    %2143 = vmatpush1.msra.mxu0 0.0
    %2144 = vmatprep.subr.mxu0 0.0
    %2145 = vmatpush1.msra.mxu0 0.0
    %2146 = vmatprep.subr.mxu0 0.0
    %2147 = vmatpush1.msra.mxu0 0.0
    %2148 = vmatprep.subr.mxu0 0.0
    %2149 = vmatpush1.msra.mxu0 0.0
    %2150 = vmatprep.subr.mxu0 0.0
    %2151 = vmatpush1.msra.mxu0 0.0
    %2152 = vmatprep.subr.mxu0 0.0
    %2153 = vmatpush1.msra.mxu0 0.0
    %2154 = vmatprep.subr.mxu0 0.0
    %2155 = vmatpush1.msra.mxu0 0.0
    %2156 = vmatprep.subr.mxu0 0.0
    %2157 = vmatpush1.msra.mxu0 0.0
    %2158 = vmatprep.subr.mxu0 0.0
    %2159 = vmatpush1.msra.mxu0 0.0
    %2160 = vmatprep.subr.mxu0 0.0
    %2161 = vmatpush1.msra.mxu0 0.0
    %2162 = vmatprep.subr.mxu0 0.0
    %2163 = vmatpush1.msra.mxu0 0.0
    %2164 = vmatprep.subr.mxu0 0.0
    %2165 = vmatpush1.msra.mxu0 0.0
    %2166 = vmatprep.subr.mxu0 0.0
    %2167 = vmatpush1.msra.mxu0 0.0
    %2168 = vmatprep.subr.mxu0 0.0
    %2169 = vmatpush1.msra.mxu0 0.0
    %2170 = vmatprep.subr.mxu0 0.0
    %2171 = vmatpush1.msra.mxu0 0.0
    %2172 = vmatprep.subr.mxu0 0.0
    %2173 = vmatpush1.msra.mxu0 0.0
    %2174 = vmatprep.subr.mxu0 0.0
    %2175 = vmatpush1.msra.mxu0 0.0
    %2176 = vmatprep.subr.mxu0 0.0
    %2177 = vmatpush1.msra.mxu0 0.0
    %2178 = vmatprep.subr.mxu0 0.0
    %2179 = vmatpush1.msra.mxu0 0.0
    %2180 = vmatprep.subr.mxu0 0.0
    %2181 = vmatpush1.msra.mxu0 0.0
    %2182 = vmatprep.subr.mxu0 0.0
    %2183 = vmatpush1.msra.mxu0 0.0
    %2184 = vmatprep.subr.mxu0 0.0
    %2185 = vmatpush1.msra.mxu0 0.0
    %2186 = vmatprep.subr.mxu0 0.0
    %2187 = vmatpush1.msra.mxu0 0.0
    %2188 = vmatprep.subr.mxu0 0.0
    %2189 = vmatpush1.msra.mxu0 0.0
    %2190 = vmatprep.subr.mxu0 0.0
    %2191 = vmatpush1.msra.mxu0 0.0
    %2192 = vmatprep.subr.mxu0 0.0
    %2193 = vmatpush1.msra.mxu0 0.0
    %2194 = vmatprep.subr.mxu0 0.0
    %2195 = vmatpush1.msra.mxu0 0.0
    %2196 = vmatprep.subr.mxu0 0.0
    %2197 = vmatpush1.msra.mxu0 0.0
    %2198 = vmatprep.mubr.f32.mxu0 0.0
    %2199 = vmatmul.mubr.f32.gmra.mrb[0].mxu0 %v2123
    %v2200 = vpop.f32.mrb[0].mxu0
    %v2201 = vadd.f32 0.0, %v2200
    %v2202 = vpop.f32.mrb[0].mxu0
    %2203 = vmatprep.mubr.f32.mxu0 0.0
    %2204 = vmatmul.mubr.f32.gmra.mrb[0].mxu0 %v2126
    %v2205 = vpop.f32.mrb[0].mxu0
    %v2206 = vadd.f32 0.0, %v2205
    %v2207 = vpop.f32.mrb[0].mxu0
    %2208 = vmatprep.mubr.f32.mxu0 0.0
    %2209 = vmatmul.mubr.f32.gmra.mrb[0].mxu0 %v2129
    %v2210 = vpop.f32.mrb[0].mxu0
    %v2211 = vadd.f32 0.0, %v2210
    %v2212 = vpop.f32.mrb[0].mxu0
    %2213 = vmatprep.mubr.f32.mxu0 0.0
    %2214 = vmatmul.mubr.f32.gmra.mrb[0].mxu0 %v2132
    %v2215 = vpop.f32.mrb[0].mxu0
    %v2216 = vadd.f32 0.0, %v2215
    %v2217 = vpop.f32.mrb[0].mxu0
    %2218 = vdwg.mxu0
    %v2219 = vsel %vm99, %v1910, 0.0
    %v2220 = vsel %vm99, %v2007, 0.0
    %v2221 = vadd.f32 %v2219, %v2220
    %v2222 = vsel %vm99, %v2104, 0.0
    %v2223 = vadd.f32 %v2221, %v2222
    %v2224 = vsel %vm99, %v2201, 0.0
    %v2225 = vadd.f32 %v2223, %v2224
    %v2226 = vsel %vm99, %v1915, 0.0
    %v2227 = vsel %vm99, %v2012, 0.0
    %v2228 = vadd.f32 %v2226, %v2227
    %v2229 = vsel %vm99, %v2109, 0.0
    %v2230 = vadd.f32 %v2228, %v2229
    %v2231 = vsel %vm99, %v2206, 0.0
    %v2232 = vadd.f32 %v2230, %v2231
    %v2233 = vsel %vm99, %v1920, 0.0
    %v2234 = vsel %vm99, %v2017, 0.0
    %v2235 = vadd.f32 %v2233, %v2234
    %v2236 = vsel %vm99, %v2114, 0.0
    %v2237 = vadd.f32 %v2235, %v2236
    %v2238 = vsel %vm99, %v2211, 0.0
    %v2239 = vadd.f32 %v2237, %v2238
    %v2240 = vsel %vm99, %v1925, 0.0
    %v2241 = vsel %vm99, %v2022, 0.0
    %v2242 = vadd.f32 %v2240, %v2241
    %v2243 = vsel %vm99, %v2119, 0.0
    %v2244 = vadd.f32 %v2242, %v2243
    %v2245 = vsel %vm99, %v2216, 0.0
    %v2246 = vadd.f32 %v2244, %v2245
    %v2248 = vlaneseq
    %v2249 = vshrl.u32 %v2248, 7
    %v2250 = vsub.s32 0, %v2249
    %v2251 = vrot.slane %v66, %v2250
    %v2253 = vadd.f32 %v2225, %v2251
    %v2254 = vadd.f32 %v2232, %v2251
    %v2255 = vadd.f32 %v2239, %v2251
    %v2256 = vadd.f32 %v2246, %v2251
    %v2257 = vadd.f32 %v45, %v2253
    %v2258 = vadd.f32 %v46, %v2254
    %v2259 = vadd.f32 %v47, %v2255
    %v2260 = vadd.f32 %v48, %v2256
    %v2261 = vsel %vm99, %v2257, 0.0
    %2262 = vadd.xlane.f32.xlu0 %v2261
    %v2263 = vpop.xlane.xlu0 %2262
    %v2264 = vsel %vm99, %v2258, 0.0
    %2265 = vadd.xlane.f32.xlu0 %v2264
    %v2266 = vpop.xlane.xlu0 %2265
    %v2267 = vsel %vm99, %v2259, 0.0
    %2268 = vadd.xlane.f32.xlu0 %v2267
    %v2269 = vpop.xlane.xlu0 %2268
    %v2270 = vsel %vm99, %v2260, 0.0
    %2271 = vadd.xlane.f32.xlu0 %v2270
    %v2272 = vpop.xlane.xlu0 %2271
    %v2273 = vrcp.pop 32.0
    %v2274 = vmul.f32 %v2263, %v2273
    %v2275 = vmul.f32 %v2266, %v2273
    %v2276 = vmul.f32 %v2269, %v2273
    %v2277 = vmul.f32 %v2272, %v2273
    %v2278 = vsub.f32 %v2257, %v2274
    %v2279 = vsub.f32 %v2258, %v2275
    %v2280 = vsub.f32 %v2259, %v2276
    %v2281 = vsub.f32 %v2260, %v2277
    %v2282 = vmul.f32 %v2278, %v2278
    %v2283 = vmul.f32 %v2279, %v2279
    %v2284 = vmul.f32 %v2280, %v2280
    %v2285 = vmul.f32 %v2281, %v2281
    %v2286 = vsel %vm99, %v2282, 0.0
    %2287 = vadd.xlane.f32.xlu0 %v2286
    %v2288 = vpop.xlane.xlu0 %2287
    %v2289 = vsel %vm99, %v2283, 0.0
    %2290 = vadd.xlane.f32.xlu0 %v2289
    %v2291 = vpop.xlane.xlu0 %2290
    %v2292 = vsel %vm99, %v2284, 0.0
    %2293 = vadd.xlane.f32.xlu0 %v2292
    %v2294 = vpop.xlane.xlu0 %2293
    %v2295 = vsel %vm99, %v2285, 0.0
    %2296 = vadd.xlane.f32.xlu0 %v2295
    %v2297 = vpop.xlane.xlu0 %2296
    %v2298 = vmul.f32 %v2288, %v2273
    %v2299 = vmul.f32 %v2291, %v2273
    %v2300 = vmul.f32 %v2294, %v2273
    %v2301 = vmul.f32 %v2297, %v2273
    %v2302 = vadd.f32 %v2298, 1e-05
    %v2303 = vadd.f32 %v2299, 1e-05
    %v2304 = vadd.f32 %v2300, 1e-05
    %v2305 = vadd.f32 %v2301, 1e-05
    %v2306 = vrsqrt.pop %v2302
    %v2307 = vrsqrt.pop %v2303
    %v2308 = vrsqrt.pop %v2304
    %v2309 = vrsqrt.pop %v2305
    %v2310 = vmul.f32 %v2278, %v2306
    %v2311 = vmul.f32 %v2279, %v2307
    %v2312 = vmul.f32 %v2280, %v2308
    %v2313 = vmul.f32 %v2281, %v2309
    %v2315 = vlaneseq
    %v2316 = vshrl.u32 %v2315, 7
    %v2317 = vsub.s32 0, %v2316
    %v2318 = vrot.slane %v67, %v2317
    %v2320 = vmul.f32 %v2310, %v2318
    %v2321 = vmul.f32 %v2311, %v2318
    %v2322 = vmul.f32 %v2312, %v2318
    %v2323 = vmul.f32 %v2313, %v2318
    %v2325 = vlaneseq
    %v2326 = vshrl.u32 %v2325, 7
    %v2327 = vsub.s32 0, %v2326
    %v2328 = vrot.slane %v68, %v2327
    %v2330 = vadd.f32 %v2320, %v2328
    %v2331 = vadd.f32 %v2321, %v2328
    %v2332 = vadd.f32 %v2322, %v2328
    %v2333 = vadd.f32 %v2323, %v2328
    %v2335 = vlaneseq
    %v2336 = vshrl.u32 %v2335, 7
    %v2337 = vsub.s32 0, %v2336
    %v2338 = vrot.slane %v87, %v2337
    %v2341 = vsel %vm99, %v2330, 0
    %v2344 = vsel %vm99, %v2331, 0
    %v2347 = vsel %vm99, %v2332, 0
    %v2350 = vsel %vm99, %v2333, 0
    %v2353 = vsel %vm99, %v71, 0
    %v2356 = vsel %vm99, %v72, 0
    %v2359 = vsel %vm99, %v73, 0
    %v2362 = vsel %vm99, %v74, 0
    %v2365 = vsel %vm99, %v75, 0
    %v2368 = vsel %vm99, %v76, 0
    %v2371 = vsel %vm99, %v77, 0
    %v2374 = vsel %vm99, %v78, 0
    %v2377 = vsel %vm99, %v79, 0
    %v2380 = vsel %vm99, %v80, 0
    %v2383 = vsel %vm99, %v81, 0
    %v2386 = vsel %vm99, %v82, 0
    %v2389 = vsel %vm99, %v83, 0
    %v2392 = vsel %vm99, %v84, 0
    %v2395 = vsel %vm99, %v85, 0
    %v2398 = vsel %vm99, %v86, 0
    %2400 = vmatprep.subr.mxu0 0.0
    %2401 = vmatpush1.xpose.msra.mxu0 %v2353
    %2402 = vmatprep.subr.mxu0 0.0
    %2403 = vmatpush1.xpose.msra.mxu0 %v2356
    %2404 = vmatprep.subr.mxu0 0.0
    %2405 = vmatpush1.xpose.msra.mxu0 %v2359
    %2406 = vmatprep.subr.mxu0 0.0
    %2407 = vmatpush1.xpose.msra.mxu0 %v2362
    %2408 = vmatprep.subr.mxu0 0.0
    %2409 = vmatpush1.xpose.msra.mxu0 %v2365
    %2410 = vmatprep.subr.mxu0 0.0
    %2411 = vmatpush1.xpose.msra.mxu0 %v2368
    %2412 = vmatprep.subr.mxu0 0.0
    %2413 = vmatpush1.xpose.msra.mxu0 %v2371
    %2414 = vmatprep.subr.mxu0 0.0
    %2415 = vmatpush1.xpose.msra.mxu0 %v2374
    %2416 = vmatprep.subr.mxu0 0.0
    %2417 = vmatpush1.xpose.msra.mxu0 %v2377
    %2418 = vmatprep.subr.mxu0 0.0
    %2419 = vmatpush1.xpose.msra.mxu0 %v2380
    %2420 = vmatprep.subr.mxu0 0.0
    %2421 = vmatpush1.xpose.msra.mxu0 %v2383
    %2422 = vmatprep.subr.mxu0 0.0
    %2423 = vmatpush1.xpose.msra.mxu0 %v2386
    %2424 = vmatprep.subr.mxu0 0.0
    %2425 = vmatpush1.xpose.msra.mxu0 %v2389
    %2426 = vmatprep.subr.mxu0 0.0
    %2427 = vmatpush1.xpose.msra.mxu0 %v2392
    %2428 = vmatprep.subr.mxu0 0.0
    %2429 = vmatpush1.xpose.msra.mxu0 %v2395
    %2430 = vmatprep.subr.mxu0 0.0
    %2431 = vmatpush1.xpose.msra.mxu0 %v2398
    %2432 = vmatprep.subr.mxu0 0.0
    %2433 = vmatpush1.xpose.msra.mxu0 0.0
    %2434 = vmatprep.subr.mxu0 0.0
    %2435 = vmatpush1.xpose.msra.mxu0 0.0
    %2436 = vmatprep.subr.mxu0 0.0
    %2437 = vmatpush1.xpose.msra.mxu0 0.0
    %2438 = vmatprep.subr.mxu0 0.0
    %2439 = vmatpush1.xpose.msra.mxu0 0.0
    %2440 = vmatprep.subr.mxu0 0.0
    %2441 = vmatpush1.xpose.msra.mxu0 0.0
    %2442 = vmatprep.subr.mxu0 0.0
    %2443 = vmatpush1.xpose.msra.mxu0 0.0
    %2444 = vmatprep.subr.mxu0 0.0
    %2445 = vmatpush1.xpose.msra.mxu0 0.0
    %2446 = vmatprep.subr.mxu0 0.0
    %2447 = vmatpush1.xpose.msra.mxu0 0.0
    %2448 = vmatprep.subr.mxu0 0.0
    %2449 = vmatpush1.xpose.msra.mxu0 0.0
    %2450 = vmatprep.subr.mxu0 0.0
    %2451 = vmatpush1.xpose.msra.mxu0 0.0
    %2452 = vmatprep.subr.mxu0 0.0
    %2453 = vmatpush1.xpose.msra.mxu0 0.0
    %2454 = vmatprep.subr.mxu0 0.0
    %2455 = vmatpush1.xpose.msra.mxu0 0.0
    %2456 = vmatprep.subr.mxu0 0.0
    %2457 = vmatpush1.xpose.msra.mxu0 0.0
    %2458 = vmatprep.subr.mxu0 0.0
    %2459 = vmatpush1.xpose.msra.mxu0 0.0
    %2460 = vmatprep.subr.mxu0 0.0
    %2461 = vmatpush1.xpose.msra.mxu0 0.0
    %2462 = vmatprep.subr.mxu0 0.0
    %2463 = vmatpush1.xpose.msra.mxu0 0.0
    %2464 = vmatprep.mubr.f32.mxu0 0.0
    %2465 = vmatmul.mubr.f32.gmra.mrb[0].mxu0 %v2341
    %v2466 = vpop.f32.mrb[0].mxu0
    %v2467 = vadd.f32 %v2338, %v2466
    %v2468 = vpop.f32.mrb[0].mxu0
    %2469 = vmatprep.mubr.f32.mxu0 0.0
    %2470 = vmatmul.mubr.f32.gmra.mrb[0].mxu0 %v2344
    %v2471 = vpop.f32.mrb[0].mxu0
    %v2472 = vadd.f32 %v2338, %v2471
    %v2473 = vpop.f32.mrb[0].mxu0
    %2474 = vmatprep.mubr.f32.mxu0 0.0
    %2475 = vmatmul.mubr.f32.gmra.mrb[0].mxu0 %v2347
    %v2476 = vpop.f32.mrb[0].mxu0
    %v2477 = vadd.f32 %v2338, %v2476
    %v2478 = vpop.f32.mrb[0].mxu0
    %2479 = vmatprep.mubr.f32.mxu0 0.0
    %2480 = vmatmul.mubr.f32.gmra.mrb[0].mxu0 %v2350
    %v2481 = vpop.f32.mrb[0].mxu0
    %v2482 = vadd.f32 %v2338, %v2481
    %v2483 = vpop.f32.mrb[0].mxu0
    %2484 = vdwg.mxu0
    %v2485 = vmax.f32 %v2467, 0.0
    %v2486 = vmax.f32 %v2472, 0.0
    %v2487 = vmax.f32 %v2477, 0.0
    %v2488 = vmax.f32 %v2482, 0.0
    %v2490 = vlaneseq
    %v2491 = vshrl.u32 %v2490, 7
    %v2492 = vsub.s32 0, %v2491
    %v2493 = vrot.slane %v92, %v2492
    %2495 = vmatprep.subr.mxu0 0.0
    %2496 = vmatpush1.xpose.msra.mxu0 %v88
    %2497 = vmatprep.subr.mxu0 0.0
    %2498 = vmatpush1.xpose.msra.mxu0 %v89
    %2499 = vmatprep.subr.mxu0 0.0
    %2500 = vmatpush1.xpose.msra.mxu0 %v90
    %2501 = vmatprep.subr.mxu0 0.0
    %2502 = vmatpush1.xpose.msra.mxu0 %v91
    %2503 = vmatprep.subr.mxu0 0.0
    %2504 = vmatpush1.xpose.msra.mxu0 0.0
    %2505 = vmatprep.subr.mxu0 0.0
    %2506 = vmatpush1.xpose.msra.mxu0 0.0
    %2507 = vmatprep.subr.mxu0 0.0
    %2508 = vmatpush1.xpose.msra.mxu0 0.0
    %2509 = vmatprep.subr.mxu0 0.0
    %2510 = vmatpush1.xpose.msra.mxu0 0.0
    %2511 = vmatprep.subr.mxu0 0.0
    %2512 = vmatpush1.xpose.msra.mxu0 0.0
    %2513 = vmatprep.subr.mxu0 0.0
    %2514 = vmatpush1.xpose.msra.mxu0 0.0
    %2515 = vmatprep.subr.mxu0 0.0
    %2516 = vmatpush1.xpose.msra.mxu0 0.0
    %2517 = vmatprep.subr.mxu0 0.0
    %2518 = vmatpush1.xpose.msra.mxu0 0.0
    %2519 = vmatprep.subr.mxu0 0.0
    %2520 = vmatpush1.xpose.msra.mxu0 0.0
    %2521 = vmatprep.subr.mxu0 0.0
    %2522 = vmatpush1.xpose.msra.mxu0 0.0
    %2523 = vmatprep.subr.mxu0 0.0
    %2524 = vmatpush1.xpose.msra.mxu0 0.0
    %2525 = vmatprep.subr.mxu0 0.0
    %2526 = vmatpush1.xpose.msra.mxu0 0.0
    %2527 = vmatprep.subr.mxu0 0.0
    %2528 = vmatpush1.xpose.msra.mxu0 0.0
    %2529 = vmatprep.subr.mxu0 0.0
    %2530 = vmatpush1.xpose.msra.mxu0 0.0
    %2531 = vmatprep.subr.mxu0 0.0
    %2532 = vmatpush1.xpose.msra.mxu0 0.0
    %2533 = vmatprep.subr.mxu0 0.0
    %2534 = vmatpush1.xpose.msra.mxu0 0.0
    %2535 = vmatprep.subr.mxu0 0.0
    %2536 = vmatpush1.xpose.msra.mxu0 0.0
    %2537 = vmatprep.subr.mxu0 0.0
    %2538 = vmatpush1.xpose.msra.mxu0 0.0
    %2539 = vmatprep.subr.mxu0 0.0
    %2540 = vmatpush1.xpose.msra.mxu0 0.0
    %2541 = vmatprep.subr.mxu0 0.0
    %2542 = vmatpush1.xpose.msra.mxu0 0.0
    %2543 = vmatprep.subr.mxu0 0.0
    %2544 = vmatpush1.xpose.msra.mxu0 0.0
    %2545 = vmatprep.subr.mxu0 0.0
    %2546 = vmatpush1.xpose.msra.mxu0 0.0
    %2547 = vmatprep.subr.mxu0 0.0
    %2548 = vmatpush1.xpose.msra.mxu0 0.0
    %2549 = vmatprep.subr.mxu0 0.0
    %2550 = vmatpush1.xpose.msra.mxu0 0.0
    %2551 = vmatprep.subr.mxu0 0.0
    %2552 = vmatpush1.xpose.msra.mxu0 0.0
    %2553 = vmatprep.subr.mxu0 0.0
    %2554 = vmatpush1.xpose.msra.mxu0 0.0
    %2555 = vmatprep.subr.mxu0 0.0
    %2556 = vmatpush1.xpose.msra.mxu0 0.0
    %2557 = vmatprep.subr.mxu0 0.0
    %2558 = vmatpush1.xpose.msra.mxu0 0.0
    %2559 = vmatprep.mubr.f32.mxu0 0.0
    %2560 = vmatmul.mubr.f32.gmra.mrb[0].mxu0 %v2485
    %v2561 = vpop.f32.mrb[0].mxu0
    %v2562 = vadd.f32 %v2493, %v2561
    %v2563 = vpop.f32.mrb[0].mxu0
    %2564 = vmatprep.mubr.f32.mxu0 0.0
    %2565 = vmatmul.mubr.f32.gmra.mrb[0].mxu0 %v2486
    %v2566 = vpop.f32.mrb[0].mxu0
    %v2567 = vadd.f32 %v2493, %v2566
    %v2568 = vpop.f32.mrb[0].mxu0
    %2569 = vmatprep.mubr.f32.mxu0 0.0
    %2570 = vmatmul.mubr.f32.gmra.mrb[0].mxu0 %v2487
    %v2571 = vpop.f32.mrb[0].mxu0
    %v2572 = vadd.f32 %v2493, %v2571
    %v2573 = vpop.f32.mrb[0].mxu0
    %2574 = vmatprep.mubr.f32.mxu0 0.0
    %2575 = vmatmul.mubr.f32.gmra.mrb[0].mxu0 %v2488
    %v2576 = vpop.f32.mrb[0].mxu0
    %v2577 = vadd.f32 %v2493, %v2576
    %v2578 = vpop.f32.mrb[0].mxu0
    %2579 = vdwg.mxu0
    %v2580 = vadd.f32 %v2330, %v2562
    %v2581 = vadd.f32 %v2331, %v2567
    %v2582 = vadd.f32 %v2332, %v2572
    %v2583 = vadd.f32 %v2333, %v2577
    %v2584 = vsel %vm99, %v2580, 0.0
    %2585 = vadd.xlane.f32.xlu0 %v2584
    %v2586 = vpop.xlane.xlu0 %2585
    %v2587 = vsel %vm99, %v2581, 0.0
    %2588 = vadd.xlane.f32.xlu0 %v2587
    %v2589 = vpop.xlane.xlu0 %2588
    %v2590 = vsel %vm99, %v2582, 0.0
    %2591 = vadd.xlane.f32.xlu0 %v2590
    %v2592 = vpop.xlane.xlu0 %2591
    %v2593 = vsel %vm99, %v2583, 0.0
    %2594 = vadd.xlane.f32.xlu0 %v2593
    %v2595 = vpop.xlane.xlu0 %2594
    %v2596 = vmul.f32 %v2586, %v2273
    %v2597 = vmul.f32 %v2589, %v2273
    %v2598 = vmul.f32 %v2592, %v2273
    %v2599 = vmul.f32 %v2595, %v2273
    %v2600 = vsub.f32 %v2580, %v2596
    %v2601 = vsub.f32 %v2581, %v2597
    %v2602 = vsub.f32 %v2582, %v2598
    %v2603 = vsub.f32 %v2583, %v2599
    %v2604 = vmul.f32 %v2600, %v2600
    %v2605 = vmul.f32 %v2601, %v2601
    %v2606 = vmul.f32 %v2602, %v2602
    %v2607 = vmul.f32 %v2603, %v2603
    %v2608 = vsel %vm99, %v2604, 0.0
    %2609 = vadd.xlane.f32.xlu0 %v2608
    %v2610 = vpop.xlane.xlu0 %2609
    %v2611 = vsel %vm99, %v2605, 0.0
    %2612 = vadd.xlane.f32.xlu0 %v2611
    %v2613 = vpop.xlane.xlu0 %2612
    %v2614 = vsel %vm99, %v2606, 0.0
    %2615 = vadd.xlane.f32.xlu0 %v2614
    %v2616 = vpop.xlane.xlu0 %2615
    %v2617 = vsel %vm99, %v2607, 0.0
    %2618 = vadd.xlane.f32.xlu0 %v2617
    %v2619 = vpop.xlane.xlu0 %2618
    %v2620 = vmul.f32 %v2610, %v2273
    %v2621 = vmul.f32 %v2613, %v2273
    %v2622 = vmul.f32 %v2616, %v2273
    %v2623 = vmul.f32 %v2619, %v2273
    %v2624 = vadd.f32 %v2620, 1e-05
    %v2625 = vadd.f32 %v2621, 1e-05
    %v2626 = vadd.f32 %v2622, 1e-05
    %v2627 = vadd.f32 %v2623, 1e-05
    %v2628 = vrsqrt.pop %v2624
    %v2629 = vrsqrt.pop %v2625
    %v2630 = vrsqrt.pop %v2626
    %v2631 = vrsqrt.pop %v2627
    %v2632 = vmul.f32 %v2600, %v2628
    %v2633 = vmul.f32 %v2601, %v2629
    %v2634 = vmul.f32 %v2602, %v2630
    %v2635 = vmul.f32 %v2603, %v2631
    %v2637 = vlaneseq
    %v2638 = vshrl.u32 %v2637, 7
    %v2639 = vsub.s32 0, %v2638
    %v2640 = vrot.slane %v69, %v2639
    %v2642 = vmul.f32 %v2632, %v2640
    %v2643 = vmul.f32 %v2633, %v2640
    %v2644 = vmul.f32 %v2634, %v2640
    %v2645 = vmul.f32 %v2635, %v2640
    %v2647 = vlaneseq
    %v2648 = vshrl.u32 %v2647, 7
    %v2649 = vsub.s32 0, %v2648
    %v2650 = vrot.slane %v70, %v2649
    %v2652 = vadd.f32 %v2642, %v2650
    %v2653 = vadd.f32 %v2643, %v2650
    %v2654 = vadd.f32 %v2644, %v2650
    %v2655 = vadd.f32 %v2645, %v2650
    %s2656 = scalar_lea.vmem %s1, 96
    %v2657 = vld [vmem:[%s2656] sm:$0xff]
    %v2658 = vld [vmem:[%s2656 + $0x8] sm:$0xff]
    %v2659 = vld [vmem:[%s2656 + $0x10] sm:$0xff]
    %v2660 = vld [vmem:[%s2656 + $0x18] sm:$0xff]
    %v2661 = vld [vmem:[%s2656 + $0x20] sm:$0xff]
    %v2662 = vld [vmem:[%s2656 + $0x28] sm:$0xff]
    %v2663 = vld [vmem:[%s2656 + $0x30] sm:$0xff]
    %v2664 = vld [vmem:[%s2656 + $0x38] sm:$0xff]
    %v2665 = vld [vmem:[%s2656 + $0x40] sm:$0xff]
    %v2666 = vld [vmem:[%s2656 + $0x48] sm:$0xff]
    %v2667 = vld [vmem:[%s2656 + $0x50] sm:$0xff]
    %v2668 = vld [vmem:[%s2656 + $0x58] sm:$0xff]
    %s2669 = scalar_lea.vmem %s2, 1
    %v2670 = vld [vmem:[%s2669] sm:$0x1]
    %s2671 = scalar_lea.vmem %s3, 32
    %v2672 = vld [vmem:[%s2671] sm:$0xff]
    %v2673 = vld [vmem:[%s2671 + $0x8] sm:$0xff]
    %v2674 = vld [vmem:[%s2671 + $0x10] sm:$0xff]
    %v2675 = vld [vmem:[%s2671 + $0x18] sm:$0xff]
    %s2676 = scalar_lea.vmem %s4, 1
    %v2677 = vld [vmem:[%s2676] sm:$0x1]
    %s2678 = scalar_lea.vmem %s5, 1
    %v2679 = vld [vmem:[%s2678] sm:$0x1]
    %s2680 = scalar_lea.vmem %s6, 1
    %v2681 = vld [vmem:[%s2680] sm:$0x1]
    %s2682 = scalar_lea.vmem %s7, 1
    %v2683 = vld [vmem:[%s2682] sm:$0x1]
    %s2684 = scalar_lea.vmem %s8, 1
    %v2685 = vld [vmem:[%s2684] sm:$0x1]
    %s2686 = scalar_lea.vmem %s9, 128
    %v2687 = vld [vmem:[%s2686] sm:$0xff]
    %v2688 = vld [vmem:[%s2686 + $0x8] sm:$0xff]
    %v2689 = vld [vmem:[%s2686 + $0x10] sm:$0xff]
    %v2690 = vld [vmem:[%s2686 + $0x18] sm:$0xff]
    %v2691 = vld [vmem:[%s2686 + $0x20] sm:$0xff]
    %v2692 = vld [vmem:[%s2686 + $0x28] sm:$0xff]
    %v2693 = vld [vmem:[%s2686 + $0x30] sm:$0xff]
    %v2694 = vld [vmem:[%s2686 + $0x38] sm:$0xff]
    %v2695 = vld [vmem:[%s2686 + $0x40] sm:$0xff]
    %v2696 = vld [vmem:[%s2686 + $0x48] sm:$0xff]
    %v2697 = vld [vmem:[%s2686 + $0x50] sm:$0xff]
    %v2698 = vld [vmem:[%s2686 + $0x58] sm:$0xff]
    %v2699 = vld [vmem:[%s2686 + $0x60] sm:$0xff]
    %v2700 = vld [vmem:[%s2686 + $0x68] sm:$0xff]
    %v2701 = vld [vmem:[%s2686 + $0x70] sm:$0xff]
    %v2702 = vld [vmem:[%s2686 + $0x78] sm:$0xff]
    %s2703 = scalar_lea.vmem %s10, 1
    %v2704 = vld [vmem:[%s2703] sm:$0x1]
    %s2705 = scalar_lea.vmem %s11, 32
    %v2706 = vld [vmem:[%s2705] sm:$0xff]
    %v2707 = vld [vmem:[%s2705 + $0x8] sm:$0xff]
    %v2708 = vld [vmem:[%s2705 + $0x10] sm:$0xff]
    %v2709 = vld [vmem:[%s2705 + $0x18] sm:$0xff]
    %s2710 = scalar_lea.vmem %s12, 1
    %v2711 = vld [vmem:[%s2710] sm:$0x1]
    %v2713 = vlaneseq
    %v2714 = vshrl.u32 %v2713, 7
    %v2715 = vsub.s32 0, %v2714
    %v2716 = vrot.slane %v2670, %v2715
    %v2719 = vsel %vm99, %v2652, 0
    %v2722 = vsel %vm99, %v2653, 0
    %v2725 = vsel %vm99, %v2654, 0
    %v2728 = vsel %vm99, %v2655, 0
    %v2731 = vsel %vm99, %v2657, 0
    %v2734 = vsel %vm99, %v2658, 0
    %v2737 = vsel %vm99, %v2659, 0
    %v2740 = vsel %vm99, %v2660, 0
    %v2743 = vsel %vm99, %v2661, 0
    %v2746 = vsel %vm99, %v2662, 0
    %v2749 = vsel %vm99, %v2663, 0
    %v2752 = vsel %vm99, %v2664, 0
    %v2755 = vsel %vm99, %v2665, 0
    %v2758 = vsel %vm99, %v2666, 0
    %v2761 = vsel %vm99, %v2667, 0
    %v2764 = vsel %vm99, %v2668, 0
    %2766 = vmatprep.subr.mxu0 0.0
    %2767 = vmatpush1.xpose.msra.mxu0 %v2731
    %2768 = vmatprep.subr.mxu0 0.0
    %2769 = vmatpush1.xpose.msra.mxu0 %v2734
    %2770 = vmatprep.subr.mxu0 0.0
    %2771 = vmatpush1.xpose.msra.mxu0 %v2737
    %2772 = vmatprep.subr.mxu0 0.0
    %2773 = vmatpush1.xpose.msra.mxu0 %v2740
    %2774 = vmatprep.subr.mxu0 0.0
    %2775 = vmatpush1.xpose.msra.mxu0 %v2743
    %2776 = vmatprep.subr.mxu0 0.0
    %2777 = vmatpush1.xpose.msra.mxu0 %v2746
    %2778 = vmatprep.subr.mxu0 0.0
    %2779 = vmatpush1.xpose.msra.mxu0 %v2749
    %2780 = vmatprep.subr.mxu0 0.0
    %2781 = vmatpush1.xpose.msra.mxu0 %v2752
    %2782 = vmatprep.subr.mxu0 0.0
    %2783 = vmatpush1.xpose.msra.mxu0 %v2755
    %2784 = vmatprep.subr.mxu0 0.0
    %2785 = vmatpush1.xpose.msra.mxu0 %v2758
    %2786 = vmatprep.subr.mxu0 0.0
    %2787 = vmatpush1.xpose.msra.mxu0 %v2761
    %2788 = vmatprep.subr.mxu0 0.0
    %2789 = vmatpush1.xpose.msra.mxu0 %v2764
    %2790 = vmatprep.subr.mxu0 0.0
    %2791 = vmatpush1.xpose.msra.mxu0 0.0
    %2792 = vmatprep.subr.mxu0 0.0
    %2793 = vmatpush1.xpose.msra.mxu0 0.0
    %2794 = vmatprep.subr.mxu0 0.0
    %2795 = vmatpush1.xpose.msra.mxu0 0.0
    %2796 = vmatprep.subr.mxu0 0.0
    %2797 = vmatpush1.xpose.msra.mxu0 0.0
    %2798 = vmatprep.subr.mxu0 0.0
    %2799 = vmatpush1.xpose.msra.mxu0 0.0
    %2800 = vmatprep.subr.mxu0 0.0
    %2801 = vmatpush1.xpose.msra.mxu0 0.0
    %2802 = vmatprep.subr.mxu0 0.0
    %2803 = vmatpush1.xpose.msra.mxu0 0.0
    %2804 = vmatprep.subr.mxu0 0.0
    %2805 = vmatpush1.xpose.msra.mxu0 0.0
    %2806 = vmatprep.subr.mxu0 0.0
    %2807 = vmatpush1.xpose.msra.mxu0 0.0
    %2808 = vmatprep.subr.mxu0 0.0
    %2809 = vmatpush1.xpose.msra.mxu0 0.0
    %2810 = vmatprep.subr.mxu0 0.0
    %2811 = vmatpush1.xpose.msra.mxu0 0.0
    %2812 = vmatprep.subr.mxu0 0.0
    %2813 = vmatpush1.xpose.msra.mxu0 0.0
    %2814 = vmatprep.subr.mxu0 0.0
    %2815 = vmatpush1.xpose.msra.mxu0 0.0
    %2816 = vmatprep.subr.mxu0 0.0
    %2817 = vmatpush1.xpose.msra.mxu0 0.0
    %2818 = vmatprep.subr.mxu0 0.0
    %2819 = vmatpush1.xpose.msra.mxu0 0.0
    %2820 = vmatprep.subr.mxu0 0.0
    %2821 = vmatpush1.xpose.msra.mxu0 0.0
    %2822 = vmatprep.subr.mxu0 0.0
    %2823 = vmatpush1.xpose.msra.mxu0 0.0
    %2824 = vmatprep.subr.mxu0 0.0
    %2825 = vmatpush1.xpose.msra.mxu0 0.0
    %2826 = vmatprep.subr.mxu0 0.0
    %2827 = vmatpush1.xpose.msra.mxu0 0.0
    %2828 = vmatprep.subr.mxu0 0.0
    %2829 = vmatpush1.xpose.msra.mxu0 0.0
    %2830 = vmatprep.mubr.f32.mxu0 0.0
    %2831 = vmatmul.mubr.f32.gmra.mrb[0].mxu0 %v2719
    %v2832 = vpop.f32.mrb[0].mxu0
    %v2833 = vadd.f32 %v2716, %v2832
    %v2834 = vpop.f32.mrb[0].mxu0
    %2835 = vmatprep.mubr.f32.mxu0 0.0
    %2836 = vmatmul.mubr.f32.gmra.mrb[0].mxu0 %v2722
    %v2837 = vpop.f32.mrb[0].mxu0
    %v2838 = vadd.f32 %v2716, %v2837
    %v2839 = vpop.f32.mrb[0].mxu0
    %2840 = vmatprep.mubr.f32.mxu0 0.0
    %2841 = vmatmul.mubr.f32.gmra.mrb[0].mxu0 %v2725
    %v2842 = vpop.f32.mrb[0].mxu0
    %v2843 = vadd.f32 %v2716, %v2842
    %v2844 = vpop.f32.mrb[0].mxu0
    %2845 = vmatprep.mubr.f32.mxu0 0.0
    %2846 = vmatmul.mubr.f32.gmra.mrb[0].mxu0 %v2728
    %v2847 = vpop.f32.mrb[0].mxu0
    %v2848 = vadd.f32 %v2716, %v2847
    %v2849 = vpop.f32.mrb[0].mxu0
    %2850 = vdwg.mxu0
    %2855 = vrot.lane.b32.xlu0 %v2833, 120
    %v2856 = vpop.permute.xlu0 %2855
    %2857 = vrot.lane.b32.xlu0 %v2838, 120
    %v2858 = vpop.permute.xlu0 %2857
    %2859 = vrot.lane.b32.xlu0 %v2843, 120
    %v2860 = vpop.permute.xlu0 %2859
    %2861 = vrot.lane.b32.xlu0 %v2848, 120
    %v2862 = vpop.permute.xlu0 %2861
    %2863 = vrot.lane.b32.xlu0 %v2833, 112
    %v2864 = vpop.permute.xlu0 %2863
    %2865 = vrot.lane.b32.xlu0 %v2838, 112
    %v2866 = vpop.permute.xlu0 %2865
    %2867 = vrot.lane.b32.xlu0 %v2843, 112
    %v2868 = vpop.permute.xlu0 %2867
    %2869 = vrot.lane.b32.xlu0 %v2848, 112
    %v2870 = vpop.permute.xlu0 %2869
    %2871 = vrot.lane.b32.xlu0 %v2833, 104
    %v2872 = vpop.permute.xlu0 %2871
    %2873 = vrot.lane.b32.xlu0 %v2838, 104
    %v2874 = vpop.permute.xlu0 %2873
    %2875 = vrot.lane.b32.xlu0 %v2843, 104
    %v2876 = vpop.permute.xlu0 %2875
    %2877 = vrot.lane.b32.xlu0 %v2848, 104
    %v2878 = vpop.permute.xlu0 %2877
    %2879 = vrot.lane.b32.xlu0 %v2833, 96
    %v2880 = vpop.permute.xlu0 %2879
    %2881 = vrot.lane.b32.xlu0 %v2838, 96
    %v2882 = vpop.permute.xlu0 %2881
    %v2883 = vsel %vm265, %v2833, 0
    %v2885 = vsel %vm265, %v2838, 0
    %v2887 = vsel %vm265, %v2880, 0
    %v2889 = vsel %vm265, %v2882, 0
    %2891 = vmatprep.subr.mxu0 0.0
    %2892 = vmatpush1.xpose.msra.mxu0 %v2887
    %2893 = vmatprep.subr.mxu0 0.0
    %2894 = vmatpush1.xpose.msra.mxu0 %v2889
    %2895 = vmatprep.subr.mxu0 0.0
    %2896 = vmatpush1.xpose.msra.mxu0 0.0
    %2897 = vmatprep.subr.mxu0 0.0
    %2898 = vmatpush1.xpose.msra.mxu0 0.0
    %2899 = vmatprep.subr.mxu0 0.0
    %2900 = vmatpush1.xpose.msra.mxu0 0.0
    %2901 = vmatprep.subr.mxu0 0.0
    %2902 = vmatpush1.xpose.msra.mxu0 0.0
    %2903 = vmatprep.subr.mxu0 0.0
    %2904 = vmatpush1.xpose.msra.mxu0 0.0
    %2905 = vmatprep.subr.mxu0 0.0
    %2906 = vmatpush1.xpose.msra.mxu0 0.0
    %2907 = vmatprep.subr.mxu0 0.0
    %2908 = vmatpush1.xpose.msra.mxu0 0.0
    %2909 = vmatprep.subr.mxu0 0.0
    %2910 = vmatpush1.xpose.msra.mxu0 0.0
    %2911 = vmatprep.subr.mxu0 0.0
    %2912 = vmatpush1.xpose.msra.mxu0 0.0
    %2913 = vmatprep.subr.mxu0 0.0
    %2914 = vmatpush1.xpose.msra.mxu0 0.0
    %2915 = vmatprep.subr.mxu0 0.0
    %2916 = vmatpush1.xpose.msra.mxu0 0.0
    %2917 = vmatprep.subr.mxu0 0.0
    %2918 = vmatpush1.xpose.msra.mxu0 0.0
    %2919 = vmatprep.subr.mxu0 0.0
    %2920 = vmatpush1.xpose.msra.mxu0 0.0
    %2921 = vmatprep.subr.mxu0 0.0
    %2922 = vmatpush1.xpose.msra.mxu0 0.0
    %2923 = vmatprep.subr.mxu0 0.0
    %2924 = vmatpush1.xpose.msra.mxu0 0.0
    %2925 = vmatprep.subr.mxu0 0.0
    %2926 = vmatpush1.xpose.msra.mxu0 0.0
    %2927 = vmatprep.subr.mxu0 0.0
    %2928 = vmatpush1.xpose.msra.mxu0 0.0
    %2929 = vmatprep.subr.mxu0 0.0
    %2930 = vmatpush1.xpose.msra.mxu0 0.0
    %2931 = vmatprep.subr.mxu0 0.0
    %2932 = vmatpush1.xpose.msra.mxu0 0.0
    %2933 = vmatprep.subr.mxu0 0.0
    %2934 = vmatpush1.xpose.msra.mxu0 0.0
    %2935 = vmatprep.subr.mxu0 0.0
    %2936 = vmatpush1.xpose.msra.mxu0 0.0
    %2937 = vmatprep.subr.mxu0 0.0
    %2938 = vmatpush1.xpose.msra.mxu0 0.0
    %2939 = vmatprep.subr.mxu0 0.0
    %2940 = vmatpush1.xpose.msra.mxu0 0.0
    %2941 = vmatprep.subr.mxu0 0.0
    %2942 = vmatpush1.xpose.msra.mxu0 0.0
    %2943 = vmatprep.subr.mxu0 0.0
    %2944 = vmatpush1.xpose.msra.mxu0 0.0
    %2945 = vmatprep.subr.mxu0 0.0
    %2946 = vmatpush1.xpose.msra.mxu0 0.0
    %2947 = vmatprep.subr.mxu0 0.0
    %2948 = vmatpush1.xpose.msra.mxu0 0.0
    %2949 = vmatprep.subr.mxu0 0.0
    %2950 = vmatpush1.xpose.msra.mxu0 0.0
    %2951 = vmatprep.subr.mxu0 0.0
    %2952 = vmatpush1.xpose.msra.mxu0 0.0
    %2953 = vmatprep.subr.mxu0 0.0
    %2954 = vmatpush1.xpose.msra.mxu0 0.0
    %2955 = vmatprep.mubr.f32.mxu0 0.0
    %2956 = vmatmul.mubr.f32.gmra.mrb[0].mxu0 %v2883
    %v2957 = vpop.f32.mrb[0].mxu0
    %v2958 = vadd.f32 0.0, %v2957
    %v2959 = vpop.f32.mrb[0].mxu0
    %2960 = vmatprep.mubr.f32.mxu0 0.0
    %2961 = vmatmul.mubr.f32.gmra.mrb[0].mxu0 %v2885
    %v2962 = vpop.f32.mrb[0].mxu0
    %v2963 = vadd.f32 0.0, %v2962
    %v2964 = vpop.f32.mrb[0].mxu0
    %2965 = vdwg.mxu0
    %2966 = vrot.lane.b32.xlu0 %v2843, 96
    %v2967 = vpop.permute.xlu0 %2966
    %2968 = vrot.lane.b32.xlu0 %v2848, 96
    %v2969 = vpop.permute.xlu0 %2968
    %v2970 = vsel %vm265, %v2843, 0
    %v2972 = vsel %vm265, %v2848, 0
    %v2974 = vsel %vm265, %v2967, 0
    %v2976 = vsel %vm265, %v2969, 0
    %2978 = vmatprep.subr.mxu0 0.0
    %2979 = vmatpush1.xpose.msra.mxu0 %v2974
    %2980 = vmatprep.subr.mxu0 0.0
    %2981 = vmatpush1.xpose.msra.mxu0 %v2976
    %2982 = vmatprep.subr.mxu0 0.0
    %2983 = vmatpush1.xpose.msra.mxu0 0.0
    %2984 = vmatprep.subr.mxu0 0.0
    %2985 = vmatpush1.xpose.msra.mxu0 0.0
    %2986 = vmatprep.subr.mxu0 0.0
    %2987 = vmatpush1.xpose.msra.mxu0 0.0
    %2988 = vmatprep.subr.mxu0 0.0
    %2989 = vmatpush1.xpose.msra.mxu0 0.0
    %2990 = vmatprep.subr.mxu0 0.0
    %2991 = vmatpush1.xpose.msra.mxu0 0.0
    %2992 = vmatprep.subr.mxu0 0.0
    %2993 = vmatpush1.xpose.msra.mxu0 0.0
    %2994 = vmatprep.subr.mxu0 0.0
    %2995 = vmatpush1.xpose.msra.mxu0 0.0
    %2996 = vmatprep.subr.mxu0 0.0
    %2997 = vmatpush1.xpose.msra.mxu0 0.0
    %2998 = vmatprep.subr.mxu0 0.0
    %2999 = vmatpush1.xpose.msra.mxu0 0.0
    %3000 = vmatprep.subr.mxu0 0.0
    %3001 = vmatpush1.xpose.msra.mxu0 0.0
    %3002 = vmatprep.subr.mxu0 0.0
    %3003 = vmatpush1.xpose.msra.mxu0 0.0
    %3004 = vmatprep.subr.mxu0 0.0
    %3005 = vmatpush1.xpose.msra.mxu0 0.0
    %3006 = vmatprep.subr.mxu0 0.0
    %3007 = vmatpush1.xpose.msra.mxu0 0.0
    %3008 = vmatprep.subr.mxu0 0.0
    %3009 = vmatpush1.xpose.msra.mxu0 0.0
    %3010 = vmatprep.subr.mxu0 0.0
    %3011 = vmatpush1.xpose.msra.mxu0 0.0
    %3012 = vmatprep.subr.mxu0 0.0
    %3013 = vmatpush1.xpose.msra.mxu0 0.0
    %3014 = vmatprep.subr.mxu0 0.0
    %3015 = vmatpush1.xpose.msra.mxu0 0.0
    %3016 = vmatprep.subr.mxu0 0.0
    %3017 = vmatpush1.xpose.msra.mxu0 0.0
    %3018 = vmatprep.subr.mxu0 0.0
    %3019 = vmatpush1.xpose.msra.mxu0 0.0
    %3020 = vmatprep.subr.mxu0 0.0
    %3021 = vmatpush1.xpose.msra.mxu0 0.0
    %3022 = vmatprep.subr.mxu0 0.0
    %3023 = vmatpush1.xpose.msra.mxu0 0.0
    %3024 = vmatprep.subr.mxu0 0.0
    %3025 = vmatpush1.xpose.msra.mxu0 0.0
    %3026 = vmatprep.subr.mxu0 0.0
    %3027 = vmatpush1.xpose.msra.mxu0 0.0
    %3028 = vmatprep.subr.mxu0 0.0
    %3029 = vmatpush1.xpose.msra.mxu0 0.0
    %3030 = vmatprep.subr.mxu0 0.0
    %3031 = vmatpush1.xpose.msra.mxu0 0.0
    %3032 = vmatprep.subr.mxu0 0.0
    %3033 = vmatpush1.xpose.msra.mxu0 0.0
    %3034 = vmatprep.subr.mxu0 0.0
    %3035 = vmatpush1.xpose.msra.mxu0 0.0
    %3036 = vmatprep.subr.mxu0 0.0
    %3037 = vmatpush1.xpose.msra.mxu0 0.0
    %3038 = vmatprep.subr.mxu0 0.0
    %3039 = vmatpush1.xpose.msra.mxu0 0.0
    %3040 = vmatprep.subr.mxu0 0.0
    %3041 = vmatpush1.xpose.msra.mxu0 0.0
    %3042 = vmatprep.mubr.f32.mxu0 0.0
    %3043 = vmatmul.mubr.f32.gmra.mrb[0].mxu0 %v2970
    %v3044 = vpop.f32.mrb[0].mxu0
    %v3045 = vadd.f32 0.0, %v3044
    %v3046 = vpop.f32.mrb[0].mxu0
    %3047 = vmatprep.mubr.f32.mxu0 0.0
    %3048 = vmatmul.mubr.f32.gmra.mrb[0].mxu0 %v2972
    %v3049 = vpop.f32.mrb[0].mxu0
    %v3050 = vadd.f32 0.0, %v3049
    %v3051 = vpop.f32.mrb[0].mxu0
    %3052 = vdwg.mxu0
    %3053 = vrot.lane.b32.xlu0 %v2856, 96
    %v3054 = vpop.permute.xlu0 %3053
    %3055 = vrot.lane.b32.xlu0 %v2858, 96
    %v3056 = vpop.permute.xlu0 %3055
    %v3057 = vsel %vm265, %v2856, 0
    %v3059 = vsel %vm265, %v2858, 0
    %v3061 = vsel %vm265, %v3054, 0
    %v3063 = vsel %vm265, %v3056, 0
    %3065 = vmatprep.subr.mxu0 0.0
    %3066 = vmatpush1.xpose.msra.mxu0 %v3061
    %3067 = vmatprep.subr.mxu0 0.0
    %3068 = vmatpush1.xpose.msra.mxu0 %v3063
    %3069 = vmatprep.subr.mxu0 0.0
    %3070 = vmatpush1.xpose.msra.mxu0 0.0
    %3071 = vmatprep.subr.mxu0 0.0
    %3072 = vmatpush1.xpose.msra.mxu0 0.0
    %3073 = vmatprep.subr.mxu0 0.0
    %3074 = vmatpush1.xpose.msra.mxu0 0.0
    %3075 = vmatprep.subr.mxu0 0.0
    %3076 = vmatpush1.xpose.msra.mxu0 0.0
    %3077 = vmatprep.subr.mxu0 0.0
    %3078 = vmatpush1.xpose.msra.mxu0 0.0
    %3079 = vmatprep.subr.mxu0 0.0
    %3080 = vmatpush1.xpose.msra.mxu0 0.0
    %3081 = vmatprep.subr.mxu0 0.0
    %3082 = vmatpush1.xpose.msra.mxu0 0.0
    %3083 = vmatprep.subr.mxu0 0.0
    %3084 = vmatpush1.xpose.msra.mxu0 0.0
    %3085 = vmatprep.subr.mxu0 0.0
    %3086 = vmatpush1.xpose.msra.mxu0 0.0
    %3087 = vmatprep.subr.mxu0 0.0
    %3088 = vmatpush1.xpose.msra.mxu0 0.0
    %3089 = vmatprep.subr.mxu0 0.0
    %3090 = vmatpush1.xpose.msra.mxu0 0.0
    %3091 = vmatprep.subr.mxu0 0.0
    %3092 = vmatpush1.xpose.msra.mxu0 0.0
    %3093 = vmatprep.subr.mxu0 0.0
    %3094 = vmatpush1.xpose.msra.mxu0 0.0
    %3095 = vmatprep.subr.mxu0 0.0
    %3096 = vmatpush1.xpose.msra.mxu0 0.0
    %3097 = vmatprep.subr.mxu0 0.0
    %3098 = vmatpush1.xpose.msra.mxu0 0.0
    %3099 = vmatprep.subr.mxu0 0.0
    %3100 = vmatpush1.xpose.msra.mxu0 0.0
    %3101 = vmatprep.subr.mxu0 0.0
    %3102 = vmatpush1.xpose.msra.mxu0 0.0
    %3103 = vmatprep.subr.mxu0 0.0
    %3104 = vmatpush1.xpose.msra.mxu0 0.0
    %3105 = vmatprep.subr.mxu0 0.0
    %3106 = vmatpush1.xpose.msra.mxu0 0.0
    %3107 = vmatprep.subr.mxu0 0.0
    %3108 = vmatpush1.xpose.msra.mxu0 0.0
    %3109 = vmatprep.subr.mxu0 0.0
    %3110 = vmatpush1.xpose.msra.mxu0 0.0
    %3111 = vmatprep.subr.mxu0 0.0
    %3112 = vmatpush1.xpose.msra.mxu0 0.0
    %3113 = vmatprep.subr.mxu0 0.0
    %3114 = vmatpush1.xpose.msra.mxu0 0.0
    %3115 = vmatprep.subr.mxu0 0.0
    %3116 = vmatpush1.xpose.msra.mxu0 0.0
    %3117 = vmatprep.subr.mxu0 0.0
    %3118 = vmatpush1.xpose.msra.mxu0 0.0
    %3119 = vmatprep.subr.mxu0 0.0
    %3120 = vmatpush1.xpose.msra.mxu0 0.0
    %3121 = vmatprep.subr.mxu0 0.0
    %3122 = vmatpush1.xpose.msra.mxu0 0.0
    %3123 = vmatprep.subr.mxu0 0.0
    %3124 = vmatpush1.xpose.msra.mxu0 0.0
    %3125 = vmatprep.subr.mxu0 0.0
    %3126 = vmatpush1.xpose.msra.mxu0 0.0
    %3127 = vmatprep.subr.mxu0 0.0
    %3128 = vmatpush1.xpose.msra.mxu0 0.0
    %3129 = vmatprep.mubr.f32.mxu0 0.0
    %3130 = vmatmul.mubr.f32.gmra.mrb[0].mxu0 %v3057
    %v3131 = vpop.f32.mrb[0].mxu0
    %v3132 = vadd.f32 0.0, %v3131
    %v3133 = vpop.f32.mrb[0].mxu0
    %3134 = vmatprep.mubr.f32.mxu0 0.0
    %3135 = vmatmul.mubr.f32.gmra.mrb[0].mxu0 %v3059
    %v3136 = vpop.f32.mrb[0].mxu0
    %v3137 = vadd.f32 0.0, %v3136
    %v3138 = vpop.f32.mrb[0].mxu0
    %3139 = vdwg.mxu0
    %3140 = vrot.lane.b32.xlu0 %v2860, 96
    %v3141 = vpop.permute.xlu0 %3140
    %3142 = vrot.lane.b32.xlu0 %v2862, 96
    %v3143 = vpop.permute.xlu0 %3142
    %v3144 = vsel %vm265, %v2860, 0
    %v3146 = vsel %vm265, %v2862, 0
    %v3148 = vsel %vm265, %v3141, 0
    %v3150 = vsel %vm265, %v3143, 0
    %3152 = vmatprep.subr.mxu0 0.0
    %3153 = vmatpush1.xpose.msra.mxu0 %v3148
    %3154 = vmatprep.subr.mxu0 0.0
    %3155 = vmatpush1.xpose.msra.mxu0 %v3150
    %3156 = vmatprep.subr.mxu0 0.0
    %3157 = vmatpush1.xpose.msra.mxu0 0.0
    %3158 = vmatprep.subr.mxu0 0.0
    %3159 = vmatpush1.xpose.msra.mxu0 0.0
    %3160 = vmatprep.subr.mxu0 0.0
    %3161 = vmatpush1.xpose.msra.mxu0 0.0
    %3162 = vmatprep.subr.mxu0 0.0
    %3163 = vmatpush1.xpose.msra.mxu0 0.0
    %3164 = vmatprep.subr.mxu0 0.0
    %3165 = vmatpush1.xpose.msra.mxu0 0.0
    %3166 = vmatprep.subr.mxu0 0.0
    %3167 = vmatpush1.xpose.msra.mxu0 0.0
    %3168 = vmatprep.subr.mxu0 0.0
    %3169 = vmatpush1.xpose.msra.mxu0 0.0
    %3170 = vmatprep.subr.mxu0 0.0
    %3171 = vmatpush1.xpose.msra.mxu0 0.0
    %3172 = vmatprep.subr.mxu0 0.0
    %3173 = vmatpush1.xpose.msra.mxu0 0.0
    %3174 = vmatprep.subr.mxu0 0.0
    %3175 = vmatpush1.xpose.msra.mxu0 0.0
    %3176 = vmatprep.subr.mxu0 0.0
    %3177 = vmatpush1.xpose.msra.mxu0 0.0
    %3178 = vmatprep.subr.mxu0 0.0
    %3179 = vmatpush1.xpose.msra.mxu0 0.0
    %3180 = vmatprep.subr.mxu0 0.0
    %3181 = vmatpush1.xpose.msra.mxu0 0.0
    %3182 = vmatprep.subr.mxu0 0.0
    %3183 = vmatpush1.xpose.msra.mxu0 0.0
    %3184 = vmatprep.subr.mxu0 0.0
    %3185 = vmatpush1.xpose.msra.mxu0 0.0
    %3186 = vmatprep.subr.mxu0 0.0
    %3187 = vmatpush1.xpose.msra.mxu0 0.0
    %3188 = vmatprep.subr.mxu0 0.0
    %3189 = vmatpush1.xpose.msra.mxu0 0.0
    %3190 = vmatprep.subr.mxu0 0.0
    %3191 = vmatpush1.xpose.msra.mxu0 0.0
    %3192 = vmatprep.subr.mxu0 0.0
    %3193 = vmatpush1.xpose.msra.mxu0 0.0
    %3194 = vmatprep.subr.mxu0 0.0
    %3195 = vmatpush1.xpose.msra.mxu0 0.0
    %3196 = vmatprep.subr.mxu0 0.0
    %3197 = vmatpush1.xpose.msra.mxu0 0.0
    %3198 = vmatprep.subr.mxu0 0.0
    %3199 = vmatpush1.xpose.msra.mxu0 0.0
    %3200 = vmatprep.subr.mxu0 0.0
    %3201 = vmatpush1.xpose.msra.mxu0 0.0
    %3202 = vmatprep.subr.mxu0 0.0
    %3203 = vmatpush1.xpose.msra.mxu0 0.0
    %3204 = vmatprep.subr.mxu0 0.0
    %3205 = vmatpush1.xpose.msra.mxu0 0.0
    %3206 = vmatprep.subr.mxu0 0.0
    %3207 = vmatpush1.xpose.msra.mxu0 0.0
    %3208 = vmatprep.subr.mxu0 0.0
    %3209 = vmatpush1.xpose.msra.mxu0 0.0
    %3210 = vmatprep.subr.mxu0 0.0
    %3211 = vmatpush1.xpose.msra.mxu0 0.0
    %3212 = vmatprep.subr.mxu0 0.0
    %3213 = vmatpush1.xpose.msra.mxu0 0.0
    %3214 = vmatprep.subr.mxu0 0.0
    %3215 = vmatpush1.xpose.msra.mxu0 0.0
    %3216 = vmatprep.mubr.f32.mxu0 0.0
    %3217 = vmatmul.mubr.f32.gmra.mrb[0].mxu0 %v3144
    %v3218 = vpop.f32.mrb[0].mxu0
    %v3219 = vadd.f32 0.0, %v3218
    %v3220 = vpop.f32.mrb[0].mxu0
    %3221 = vmatprep.mubr.f32.mxu0 0.0
    %3222 = vmatmul.mubr.f32.gmra.mrb[0].mxu0 %v3146
    %v3223 = vpop.f32.mrb[0].mxu0
    %v3224 = vadd.f32 0.0, %v3223
    %v3225 = vpop.f32.mrb[0].mxu0
    %3226 = vdwg.mxu0
    %3227 = vrot.lane.b32.xlu0 %v2864, 96
    %v3228 = vpop.permute.xlu0 %3227
    %3229 = vrot.lane.b32.xlu0 %v2866, 96
    %v3230 = vpop.permute.xlu0 %3229
    %v3231 = vsel %vm265, %v2864, 0
    %v3233 = vsel %vm265, %v2866, 0
    %v3235 = vsel %vm265, %v3228, 0
    %v3237 = vsel %vm265, %v3230, 0
    %3239 = vmatprep.subr.mxu0 0.0
    %3240 = vmatpush1.xpose.msra.mxu0 %v3235
    %3241 = vmatprep.subr.mxu0 0.0
    %3242 = vmatpush1.xpose.msra.mxu0 %v3237
    %3243 = vmatprep.subr.mxu0 0.0
    %3244 = vmatpush1.xpose.msra.mxu0 0.0
    %3245 = vmatprep.subr.mxu0 0.0
    %3246 = vmatpush1.xpose.msra.mxu0 0.0
    %3247 = vmatprep.subr.mxu0 0.0
    %3248 = vmatpush1.xpose.msra.mxu0 0.0
    %3249 = vmatprep.subr.mxu0 0.0
    %3250 = vmatpush1.xpose.msra.mxu0 0.0
    %3251 = vmatprep.subr.mxu0 0.0
    %3252 = vmatpush1.xpose.msra.mxu0 0.0
    %3253 = vmatprep.subr.mxu0 0.0
    %3254 = vmatpush1.xpose.msra.mxu0 0.0
    %3255 = vmatprep.subr.mxu0 0.0
    %3256 = vmatpush1.xpose.msra.mxu0 0.0
    %3257 = vmatprep.subr.mxu0 0.0
    %3258 = vmatpush1.xpose.msra.mxu0 0.0
    %3259 = vmatprep.subr.mxu0 0.0
    %3260 = vmatpush1.xpose.msra.mxu0 0.0
    %3261 = vmatprep.subr.mxu0 0.0
    %3262 = vmatpush1.xpose.msra.mxu0 0.0
    %3263 = vmatprep.subr.mxu0 0.0
    %3264 = vmatpush1.xpose.msra.mxu0 0.0
    %3265 = vmatprep.subr.mxu0 0.0
    %3266 = vmatpush1.xpose.msra.mxu0 0.0
    %3267 = vmatprep.subr.mxu0 0.0
    %3268 = vmatpush1.xpose.msra.mxu0 0.0
    %3269 = vmatprep.subr.mxu0 0.0
    %3270 = vmatpush1.xpose.msra.mxu0 0.0
    %3271 = vmatprep.subr.mxu0 0.0
    %3272 = vmatpush1.xpose.msra.mxu0 0.0
    %3273 = vmatprep.subr.mxu0 0.0
    %3274 = vmatpush1.xpose.msra.mxu0 0.0
    %3275 = vmatprep.subr.mxu0 0.0
    %3276 = vmatpush1.xpose.msra.mxu0 0.0
    %3277 = vmatprep.subr.mxu0 0.0
    %3278 = vmatpush1.xpose.msra.mxu0 0.0
    %3279 = vmatprep.subr.mxu0 0.0
    %3280 = vmatpush1.xpose.msra.mxu0 0.0
    %3281 = vmatprep.subr.mxu0 0.0
    %3282 = vmatpush1.xpose.msra.mxu0 0.0
    %3283 = vmatprep.subr.mxu0 0.0
    %3284 = vmatpush1.xpose.msra.mxu0 0.0
    %3285 = vmatprep.subr.mxu0 0.0
    %3286 = vmatpush1.xpose.msra.mxu0 0.0
    %3287 = vmatprep.subr.mxu0 0.0
    %3288 = vmatpush1.xpose.msra.mxu0 0.0
    %3289 = vmatprep.subr.mxu0 0.0
    %3290 = vmatpush1.xpose.msra.mxu0 0.0
    %3291 = vmatprep.subr.mxu0 0.0
    %3292 = vmatpush1.xpose.msra.mxu0 0.0
    %3293 = vmatprep.subr.mxu0 0.0
    %3294 = vmatpush1.xpose.msra.mxu0 0.0
    %3295 = vmatprep.subr.mxu0 0.0
    %3296 = vmatpush1.xpose.msra.mxu0 0.0
    %3297 = vmatprep.subr.mxu0 0.0
    %3298 = vmatpush1.xpose.msra.mxu0 0.0
    %3299 = vmatprep.subr.mxu0 0.0
    %3300 = vmatpush1.xpose.msra.mxu0 0.0
    %3301 = vmatprep.subr.mxu0 0.0
    %3302 = vmatpush1.xpose.msra.mxu0 0.0
    %3303 = vmatprep.mubr.f32.mxu0 0.0
    %3304 = vmatmul.mubr.f32.gmra.mrb[0].mxu0 %v3231
    %v3305 = vpop.f32.mrb[0].mxu0
    %v3306 = vadd.f32 0.0, %v3305
    %v3307 = vpop.f32.mrb[0].mxu0
    %3308 = vmatprep.mubr.f32.mxu0 0.0
    %3309 = vmatmul.mubr.f32.gmra.mrb[0].mxu0 %v3233
    %v3310 = vpop.f32.mrb[0].mxu0
    %v3311 = vadd.f32 0.0, %v3310
    %v3312 = vpop.f32.mrb[0].mxu0
    %3313 = vdwg.mxu0
    %3314 = vrot.lane.b32.xlu0 %v2868, 96
    %v3315 = vpop.permute.xlu0 %3314
    %3316 = vrot.lane.b32.xlu0 %v2870, 96
    %v3317 = vpop.permute.xlu0 %3316
    %v3318 = vsel %vm265, %v2868, 0
    %v3320 = vsel %vm265, %v2870, 0
    %v3322 = vsel %vm265, %v3315, 0
    %v3324 = vsel %vm265, %v3317, 0
    %3326 = vmatprep.subr.mxu0 0.0
    %3327 = vmatpush1.xpose.msra.mxu0 %v3322
    %3328 = vmatprep.subr.mxu0 0.0
    %3329 = vmatpush1.xpose.msra.mxu0 %v3324
    %3330 = vmatprep.subr.mxu0 0.0
    %3331 = vmatpush1.xpose.msra.mxu0 0.0
    %3332 = vmatprep.subr.mxu0 0.0
    %3333 = vmatpush1.xpose.msra.mxu0 0.0
    %3334 = vmatprep.subr.mxu0 0.0
    %3335 = vmatpush1.xpose.msra.mxu0 0.0
    %3336 = vmatprep.subr.mxu0 0.0
    %3337 = vmatpush1.xpose.msra.mxu0 0.0
    %3338 = vmatprep.subr.mxu0 0.0
    %3339 = vmatpush1.xpose.msra.mxu0 0.0
    %3340 = vmatprep.subr.mxu0 0.0
    %3341 = vmatpush1.xpose.msra.mxu0 0.0
    %3342 = vmatprep.subr.mxu0 0.0
    %3343 = vmatpush1.xpose.msra.mxu0 0.0
    %3344 = vmatprep.subr.mxu0 0.0
    %3345 = vmatpush1.xpose.msra.mxu0 0.0
    %3346 = vmatprep.subr.mxu0 0.0
    %3347 = vmatpush1.xpose.msra.mxu0 0.0
    %3348 = vmatprep.subr.mxu0 0.0
    %3349 = vmatpush1.xpose.msra.mxu0 0.0
    %3350 = vmatprep.subr.mxu0 0.0
    %3351 = vmatpush1.xpose.msra.mxu0 0.0
    %3352 = vmatprep.subr.mxu0 0.0
    %3353 = vmatpush1.xpose.msra.mxu0 0.0
    %3354 = vmatprep.subr.mxu0 0.0
    %3355 = vmatpush1.xpose.msra.mxu0 0.0
    %3356 = vmatprep.subr.mxu0 0.0
    %3357 = vmatpush1.xpose.msra.mxu0 0.0
    %3358 = vmatprep.subr.mxu0 0.0
    %3359 = vmatpush1.xpose.msra.mxu0 0.0
    %3360 = vmatprep.subr.mxu0 0.0
    %3361 = vmatpush1.xpose.msra.mxu0 0.0
    %3362 = vmatprep.subr.mxu0 0.0
    %3363 = vmatpush1.xpose.msra.mxu0 0.0
    %3364 = vmatprep.subr.mxu0 0.0
    %3365 = vmatpush1.xpose.msra.mxu0 0.0
    %3366 = vmatprep.subr.mxu0 0.0
    %3367 = vmatpush1.xpose.msra.mxu0 0.0
    %3368 = vmatprep.subr.mxu0 0.0
    %3369 = vmatpush1.xpose.msra.mxu0 0.0
    %3370 = vmatprep.subr.mxu0 0.0
    %3371 = vmatpush1.xpose.msra.mxu0 0.0
    %3372 = vmatprep.subr.mxu0 0.0
    %3373 = vmatpush1.xpose.msra.mxu0 0.0
    %3374 = vmatprep.subr.mxu0 0.0
    %3375 = vmatpush1.xpose.msra.mxu0 0.0
    %3376 = vmatprep.subr.mxu0 0.0
    %3377 = vmatpush1.xpose.msra.mxu0 0.0
    %3378 = vmatprep.subr.mxu0 0.0
    %3379 = vmatpush1.xpose.msra.mxu0 0.0
    %3380 = vmatprep.subr.mxu0 0.0
    %3381 = vmatpush1.xpose.msra.mxu0 0.0
    %3382 = vmatprep.subr.mxu0 0.0
    %3383 = vmatpush1.xpose.msra.mxu0 0.0
    %3384 = vmatprep.subr.mxu0 0.0
    %3385 = vmatpush1.xpose.msra.mxu0 0.0
    %3386 = vmatprep.subr.mxu0 0.0
    %3387 = vmatpush1.xpose.msra.mxu0 0.0
    %3388 = vmatprep.subr.mxu0 0.0
    %3389 = vmatpush1.xpose.msra.mxu0 0.0
    %3390 = vmatprep.mubr.f32.mxu0 0.0
    %3391 = vmatmul.mubr.f32.gmra.mrb[0].mxu0 %v3318
    %v3392 = vpop.f32.mrb[0].mxu0
    %v3393 = vadd.f32 0.0, %v3392
    %v3394 = vpop.f32.mrb[0].mxu0
    %3395 = vmatprep.mubr.f32.mxu0 0.0
    %3396 = vmatmul.mubr.f32.gmra.mrb[0].mxu0 %v3320
    %v3397 = vpop.f32.mrb[0].mxu0
    %v3398 = vadd.f32 0.0, %v3397
    %v3399 = vpop.f32.mrb[0].mxu0
    %3400 = vdwg.mxu0
    %3401 = vrot.lane.b32.xlu0 %v2872, 96
    %v3402 = vpop.permute.xlu0 %3401
    %3403 = vrot.lane.b32.xlu0 %v2874, 96
    %v3404 = vpop.permute.xlu0 %3403
    %v3405 = vsel %vm265, %v2872, 0
    %v3407 = vsel %vm265, %v2874, 0
    %v3409 = vsel %vm265, %v3402, 0
    %v3411 = vsel %vm265, %v3404, 0
    %3413 = vmatprep.subr.mxu0 0.0
    %3414 = vmatpush1.xpose.msra.mxu0 %v3409
    %3415 = vmatprep.subr.mxu0 0.0
    %3416 = vmatpush1.xpose.msra.mxu0 %v3411
    %3417 = vmatprep.subr.mxu0 0.0
    %3418 = vmatpush1.xpose.msra.mxu0 0.0
    %3419 = vmatprep.subr.mxu0 0.0
    %3420 = vmatpush1.xpose.msra.mxu0 0.0
    %3421 = vmatprep.subr.mxu0 0.0
    %3422 = vmatpush1.xpose.msra.mxu0 0.0
    %3423 = vmatprep.subr.mxu0 0.0
    %3424 = vmatpush1.xpose.msra.mxu0 0.0
    %3425 = vmatprep.subr.mxu0 0.0
    %3426 = vmatpush1.xpose.msra.mxu0 0.0
    %3427 = vmatprep.subr.mxu0 0.0
    %3428 = vmatpush1.xpose.msra.mxu0 0.0
    %3429 = vmatprep.subr.mxu0 0.0
    %3430 = vmatpush1.xpose.msra.mxu0 0.0
    %3431 = vmatprep.subr.mxu0 0.0
    %3432 = vmatpush1.xpose.msra.mxu0 0.0
    %3433 = vmatprep.subr.mxu0 0.0
    %3434 = vmatpush1.xpose.msra.mxu0 0.0
    %3435 = vmatprep.subr.mxu0 0.0
    %3436 = vmatpush1.xpose.msra.mxu0 0.0
    %3437 = vmatprep.subr.mxu0 0.0
    %3438 = vmatpush1.xpose.msra.mxu0 0.0
    %3439 = vmatprep.subr.mxu0 0.0
    %3440 = vmatpush1.xpose.msra.mxu0 0.0
    %3441 = vmatprep.subr.mxu0 0.0
    %3442 = vmatpush1.xpose.msra.mxu0 0.0
    %3443 = vmatprep.subr.mxu0 0.0
    %3444 = vmatpush1.xpose.msra.mxu0 0.0
    %3445 = vmatprep.subr.mxu0 0.0
    %3446 = vmatpush1.xpose.msra.mxu0 0.0
    %3447 = vmatprep.subr.mxu0 0.0
    %3448 = vmatpush1.xpose.msra.mxu0 0.0
    %3449 = vmatprep.subr.mxu0 0.0
    %3450 = vmatpush1.xpose.msra.mxu0 0.0
    %3451 = vmatprep.subr.mxu0 0.0
    %3452 = vmatpush1.xpose.msra.mxu0 0.0
    %3453 = vmatprep.subr.mxu0 0.0
    %3454 = vmatpush1.xpose.msra.mxu0 0.0
    %3455 = vmatprep.subr.mxu0 0.0
    %3456 = vmatpush1.xpose.msra.mxu0 0.0
    %3457 = vmatprep.subr.mxu0 0.0
    %3458 = vmatpush1.xpose.msra.mxu0 0.0
    %3459 = vmatprep.subr.mxu0 0.0
    %3460 = vmatpush1.xpose.msra.mxu0 0.0
    %3461 = vmatprep.subr.mxu0 0.0
    %3462 = vmatpush1.xpose.msra.mxu0 0.0
    %3463 = vmatprep.subr.mxu0 0.0
    %3464 = vmatpush1.xpose.msra.mxu0 0.0
    %3465 = vmatprep.subr.mxu0 0.0
    %3466 = vmatpush1.xpose.msra.mxu0 0.0
    %3467 = vmatprep.subr.mxu0 0.0
    %3468 = vmatpush1.xpose.msra.mxu0 0.0
    %3469 = vmatprep.subr.mxu0 0.0
    %3470 = vmatpush1.xpose.msra.mxu0 0.0
    %3471 = vmatprep.subr.mxu0 0.0
    %3472 = vmatpush1.xpose.msra.mxu0 0.0
    %3473 = vmatprep.subr.mxu0 0.0
    %3474 = vmatpush1.xpose.msra.mxu0 0.0
    %3475 = vmatprep.subr.mxu0 0.0
    %3476 = vmatpush1.xpose.msra.mxu0 0.0
    %3477 = vmatprep.mubr.f32.mxu0 0.0
    %3478 = vmatmul.mubr.f32.gmra.mrb[0].mxu0 %v3405
    %v3479 = vpop.f32.mrb[0].mxu0
    %v3480 = vadd.f32 0.0, %v3479
    %v3481 = vpop.f32.mrb[0].mxu0
    %3482 = vmatprep.mubr.f32.mxu0 0.0
    %3483 = vmatmul.mubr.f32.gmra.mrb[0].mxu0 %v3407
    %v3484 = vpop.f32.mrb[0].mxu0
    %v3485 = vadd.f32 0.0, %v3484
    %v3486 = vpop.f32.mrb[0].mxu0
    %3487 = vdwg.mxu0
    %3488 = vrot.lane.b32.xlu0 %v2876, 96
    %v3489 = vpop.permute.xlu0 %3488
    %3490 = vrot.lane.b32.xlu0 %v2878, 96
    %v3491 = vpop.permute.xlu0 %3490
    %v3492 = vsel %vm265, %v2876, 0
    %v3494 = vsel %vm265, %v2878, 0
    %v3496 = vsel %vm265, %v3489, 0
    %v3498 = vsel %vm265, %v3491, 0
    %3500 = vmatprep.subr.mxu0 0.0
    %3501 = vmatpush1.xpose.msra.mxu0 %v3496
    %3502 = vmatprep.subr.mxu0 0.0
    %3503 = vmatpush1.xpose.msra.mxu0 %v3498
    %3504 = vmatprep.subr.mxu0 0.0
    %3505 = vmatpush1.xpose.msra.mxu0 0.0
    %3506 = vmatprep.subr.mxu0 0.0
    %3507 = vmatpush1.xpose.msra.mxu0 0.0
    %3508 = vmatprep.subr.mxu0 0.0
    %3509 = vmatpush1.xpose.msra.mxu0 0.0
    %3510 = vmatprep.subr.mxu0 0.0
    %3511 = vmatpush1.xpose.msra.mxu0 0.0
    %3512 = vmatprep.subr.mxu0 0.0
    %3513 = vmatpush1.xpose.msra.mxu0 0.0
    %3514 = vmatprep.subr.mxu0 0.0
    %3515 = vmatpush1.xpose.msra.mxu0 0.0
    %3516 = vmatprep.subr.mxu0 0.0
    %3517 = vmatpush1.xpose.msra.mxu0 0.0
    %3518 = vmatprep.subr.mxu0 0.0
    %3519 = vmatpush1.xpose.msra.mxu0 0.0
    %3520 = vmatprep.subr.mxu0 0.0
    %3521 = vmatpush1.xpose.msra.mxu0 0.0
    %3522 = vmatprep.subr.mxu0 0.0
    %3523 = vmatpush1.xpose.msra.mxu0 0.0
    %3524 = vmatprep.subr.mxu0 0.0
    %3525 = vmatpush1.xpose.msra.mxu0 0.0
    %3526 = vmatprep.subr.mxu0 0.0
    %3527 = vmatpush1.xpose.msra.mxu0 0.0
    %3528 = vmatprep.subr.mxu0 0.0
    %3529 = vmatpush1.xpose.msra.mxu0 0.0
    %3530 = vmatprep.subr.mxu0 0.0
    %3531 = vmatpush1.xpose.msra.mxu0 0.0
    %3532 = vmatprep.subr.mxu0 0.0
    %3533 = vmatpush1.xpose.msra.mxu0 0.0
    %3534 = vmatprep.subr.mxu0 0.0
    %3535 = vmatpush1.xpose.msra.mxu0 0.0
    %3536 = vmatprep.subr.mxu0 0.0
    %3537 = vmatpush1.xpose.msra.mxu0 0.0
    %3538 = vmatprep.subr.mxu0 0.0
    %3539 = vmatpush1.xpose.msra.mxu0 0.0
    %3540 = vmatprep.subr.mxu0 0.0
    %3541 = vmatpush1.xpose.msra.mxu0 0.0
    %3542 = vmatprep.subr.mxu0 0.0
    %3543 = vmatpush1.xpose.msra.mxu0 0.0
    %3544 = vmatprep.subr.mxu0 0.0
    %3545 = vmatpush1.xpose.msra.mxu0 0.0
    %3546 = vmatprep.subr.mxu0 0.0
    %3547 = vmatpush1.xpose.msra.mxu0 0.0
    %3548 = vmatprep.subr.mxu0 0.0
    %3549 = vmatpush1.xpose.msra.mxu0 0.0
    %3550 = vmatprep.subr.mxu0 0.0
    %3551 = vmatpush1.xpose.msra.mxu0 0.0
    %3552 = vmatprep.subr.mxu0 0.0
    %3553 = vmatpush1.xpose.msra.mxu0 0.0
    %3554 = vmatprep.subr.mxu0 0.0
    %3555 = vmatpush1.xpose.msra.mxu0 0.0
    %3556 = vmatprep.subr.mxu0 0.0
    %3557 = vmatpush1.xpose.msra.mxu0 0.0
    %3558 = vmatprep.subr.mxu0 0.0
    %3559 = vmatpush1.xpose.msra.mxu0 0.0
    %3560 = vmatprep.subr.mxu0 0.0
    %3561 = vmatpush1.xpose.msra.mxu0 0.0
    %3562 = vmatprep.subr.mxu0 0.0
    %3563 = vmatpush1.xpose.msra.mxu0 0.0
    %3564 = vmatprep.mubr.f32.mxu0 0.0
    %3565 = vmatmul.mubr.f32.gmra.mrb[0].mxu0 %v3492
    %v3566 = vpop.f32.mrb[0].mxu0
    %v3567 = vadd.f32 0.0, %v3566
    %v3568 = vpop.f32.mrb[0].mxu0
    %3569 = vmatprep.mubr.f32.mxu0 0.0
    %3570 = vmatmul.mubr.f32.gmra.mrb[0].mxu0 %v3494
    %v3571 = vpop.f32.mrb[0].mxu0
    %v3572 = vadd.f32 0.0, %v3571
    %v3573 = vpop.f32.mrb[0].mxu0
    %3574 = vdwg.mxu0
    %v3575 = vsel %vm958, %v2958, -inf
    %3576 = vmax.xlane.f32.xlu0 %v3575
    %v3577 = vpop.xlane.xlu0 %3576
    %v3578 = vsel %vm958, %v2963, -inf
    %3579 = vmax.xlane.f32.xlu0 %v3578
    %v3580 = vpop.xlane.xlu0 %3579
    %v3581 = vsel %vm958, %v3045, -inf
    %3582 = vmax.xlane.f32.xlu0 %v3581
    %v3583 = vpop.xlane.xlu0 %3582
    %v3584 = vsel %vm958, %v3050, -inf
    %3585 = vmax.xlane.f32.xlu0 %v3584
    %v3586 = vpop.xlane.xlu0 %3585
    %v3587 = vsel %vm958, %v3132, -inf
    %3588 = vmax.xlane.f32.xlu0 %v3587
    %v3589 = vpop.xlane.xlu0 %3588
    %v3590 = vsel %vm958, %v3137, -inf
    %3591 = vmax.xlane.f32.xlu0 %v3590
    %v3592 = vpop.xlane.xlu0 %3591
    %v3593 = vsel %vm958, %v3219, -inf
    %3594 = vmax.xlane.f32.xlu0 %v3593
    %v3595 = vpop.xlane.xlu0 %3594
    %v3596 = vsel %vm958, %v3224, -inf
    %3597 = vmax.xlane.f32.xlu0 %v3596
    %v3598 = vpop.xlane.xlu0 %3597
    %v3599 = vsel %vm958, %v3306, -inf
    %3600 = vmax.xlane.f32.xlu0 %v3599
    %v3601 = vpop.xlane.xlu0 %3600
    %v3602 = vsel %vm958, %v3311, -inf
    %3603 = vmax.xlane.f32.xlu0 %v3602
    %v3604 = vpop.xlane.xlu0 %3603
    %v3605 = vsel %vm958, %v3393, -inf
    %3606 = vmax.xlane.f32.xlu0 %v3605
    %v3607 = vpop.xlane.xlu0 %3606
    %v3608 = vsel %vm958, %v3398, -inf
    %3609 = vmax.xlane.f32.xlu0 %v3608
    %v3610 = vpop.xlane.xlu0 %3609
    %v3611 = vsel %vm958, %v3480, -inf
    %3612 = vmax.xlane.f32.xlu0 %v3611
    %v3613 = vpop.xlane.xlu0 %3612
    %v3614 = vsel %vm958, %v3485, -inf
    %3615 = vmax.xlane.f32.xlu0 %v3614
    %v3616 = vpop.xlane.xlu0 %3615
    %v3617 = vsel %vm958, %v3567, -inf
    %3618 = vmax.xlane.f32.xlu0 %v3617
    %v3619 = vpop.xlane.xlu0 %3618
    %v3620 = vsel %vm958, %v3572, -inf
    %3621 = vmax.xlane.f32.xlu0 %v3620
    %v3622 = vpop.xlane.xlu0 %3621
    %v3623 = vsub.f32 %v2958, %v3577
    %v3624 = vsub.f32 %v2963, %v3580
    %v3625 = vsub.f32 %v3045, %v3583
    %v3626 = vsub.f32 %v3050, %v3586
    %v3627 = vsub.f32 %v3132, %v3589
    %v3628 = vsub.f32 %v3137, %v3592
    %v3629 = vsub.f32 %v3219, %v3595
    %v3630 = vsub.f32 %v3224, %v3598
    %v3631 = vsub.f32 %v3306, %v3601
    %v3632 = vsub.f32 %v3311, %v3604
    %v3633 = vsub.f32 %v3393, %v3607
    %v3634 = vsub.f32 %v3398, %v3610
    %v3635 = vsub.f32 %v3480, %v3613
    %v3636 = vsub.f32 %v3485, %v3616
    %v3637 = vsub.f32 %v3567, %v3619
    %v3638 = vsub.f32 %v3572, %v3622
    %v3639 = vmul.f32 %v3623, 1.442695
    %v3640 = vpow.pop %v3639
    %v3641 = vmul.f32 %v3624, 1.442695
    %v3642 = vpow.pop %v3641
    %v3643 = vmul.f32 %v3625, 1.442695
    %v3644 = vpow.pop %v3643
    %v3645 = vmul.f32 %v3626, 1.442695
    %v3646 = vpow.pop %v3645
    %v3647 = vmul.f32 %v3627, 1.442695
    %v3648 = vpow.pop %v3647
    %v3649 = vmul.f32 %v3628, 1.442695
    %v3650 = vpow.pop %v3649
    %v3651 = vmul.f32 %v3629, 1.442695
    %v3652 = vpow.pop %v3651
    %v3653 = vmul.f32 %v3630, 1.442695
    %v3654 = vpow.pop %v3653
    %v3655 = vmul.f32 %v3631, 1.442695
    %v3656 = vpow.pop %v3655
    %v3657 = vmul.f32 %v3632, 1.442695
    %v3658 = vpow.pop %v3657
    %v3659 = vmul.f32 %v3633, 1.442695
    %v3660 = vpow.pop %v3659
    %v3661 = vmul.f32 %v3634, 1.442695
    %v3662 = vpow.pop %v3661
    %v3663 = vmul.f32 %v3635, 1.442695
    %v3664 = vpow.pop %v3663
    %v3665 = vmul.f32 %v3636, 1.442695
    %v3666 = vpow.pop %v3665
    %v3667 = vmul.f32 %v3637, 1.442695
    %v3668 = vpow.pop %v3667
    %v3669 = vmul.f32 %v3638, 1.442695
    %v3670 = vpow.pop %v3669
    %v3671 = vsel %vm958, %v3640, 0.0
    %3672 = vadd.xlane.f32.xlu0 %v3671
    %v3673 = vpop.xlane.xlu0 %3672
    %v3674 = vsel %vm958, %v3642, 0.0
    %3675 = vadd.xlane.f32.xlu0 %v3674
    %v3676 = vpop.xlane.xlu0 %3675
    %v3677 = vsel %vm958, %v3644, 0.0
    %3678 = vadd.xlane.f32.xlu0 %v3677
    %v3679 = vpop.xlane.xlu0 %3678
    %v3680 = vsel %vm958, %v3646, 0.0
    %3681 = vadd.xlane.f32.xlu0 %v3680
    %v3682 = vpop.xlane.xlu0 %3681
    %v3683 = vsel %vm958, %v3648, 0.0
    %3684 = vadd.xlane.f32.xlu0 %v3683
    %v3685 = vpop.xlane.xlu0 %3684
    %v3686 = vsel %vm958, %v3650, 0.0
    %3687 = vadd.xlane.f32.xlu0 %v3686
    %v3688 = vpop.xlane.xlu0 %3687
    %v3689 = vsel %vm958, %v3652, 0.0
    %3690 = vadd.xlane.f32.xlu0 %v3689
    %v3691 = vpop.xlane.xlu0 %3690
    %v3692 = vsel %vm958, %v3654, 0.0
    %3693 = vadd.xlane.f32.xlu0 %v3692
    %v3694 = vpop.xlane.xlu0 %3693
    %v3695 = vsel %vm958, %v3656, 0.0
    %3696 = vadd.xlane.f32.xlu0 %v3695
    %v3697 = vpop.xlane.xlu0 %3696
    %v3698 = vsel %vm958, %v3658, 0.0
    %3699 = vadd.xlane.f32.xlu0 %v3698
    %v3700 = vpop.xlane.xlu0 %3699
    %v3701 = vsel %vm958, %v3660, 0.0
    %3702 = vadd.xlane.f32.xlu0 %v3701
    %v3703 = vpop.xlane.xlu0 %3702
    %v3704 = vsel %vm958, %v3662, 0.0
    %3705 = vadd.xlane.f32.xlu0 %v3704
    %v3706 = vpop.xlane.xlu0 %3705
    %v3707 = vsel %vm958, %v3664, 0.0
    %3708 = vadd.xlane.f32.xlu0 %v3707
    %v3709 = vpop.xlane.xlu0 %3708
    %v3710 = vsel %vm958, %v3666, 0.0
    %3711 = vadd.xlane.f32.xlu0 %v3710
    %v3712 = vpop.xlane.xlu0 %3711
    %v3713 = vsel %vm958, %v3668, 0.0
    %3714 = vadd.xlane.f32.xlu0 %v3713
    %v3715 = vpop.xlane.xlu0 %3714
    %v3716 = vsel %vm958, %v3670, 0.0
    %3717 = vadd.xlane.f32.xlu0 %v3716
    %v3718 = vpop.xlane.xlu0 %3717
    %v3719 = vrcp.pop %v3673
    %v3720 = vrcp.pop %v3676
    %v3721 = vrcp.pop %v3679
    %v3722 = vrcp.pop %v3682
    %v3723 = vrcp.pop %v3685
    %v3724 = vrcp.pop %v3688
    %v3725 = vrcp.pop %v3691
    %v3726 = vrcp.pop %v3694
    %v3727 = vrcp.pop %v3697
    %v3728 = vrcp.pop %v3700
    %v3729 = vrcp.pop %v3703
    %v3730 = vrcp.pop %v3706
    %v3731 = vrcp.pop %v3709
    %v3732 = vrcp.pop %v3712
    %v3733 = vrcp.pop %v3715
    %v3734 = vrcp.pop %v3718
    %v3735 = vmul.f32 %v3640, %v3719
    %v3736 = vmul.f32 %v3642, %v3720
    %v3737 = vmul.f32 %v3644, %v3721
    %v3738 = vmul.f32 %v3646, %v3722
    %v3739 = vmul.f32 %v3648, %v3723
    %v3740 = vmul.f32 %v3650, %v3724
    %v3741 = vmul.f32 %v3652, %v3725
    %v3742 = vmul.f32 %v3654, %v3726
    %v3743 = vmul.f32 %v3656, %v3727
    %v3744 = vmul.f32 %v3658, %v3728
    %v3745 = vmul.f32 %v3660, %v3729
    %v3746 = vmul.f32 %v3662, %v3730
    %v3747 = vmul.f32 %v3664, %v3731
    %v3748 = vmul.f32 %v3666, %v3732
    %v3749 = vmul.f32 %v3668, %v3733
    %v3750 = vmul.f32 %v3670, %v3734
    %3751 = vrot.lane.b32.xlu0 %v2833, 64
    %v3752 = vpop.permute.xlu0 %3751
    %3753 = vrot.lane.b32.xlu0 %v2838, 64
    %v3754 = vpop.permute.xlu0 %3753
    %v3758 = vsel %vm958, %v3735, 0
    %v3761 = vsel %vm958, %v3736, 0
    %3763 = vmatprep.subr.mxu0 0.0
    %3764 = vmatpush1.msra.mxu0 %v3752
    %3765 = vmatprep.subr.mxu0 0.0
    %3766 = vmatpush1.msra.mxu0 %v3754
    %3767 = vmatprep.subr.mxu0 0.0
    %3768 = vmatpush1.msra.mxu0 0.0
    %3769 = vmatprep.subr.mxu0 0.0
    %3770 = vmatpush1.msra.mxu0 0.0
    %3771 = vmatprep.subr.mxu0 0.0
    %3772 = vmatpush1.msra.mxu0 0.0
    %3773 = vmatprep.subr.mxu0 0.0
    %3774 = vmatpush1.msra.mxu0 0.0
    %3775 = vmatprep.subr.mxu0 0.0
    %3776 = vmatpush1.msra.mxu0 0.0
    %3777 = vmatprep.subr.mxu0 0.0
    %3778 = vmatpush1.msra.mxu0 0.0
    %3779 = vmatprep.subr.mxu0 0.0
    %3780 = vmatpush1.msra.mxu0 0.0
    %3781 = vmatprep.subr.mxu0 0.0
    %3782 = vmatpush1.msra.mxu0 0.0
    %3783 = vmatprep.subr.mxu0 0.0
    %3784 = vmatpush1.msra.mxu0 0.0
    %3785 = vmatprep.subr.mxu0 0.0
    %3786 = vmatpush1.msra.mxu0 0.0
    %3787 = vmatprep.subr.mxu0 0.0
    %3788 = vmatpush1.msra.mxu0 0.0
    %3789 = vmatprep.subr.mxu0 0.0
    %3790 = vmatpush1.msra.mxu0 0.0
    %3791 = vmatprep.subr.mxu0 0.0
    %3792 = vmatpush1.msra.mxu0 0.0
    %3793 = vmatprep.subr.mxu0 0.0
    %3794 = vmatpush1.msra.mxu0 0.0
    %3795 = vmatprep.subr.mxu0 0.0
    %3796 = vmatpush1.msra.mxu0 0.0
    %3797 = vmatprep.subr.mxu0 0.0
    %3798 = vmatpush1.msra.mxu0 0.0
    %3799 = vmatprep.subr.mxu0 0.0
    %3800 = vmatpush1.msra.mxu0 0.0
    %3801 = vmatprep.subr.mxu0 0.0
    %3802 = vmatpush1.msra.mxu0 0.0
    %3803 = vmatprep.subr.mxu0 0.0
    %3804 = vmatpush1.msra.mxu0 0.0
    %3805 = vmatprep.subr.mxu0 0.0
    %3806 = vmatpush1.msra.mxu0 0.0
    %3807 = vmatprep.subr.mxu0 0.0
    %3808 = vmatpush1.msra.mxu0 0.0
    %3809 = vmatprep.subr.mxu0 0.0
    %3810 = vmatpush1.msra.mxu0 0.0
    %3811 = vmatprep.subr.mxu0 0.0
    %3812 = vmatpush1.msra.mxu0 0.0
    %3813 = vmatprep.subr.mxu0 0.0
    %3814 = vmatpush1.msra.mxu0 0.0
    %3815 = vmatprep.subr.mxu0 0.0
    %3816 = vmatpush1.msra.mxu0 0.0
    %3817 = vmatprep.subr.mxu0 0.0
    %3818 = vmatpush1.msra.mxu0 0.0
    %3819 = vmatprep.subr.mxu0 0.0
    %3820 = vmatpush1.msra.mxu0 0.0
    %3821 = vmatprep.subr.mxu0 0.0
    %3822 = vmatpush1.msra.mxu0 0.0
    %3823 = vmatprep.subr.mxu0 0.0
    %3824 = vmatpush1.msra.mxu0 0.0
    %3825 = vmatprep.subr.mxu0 0.0
    %3826 = vmatpush1.msra.mxu0 0.0
    %3827 = vmatprep.mubr.f32.mxu0 0.0
    %3828 = vmatmul.mubr.f32.gmra.mrb[0].mxu0 %v3758
    %v3829 = vpop.f32.mrb[0].mxu0
    %v3830 = vadd.f32 0.0, %v3829
    %v3831 = vpop.f32.mrb[0].mxu0
    %3832 = vmatprep.mubr.f32.mxu0 0.0
    %3833 = vmatmul.mubr.f32.gmra.mrb[0].mxu0 %v3761
    %v3834 = vpop.f32.mrb[0].mxu0
    %v3835 = vadd.f32 0.0, %v3834
    %v3836 = vpop.f32.mrb[0].mxu0
    %3837 = vdwg.mxu0
    %3838 = vrot.lane.b32.xlu0 %v2843, 64
    %v3839 = vpop.permute.xlu0 %3838
    %3840 = vrot.lane.b32.xlu0 %v2848, 64
    %v3841 = vpop.permute.xlu0 %3840
    %v3845 = vsel %vm958, %v3737, 0
    %v3848 = vsel %vm958, %v3738, 0
    %3850 = vmatprep.subr.mxu0 0.0
    %3851 = vmatpush1.msra.mxu0 %v3839
    %3852 = vmatprep.subr.mxu0 0.0
    %3853 = vmatpush1.msra.mxu0 %v3841
    %3854 = vmatprep.subr.mxu0 0.0
    %3855 = vmatpush1.msra.mxu0 0.0
    %3856 = vmatprep.subr.mxu0 0.0
    %3857 = vmatpush1.msra.mxu0 0.0
    %3858 = vmatprep.subr.mxu0 0.0
    %3859 = vmatpush1.msra.mxu0 0.0
    %3860 = vmatprep.subr.mxu0 0.0
    %3861 = vmatpush1.msra.mxu0 0.0
    %3862 = vmatprep.subr.mxu0 0.0
    %3863 = vmatpush1.msra.mxu0 0.0
    %3864 = vmatprep.subr.mxu0 0.0
    %3865 = vmatpush1.msra.mxu0 0.0
    %3866 = vmatprep.subr.mxu0 0.0
    %3867 = vmatpush1.msra.mxu0 0.0
    %3868 = vmatprep.subr.mxu0 0.0
    %3869 = vmatpush1.msra.mxu0 0.0
    %3870 = vmatprep.subr.mxu0 0.0
    %3871 = vmatpush1.msra.mxu0 0.0
    %3872 = vmatprep.subr.mxu0 0.0
    %3873 = vmatpush1.msra.mxu0 0.0
    %3874 = vmatprep.subr.mxu0 0.0
    %3875 = vmatpush1.msra.mxu0 0.0
    %3876 = vmatprep.subr.mxu0 0.0
    %3877 = vmatpush1.msra.mxu0 0.0
    %3878 = vmatprep.subr.mxu0 0.0
    %3879 = vmatpush1.msra.mxu0 0.0
    %3880 = vmatprep.subr.mxu0 0.0
    %3881 = vmatpush1.msra.mxu0 0.0
    %3882 = vmatprep.subr.mxu0 0.0
    %3883 = vmatpush1.msra.mxu0 0.0
    %3884 = vmatprep.subr.mxu0 0.0
    %3885 = vmatpush1.msra.mxu0 0.0
    %3886 = vmatprep.subr.mxu0 0.0
    %3887 = vmatpush1.msra.mxu0 0.0
    %3888 = vmatprep.subr.mxu0 0.0
    %3889 = vmatpush1.msra.mxu0 0.0
    %3890 = vmatprep.subr.mxu0 0.0
    %3891 = vmatpush1.msra.mxu0 0.0
    %3892 = vmatprep.subr.mxu0 0.0
    %3893 = vmatpush1.msra.mxu0 0.0
    %3894 = vmatprep.subr.mxu0 0.0
    %3895 = vmatpush1.msra.mxu0 0.0
    %3896 = vmatprep.subr.mxu0 0.0
    %3897 = vmatpush1.msra.mxu0 0.0
    %3898 = vmatprep.subr.mxu0 0.0
    %3899 = vmatpush1.msra.mxu0 0.0
    %3900 = vmatprep.subr.mxu0 0.0
    %3901 = vmatpush1.msra.mxu0 0.0
    %3902 = vmatprep.subr.mxu0 0.0
    %3903 = vmatpush1.msra.mxu0 0.0
    %3904 = vmatprep.subr.mxu0 0.0
    %3905 = vmatpush1.msra.mxu0 0.0
    %3906 = vmatprep.subr.mxu0 0.0
    %3907 = vmatpush1.msra.mxu0 0.0
    %3908 = vmatprep.subr.mxu0 0.0
    %3909 = vmatpush1.msra.mxu0 0.0
    %3910 = vmatprep.subr.mxu0 0.0
    %3911 = vmatpush1.msra.mxu0 0.0
    %3912 = vmatprep.subr.mxu0 0.0
    %3913 = vmatpush1.msra.mxu0 0.0
    %3914 = vmatprep.mubr.f32.mxu0 0.0
    %3915 = vmatmul.mubr.f32.gmra.mrb[0].mxu0 %v3845
    %v3916 = vpop.f32.mrb[0].mxu0
    %v3917 = vadd.f32 0.0, %v3916
    %v3918 = vpop.f32.mrb[0].mxu0
    %3919 = vmatprep.mubr.f32.mxu0 0.0
    %3920 = vmatmul.mubr.f32.gmra.mrb[0].mxu0 %v3848
    %v3921 = vpop.f32.mrb[0].mxu0
    %v3922 = vadd.f32 0.0, %v3921
    %v3923 = vpop.f32.mrb[0].mxu0
    %3924 = vdwg.mxu0
    %3925 = vrot.lane.b32.xlu0 %v2856, 64
    %v3926 = vpop.permute.xlu0 %3925
    %3927 = vrot.lane.b32.xlu0 %v2858, 64
    %v3928 = vpop.permute.xlu0 %3927
    %v3932 = vsel %vm958, %v3739, 0
    %v3935 = vsel %vm958, %v3740, 0
    %3937 = vmatprep.subr.mxu0 0.0
    %3938 = vmatpush1.msra.mxu0 %v3926
    %3939 = vmatprep.subr.mxu0 0.0
    %3940 = vmatpush1.msra.mxu0 %v3928
    %3941 = vmatprep.subr.mxu0 0.0
    %3942 = vmatpush1.msra.mxu0 0.0
    %3943 = vmatprep.subr.mxu0 0.0
    %3944 = vmatpush1.msra.mxu0 0.0
    %3945 = vmatprep.subr.mxu0 0.0
    %3946 = vmatpush1.msra.mxu0 0.0
    %3947 = vmatprep.subr.mxu0 0.0
    %3948 = vmatpush1.msra.mxu0 0.0
    %3949 = vmatprep.subr.mxu0 0.0
    %3950 = vmatpush1.msra.mxu0 0.0
    %3951 = vmatprep.subr.mxu0 0.0
    %3952 = vmatpush1.msra.mxu0 0.0
    %3953 = vmatprep.subr.mxu0 0.0
    %3954 = vmatpush1.msra.mxu0 0.0
    %3955 = vmatprep.subr.mxu0 0.0
    %3956 = vmatpush1.msra.mxu0 0.0
    %3957 = vmatprep.subr.mxu0 0.0
    %3958 = vmatpush1.msra.mxu0 0.0
    %3959 = vmatprep.subr.mxu0 0.0
    %3960 = vmatpush1.msra.mxu0 0.0
    %3961 = vmatprep.subr.mxu0 0.0
    %3962 = vmatpush1.msra.mxu0 0.0
    %3963 = vmatprep.subr.mxu0 0.0
    %3964 = vmatpush1.msra.mxu0 0.0
    %3965 = vmatprep.subr.mxu0 0.0
    %3966 = vmatpush1.msra.mxu0 0.0
    %3967 = vmatprep.subr.mxu0 0.0
    %3968 = vmatpush1.msra.mxu0 0.0
    %3969 = vmatprep.subr.mxu0 0.0
    %3970 = vmatpush1.msra.mxu0 0.0
    %3971 = vmatprep.subr.mxu0 0.0
    %3972 = vmatpush1.msra.mxu0 0.0
    %3973 = vmatprep.subr.mxu0 0.0
    %3974 = vmatpush1.msra.mxu0 0.0
    %3975 = vmatprep.subr.mxu0 0.0
    %3976 = vmatpush1.msra.mxu0 0.0
    %3977 = vmatprep.subr.mxu0 0.0
    %3978 = vmatpush1.msra.mxu0 0.0
    %3979 = vmatprep.subr.mxu0 0.0
    %3980 = vmatpush1.msra.mxu0 0.0
    %3981 = vmatprep.subr.mxu0 0.0
    %3982 = vmatpush1.msra.mxu0 0.0
    %3983 = vmatprep.subr.mxu0 0.0
    %3984 = vmatpush1.msra.mxu0 0.0
    %3985 = vmatprep.subr.mxu0 0.0
    %3986 = vmatpush1.msra.mxu0 0.0
    %3987 = vmatprep.subr.mxu0 0.0
    %3988 = vmatpush1.msra.mxu0 0.0
    %3989 = vmatprep.subr.mxu0 0.0
    %3990 = vmatpush1.msra.mxu0 0.0
    %3991 = vmatprep.subr.mxu0 0.0
    %3992 = vmatpush1.msra.mxu0 0.0
    %3993 = vmatprep.subr.mxu0 0.0
    %3994 = vmatpush1.msra.mxu0 0.0
    %3995 = vmatprep.subr.mxu0 0.0
    %3996 = vmatpush1.msra.mxu0 0.0
    %3997 = vmatprep.subr.mxu0 0.0
    %3998 = vmatpush1.msra.mxu0 0.0
    %3999 = vmatprep.subr.mxu0 0.0
    %4000 = vmatpush1.msra.mxu0 0.0
    %4001 = vmatprep.mubr.f32.mxu0 0.0
    %4002 = vmatmul.mubr.f32.gmra.mrb[0].mxu0 %v3932
    %v4003 = vpop.f32.mrb[0].mxu0
    %v4004 = vadd.f32 0.0, %v4003
    %v4005 = vpop.f32.mrb[0].mxu0
    %4006 = vmatprep.mubr.f32.mxu0 0.0
    %4007 = vmatmul.mubr.f32.gmra.mrb[0].mxu0 %v3935
    %v4008 = vpop.f32.mrb[0].mxu0
    %v4009 = vadd.f32 0.0, %v4008
    %v4010 = vpop.f32.mrb[0].mxu0
    %4011 = vdwg.mxu0
    %4012 = vrot.lane.b32.xlu0 %v2860, 64
    %v4013 = vpop.permute.xlu0 %4012
    %4014 = vrot.lane.b32.xlu0 %v2862, 64
    %v4015 = vpop.permute.xlu0 %4014
    %v4019 = vsel %vm958, %v3741, 0
    %v4022 = vsel %vm958, %v3742, 0
    %4024 = vmatprep.subr.mxu0 0.0
    %4025 = vmatpush1.msra.mxu0 %v4013
    %4026 = vmatprep.subr.mxu0 0.0
    %4027 = vmatpush1.msra.mxu0 %v4015
    %4028 = vmatprep.subr.mxu0 0.0
    %4029 = vmatpush1.msra.mxu0 0.0
    %4030 = vmatprep.subr.mxu0 0.0
    %4031 = vmatpush1.msra.mxu0 0.0
    %4032 = vmatprep.subr.mxu0 0.0
    %4033 = vmatpush1.msra.mxu0 0.0
    %4034 = vmatprep.subr.mxu0 0.0
    %4035 = vmatpush1.msra.mxu0 0.0
    %4036 = vmatprep.subr.mxu0 0.0
    %4037 = vmatpush1.msra.mxu0 0.0
    %4038 = vmatprep.subr.mxu0 0.0
    %4039 = vmatpush1.msra.mxu0 0.0
    %4040 = vmatprep.subr.mxu0 0.0
    %4041 = vmatpush1.msra.mxu0 0.0
    %4042 = vmatprep.subr.mxu0 0.0
    %4043 = vmatpush1.msra.mxu0 0.0
    %4044 = vmatprep.subr.mxu0 0.0
    %4045 = vmatpush1.msra.mxu0 0.0
    %4046 = vmatprep.subr.mxu0 0.0
    %4047 = vmatpush1.msra.mxu0 0.0
    %4048 = vmatprep.subr.mxu0 0.0
    %4049 = vmatpush1.msra.mxu0 0.0
    %4050 = vmatprep.subr.mxu0 0.0
    %4051 = vmatpush1.msra.mxu0 0.0
    %4052 = vmatprep.subr.mxu0 0.0
    %4053 = vmatpush1.msra.mxu0 0.0
    %4054 = vmatprep.subr.mxu0 0.0
    %4055 = vmatpush1.msra.mxu0 0.0
    %4056 = vmatprep.subr.mxu0 0.0
    %4057 = vmatpush1.msra.mxu0 0.0
    %4058 = vmatprep.subr.mxu0 0.0
    %4059 = vmatpush1.msra.mxu0 0.0
    %4060 = vmatprep.subr.mxu0 0.0
    %4061 = vmatpush1.msra.mxu0 0.0
    %4062 = vmatprep.subr.mxu0 0.0
    %4063 = vmatpush1.msra.mxu0 0.0
    %4064 = vmatprep.subr.mxu0 0.0
    %4065 = vmatpush1.msra.mxu0 0.0
    %4066 = vmatprep.subr.mxu0 0.0
    %4067 = vmatpush1.msra.mxu0 0.0
    %4068 = vmatprep.subr.mxu0 0.0
    %4069 = vmatpush1.msra.mxu0 0.0
    %4070 = vmatprep.subr.mxu0 0.0
    %4071 = vmatpush1.msra.mxu0 0.0
    %4072 = vmatprep.subr.mxu0 0.0
    %4073 = vmatpush1.msra.mxu0 0.0
    %4074 = vmatprep.subr.mxu0 0.0
    %4075 = vmatpush1.msra.mxu0 0.0
    %4076 = vmatprep.subr.mxu0 0.0
    %4077 = vmatpush1.msra.mxu0 0.0
    %4078 = vmatprep.subr.mxu0 0.0
    %4079 = vmatpush1.msra.mxu0 0.0
    %4080 = vmatprep.subr.mxu0 0.0
    %4081 = vmatpush1.msra.mxu0 0.0
    %4082 = vmatprep.subr.mxu0 0.0
    %4083 = vmatpush1.msra.mxu0 0.0
    %4084 = vmatprep.subr.mxu0 0.0
    %4085 = vmatpush1.msra.mxu0 0.0
    %4086 = vmatprep.subr.mxu0 0.0
    %4087 = vmatpush1.msra.mxu0 0.0
    %4088 = vmatprep.mubr.f32.mxu0 0.0
    %4089 = vmatmul.mubr.f32.gmra.mrb[0].mxu0 %v4019
    %v4090 = vpop.f32.mrb[0].mxu0
    %v4091 = vadd.f32 0.0, %v4090
    %v4092 = vpop.f32.mrb[0].mxu0
    %4093 = vmatprep.mubr.f32.mxu0 0.0
    %4094 = vmatmul.mubr.f32.gmra.mrb[0].mxu0 %v4022
    %v4095 = vpop.f32.mrb[0].mxu0
    %v4096 = vadd.f32 0.0, %v4095
    %v4097 = vpop.f32.mrb[0].mxu0
    %4098 = vdwg.mxu0
    %4099 = vrot.lane.b32.xlu0 %v2864, 64
    %v4100 = vpop.permute.xlu0 %4099
    %4101 = vrot.lane.b32.xlu0 %v2866, 64
    %v4102 = vpop.permute.xlu0 %4101
    %v4106 = vsel %vm958, %v3743, 0
    %v4109 = vsel %vm958, %v3744, 0
    %4111 = vmatprep.subr.mxu0 0.0
    %4112 = vmatpush1.msra.mxu0 %v4100
    %4113 = vmatprep.subr.mxu0 0.0
    %4114 = vmatpush1.msra.mxu0 %v4102
    %4115 = vmatprep.subr.mxu0 0.0
    %4116 = vmatpush1.msra.mxu0 0.0
    %4117 = vmatprep.subr.mxu0 0.0
    %4118 = vmatpush1.msra.mxu0 0.0
    %4119 = vmatprep.subr.mxu0 0.0
    %4120 = vmatpush1.msra.mxu0 0.0
    %4121 = vmatprep.subr.mxu0 0.0
    %4122 = vmatpush1.msra.mxu0 0.0
    %4123 = vmatprep.subr.mxu0 0.0
    %4124 = vmatpush1.msra.mxu0 0.0
    %4125 = vmatprep.subr.mxu0 0.0
    %4126 = vmatpush1.msra.mxu0 0.0
    %4127 = vmatprep.subr.mxu0 0.0
    %4128 = vmatpush1.msra.mxu0 0.0
    %4129 = vmatprep.subr.mxu0 0.0
    %4130 = vmatpush1.msra.mxu0 0.0
    %4131 = vmatprep.subr.mxu0 0.0
    %4132 = vmatpush1.msra.mxu0 0.0
    %4133 = vmatprep.subr.mxu0 0.0
    %4134 = vmatpush1.msra.mxu0 0.0
    %4135 = vmatprep.subr.mxu0 0.0
    %4136 = vmatpush1.msra.mxu0 0.0
    %4137 = vmatprep.subr.mxu0 0.0
    %4138 = vmatpush1.msra.mxu0 0.0
    %4139 = vmatprep.subr.mxu0 0.0
    %4140 = vmatpush1.msra.mxu0 0.0
    %4141 = vmatprep.subr.mxu0 0.0
    %4142 = vmatpush1.msra.mxu0 0.0
    %4143 = vmatprep.subr.mxu0 0.0
    %4144 = vmatpush1.msra.mxu0 0.0
    %4145 = vmatprep.subr.mxu0 0.0
    %4146 = vmatpush1.msra.mxu0 0.0
    %4147 = vmatprep.subr.mxu0 0.0
    %4148 = vmatpush1.msra.mxu0 0.0
    %4149 = vmatprep.subr.mxu0 0.0
    %4150 = vmatpush1.msra.mxu0 0.0
    %4151 = vmatprep.subr.mxu0 0.0
    %4152 = vmatpush1.msra.mxu0 0.0
    %4153 = vmatprep.subr.mxu0 0.0
    %4154 = vmatpush1.msra.mxu0 0.0
    %4155 = vmatprep.subr.mxu0 0.0
    %4156 = vmatpush1.msra.mxu0 0.0
    %4157 = vmatprep.subr.mxu0 0.0
    %4158 = vmatpush1.msra.mxu0 0.0
    %4159 = vmatprep.subr.mxu0 0.0
    %4160 = vmatpush1.msra.mxu0 0.0
    %4161 = vmatprep.subr.mxu0 0.0
    %4162 = vmatpush1.msra.mxu0 0.0
    %4163 = vmatprep.subr.mxu0 0.0
    %4164 = vmatpush1.msra.mxu0 0.0
    %4165 = vmatprep.subr.mxu0 0.0
    %4166 = vmatpush1.msra.mxu0 0.0
    %4167 = vmatprep.subr.mxu0 0.0
    %4168 = vmatpush1.msra.mxu0 0.0
    %4169 = vmatprep.subr.mxu0 0.0
    %4170 = vmatpush1.msra.mxu0 0.0
    %4171 = vmatprep.subr.mxu0 0.0
    %4172 = vmatpush1.msra.mxu0 0.0
    %4173 = vmatprep.subr.mxu0 0.0
    %4174 = vmatpush1.msra.mxu0 0.0
    %4175 = vmatprep.mubr.f32.mxu0 0.0
    %4176 = vmatmul.mubr.f32.gmra.mrb[0].mxu0 %v4106
    %v4177 = vpop.f32.mrb[0].mxu0
    %v4178 = vadd.f32 0.0, %v4177
    %v4179 = vpop.f32.mrb[0].mxu0
    %4180 = vmatprep.mubr.f32.mxu0 0.0
    %4181 = vmatmul.mubr.f32.gmra.mrb[0].mxu0 %v4109
    %v4182 = vpop.f32.mrb[0].mxu0
    %v4183 = vadd.f32 0.0, %v4182
    %v4184 = vpop.f32.mrb[0].mxu0
    %4185 = vdwg.mxu0
    %4186 = vrot.lane.b32.xlu0 %v2868, 64
    %v4187 = vpop.permute.xlu0 %4186
    %4188 = vrot.lane.b32.xlu0 %v2870, 64
    %v4189 = vpop.permute.xlu0 %4188
    %v4193 = vsel %vm958, %v3745, 0
    %v4196 = vsel %vm958, %v3746, 0
    %4198 = vmatprep.subr.mxu0 0.0
    %4199 = vmatpush1.msra.mxu0 %v4187
    %4200 = vmatprep.subr.mxu0 0.0
    %4201 = vmatpush1.msra.mxu0 %v4189
    %4202 = vmatprep.subr.mxu0 0.0
    %4203 = vmatpush1.msra.mxu0 0.0
    %4204 = vmatprep.subr.mxu0 0.0
    %4205 = vmatpush1.msra.mxu0 0.0
    %4206 = vmatprep.subr.mxu0 0.0
    %4207 = vmatpush1.msra.mxu0 0.0
    %4208 = vmatprep.subr.mxu0 0.0
    %4209 = vmatpush1.msra.mxu0 0.0
    %4210 = vmatprep.subr.mxu0 0.0
    %4211 = vmatpush1.msra.mxu0 0.0
    %4212 = vmatprep.subr.mxu0 0.0
    %4213 = vmatpush1.msra.mxu0 0.0
    %4214 = vmatprep.subr.mxu0 0.0
    %4215 = vmatpush1.msra.mxu0 0.0
    %4216 = vmatprep.subr.mxu0 0.0
    %4217 = vmatpush1.msra.mxu0 0.0
    %4218 = vmatprep.subr.mxu0 0.0
    %4219 = vmatpush1.msra.mxu0 0.0
    %4220 = vmatprep.subr.mxu0 0.0
    %4221 = vmatpush1.msra.mxu0 0.0
    %4222 = vmatprep.subr.mxu0 0.0
    %4223 = vmatpush1.msra.mxu0 0.0
    %4224 = vmatprep.subr.mxu0 0.0
    %4225 = vmatpush1.msra.mxu0 0.0
    %4226 = vmatprep.subr.mxu0 0.0
    %4227 = vmatpush1.msra.mxu0 0.0
    %4228 = vmatprep.subr.mxu0 0.0
    %4229 = vmatpush1.msra.mxu0 0.0
    %4230 = vmatprep.subr.mxu0 0.0
    %4231 = vmatpush1.msra.mxu0 0.0
    %4232 = vmatprep.subr.mxu0 0.0
    %4233 = vmatpush1.msra.mxu0 0.0
    %4234 = vmatprep.subr.mxu0 0.0
    %4235 = vmatpush1.msra.mxu0 0.0
    %4236 = vmatprep.subr.mxu0 0.0
    %4237 = vmatpush1.msra.mxu0 0.0
    %4238 = vmatprep.subr.mxu0 0.0
    %4239 = vmatpush1.msra.mxu0 0.0
    %4240 = vmatprep.subr.mxu0 0.0
    %4241 = vmatpush1.msra.mxu0 0.0
    %4242 = vmatprep.subr.mxu0 0.0
    %4243 = vmatpush1.msra.mxu0 0.0
    %4244 = vmatprep.subr.mxu0 0.0
    %4245 = vmatpush1.msra.mxu0 0.0
    %4246 = vmatprep.subr.mxu0 0.0
    %4247 = vmatpush1.msra.mxu0 0.0
    %4248 = vmatprep.subr.mxu0 0.0
    %4249 = vmatpush1.msra.mxu0 0.0
    %4250 = vmatprep.subr.mxu0 0.0
    %4251 = vmatpush1.msra.mxu0 0.0
    %4252 = vmatprep.subr.mxu0 0.0
    %4253 = vmatpush1.msra.mxu0 0.0
    %4254 = vmatprep.subr.mxu0 0.0
    %4255 = vmatpush1.msra.mxu0 0.0
    %4256 = vmatprep.subr.mxu0 0.0
    %4257 = vmatpush1.msra.mxu0 0.0
    %4258 = vmatprep.subr.mxu0 0.0
    %4259 = vmatpush1.msra.mxu0 0.0
    %4260 = vmatprep.subr.mxu0 0.0
    %4261 = vmatpush1.msra.mxu0 0.0
    %4262 = vmatprep.mubr.f32.mxu0 0.0
    %4263 = vmatmul.mubr.f32.gmra.mrb[0].mxu0 %v4193
    %v4264 = vpop.f32.mrb[0].mxu0
    %v4265 = vadd.f32 0.0, %v4264
    %v4266 = vpop.f32.mrb[0].mxu0
    %4267 = vmatprep.mubr.f32.mxu0 0.0
    %4268 = vmatmul.mubr.f32.gmra.mrb[0].mxu0 %v4196
    %v4269 = vpop.f32.mrb[0].mxu0
    %v4270 = vadd.f32 0.0, %v4269
    %v4271 = vpop.f32.mrb[0].mxu0
    %4272 = vdwg.mxu0
    %4273 = vrot.lane.b32.xlu0 %v2872, 64
    %v4274 = vpop.permute.xlu0 %4273
    %4275 = vrot.lane.b32.xlu0 %v2874, 64
    %v4276 = vpop.permute.xlu0 %4275
    %v4280 = vsel %vm958, %v3747, 0
    %v4283 = vsel %vm958, %v3748, 0
    %4285 = vmatprep.subr.mxu0 0.0
    %4286 = vmatpush1.msra.mxu0 %v4274
    %4287 = vmatprep.subr.mxu0 0.0
    %4288 = vmatpush1.msra.mxu0 %v4276
    %4289 = vmatprep.subr.mxu0 0.0
    %4290 = vmatpush1.msra.mxu0 0.0
    %4291 = vmatprep.subr.mxu0 0.0
    %4292 = vmatpush1.msra.mxu0 0.0
    %4293 = vmatprep.subr.mxu0 0.0
    %4294 = vmatpush1.msra.mxu0 0.0
    %4295 = vmatprep.subr.mxu0 0.0
    %4296 = vmatpush1.msra.mxu0 0.0
    %4297 = vmatprep.subr.mxu0 0.0
    %4298 = vmatpush1.msra.mxu0 0.0
    %4299 = vmatprep.subr.mxu0 0.0
    %4300 = vmatpush1.msra.mxu0 0.0
    %4301 = vmatprep.subr.mxu0 0.0
    %4302 = vmatpush1.msra.mxu0 0.0
    %4303 = vmatprep.subr.mxu0 0.0
    %4304 = vmatpush1.msra.mxu0 0.0
    %4305 = vmatprep.subr.mxu0 0.0
    %4306 = vmatpush1.msra.mxu0 0.0
    %4307 = vmatprep.subr.mxu0 0.0
    %4308 = vmatpush1.msra.mxu0 0.0
    %4309 = vmatprep.subr.mxu0 0.0
    %4310 = vmatpush1.msra.mxu0 0.0
    %4311 = vmatprep.subr.mxu0 0.0
    %4312 = vmatpush1.msra.mxu0 0.0
    %4313 = vmatprep.subr.mxu0 0.0
    %4314 = vmatpush1.msra.mxu0 0.0
    %4315 = vmatprep.subr.mxu0 0.0
    %4316 = vmatpush1.msra.mxu0 0.0
    %4317 = vmatprep.subr.mxu0 0.0
    %4318 = vmatpush1.msra.mxu0 0.0
    %4319 = vmatprep.subr.mxu0 0.0
    %4320 = vmatpush1.msra.mxu0 0.0
    %4321 = vmatprep.subr.mxu0 0.0
    %4322 = vmatpush1.msra.mxu0 0.0
    %4323 = vmatprep.subr.mxu0 0.0
    %4324 = vmatpush1.msra.mxu0 0.0
    %4325 = vmatprep.subr.mxu0 0.0
    %4326 = vmatpush1.msra.mxu0 0.0
    %4327 = vmatprep.subr.mxu0 0.0
    %4328 = vmatpush1.msra.mxu0 0.0
    %4329 = vmatprep.subr.mxu0 0.0
    %4330 = vmatpush1.msra.mxu0 0.0
    %4331 = vmatprep.subr.mxu0 0.0
    %4332 = vmatpush1.msra.mxu0 0.0
    %4333 = vmatprep.subr.mxu0 0.0
    %4334 = vmatpush1.msra.mxu0 0.0
    %4335 = vmatprep.subr.mxu0 0.0
    %4336 = vmatpush1.msra.mxu0 0.0
    %4337 = vmatprep.subr.mxu0 0.0
    %4338 = vmatpush1.msra.mxu0 0.0
    %4339 = vmatprep.subr.mxu0 0.0
    %4340 = vmatpush1.msra.mxu0 0.0
    %4341 = vmatprep.subr.mxu0 0.0
    %4342 = vmatpush1.msra.mxu0 0.0
    %4343 = vmatprep.subr.mxu0 0.0
    %4344 = vmatpush1.msra.mxu0 0.0
    %4345 = vmatprep.subr.mxu0 0.0
    %4346 = vmatpush1.msra.mxu0 0.0
    %4347 = vmatprep.subr.mxu0 0.0
    %4348 = vmatpush1.msra.mxu0 0.0
    %4349 = vmatprep.mubr.f32.mxu0 0.0
    %4350 = vmatmul.mubr.f32.gmra.mrb[0].mxu0 %v4280
    %v4351 = vpop.f32.mrb[0].mxu0
    %v4352 = vadd.f32 0.0, %v4351
    %v4353 = vpop.f32.mrb[0].mxu0
    %4354 = vmatprep.mubr.f32.mxu0 0.0
    %4355 = vmatmul.mubr.f32.gmra.mrb[0].mxu0 %v4283
    %v4356 = vpop.f32.mrb[0].mxu0
    %v4357 = vadd.f32 0.0, %v4356
    %v4358 = vpop.f32.mrb[0].mxu0
    %4359 = vdwg.mxu0
    %4360 = vrot.lane.b32.xlu0 %v2876, 64
    %v4361 = vpop.permute.xlu0 %4360
    %4362 = vrot.lane.b32.xlu0 %v2878, 64
    %v4363 = vpop.permute.xlu0 %4362
    %v4367 = vsel %vm958, %v3749, 0
    %v4370 = vsel %vm958, %v3750, 0
    %4372 = vmatprep.subr.mxu0 0.0
    %4373 = vmatpush1.msra.mxu0 %v4361
    %4374 = vmatprep.subr.mxu0 0.0
    %4375 = vmatpush1.msra.mxu0 %v4363
    %4376 = vmatprep.subr.mxu0 0.0
    %4377 = vmatpush1.msra.mxu0 0.0
    %4378 = vmatprep.subr.mxu0 0.0
    %4379 = vmatpush1.msra.mxu0 0.0
    %4380 = vmatprep.subr.mxu0 0.0
    %4381 = vmatpush1.msra.mxu0 0.0
    %4382 = vmatprep.subr.mxu0 0.0
    %4383 = vmatpush1.msra.mxu0 0.0
    %4384 = vmatprep.subr.mxu0 0.0
    %4385 = vmatpush1.msra.mxu0 0.0
    %4386 = vmatprep.subr.mxu0 0.0
    %4387 = vmatpush1.msra.mxu0 0.0
    %4388 = vmatprep.subr.mxu0 0.0
    %4389 = vmatpush1.msra.mxu0 0.0
    %4390 = vmatprep.subr.mxu0 0.0
    %4391 = vmatpush1.msra.mxu0 0.0
    %4392 = vmatprep.subr.mxu0 0.0
    %4393 = vmatpush1.msra.mxu0 0.0
    %4394 = vmatprep.subr.mxu0 0.0
    %4395 = vmatpush1.msra.mxu0 0.0
    %4396 = vmatprep.subr.mxu0 0.0
    %4397 = vmatpush1.msra.mxu0 0.0
    %4398 = vmatprep.subr.mxu0 0.0
    %4399 = vmatpush1.msra.mxu0 0.0
    %4400 = vmatprep.subr.mxu0 0.0
    %4401 = vmatpush1.msra.mxu0 0.0
    %4402 = vmatprep.subr.mxu0 0.0
    %4403 = vmatpush1.msra.mxu0 0.0
    %4404 = vmatprep.subr.mxu0 0.0
    %4405 = vmatpush1.msra.mxu0 0.0
    %4406 = vmatprep.subr.mxu0 0.0
    %4407 = vmatpush1.msra.mxu0 0.0
    %4408 = vmatprep.subr.mxu0 0.0
    %4409 = vmatpush1.msra.mxu0 0.0
    %4410 = vmatprep.subr.mxu0 0.0
    %4411 = vmatpush1.msra.mxu0 0.0
    %4412 = vmatprep.subr.mxu0 0.0
    %4413 = vmatpush1.msra.mxu0 0.0
    %4414 = vmatprep.subr.mxu0 0.0
    %4415 = vmatpush1.msra.mxu0 0.0
    %4416 = vmatprep.subr.mxu0 0.0
    %4417 = vmatpush1.msra.mxu0 0.0
    %4418 = vmatprep.subr.mxu0 0.0
    %4419 = vmatpush1.msra.mxu0 0.0
    %4420 = vmatprep.subr.mxu0 0.0
    %4421 = vmatpush1.msra.mxu0 0.0
    %4422 = vmatprep.subr.mxu0 0.0
    %4423 = vmatpush1.msra.mxu0 0.0
    %4424 = vmatprep.subr.mxu0 0.0
    %4425 = vmatpush1.msra.mxu0 0.0
    %4426 = vmatprep.subr.mxu0 0.0
    %4427 = vmatpush1.msra.mxu0 0.0
    %4428 = vmatprep.subr.mxu0 0.0
    %4429 = vmatpush1.msra.mxu0 0.0
    %4430 = vmatprep.subr.mxu0 0.0
    %4431 = vmatpush1.msra.mxu0 0.0
    %4432 = vmatprep.subr.mxu0 0.0
    %4433 = vmatpush1.msra.mxu0 0.0
    %4434 = vmatprep.subr.mxu0 0.0
    %4435 = vmatpush1.msra.mxu0 0.0
    %4436 = vmatprep.mubr.f32.mxu0 0.0
    %4437 = vmatmul.mubr.f32.gmra.mrb[0].mxu0 %v4367
    %v4438 = vpop.f32.mrb[0].mxu0
    %v4439 = vadd.f32 0.0, %v4438
    %v4440 = vpop.f32.mrb[0].mxu0
    %4441 = vmatprep.mubr.f32.mxu0 0.0
    %4442 = vmatmul.mubr.f32.gmra.mrb[0].mxu0 %v4370
    %v4443 = vpop.f32.mrb[0].mxu0
    %v4444 = vadd.f32 0.0, %v4443
    %v4445 = vpop.f32.mrb[0].mxu0
    %4446 = vdwg.mxu0
    %v4448 = vsel %vm265, %v3830, 0
    %v4451 = vsel %vm265, %v3835, 0
    %v4454 = vsel %vm265, %v3917, 0
    %v4457 = vsel %vm265, %v3922, 0
    %4459 = vmatprep.subr.mxu0 0.0
    %4460 = vmatpush1.msra.mxu0 %v2672
    %4461 = vmatprep.subr.mxu0 0.0
    %4462 = vmatpush1.msra.mxu0 0.0
    %4463 = vmatprep.subr.mxu0 0.0
    %4464 = vmatpush1.msra.mxu0 0.0
    %4465 = vmatprep.subr.mxu0 0.0
    %4466 = vmatpush1.msra.mxu0 0.0
    %4467 = vmatprep.subr.mxu0 0.0
    %4468 = vmatpush1.msra.mxu0 0.0
    %4469 = vmatprep.subr.mxu0 0.0
    %4470 = vmatpush1.msra.mxu0 0.0
    %4471 = vmatprep.subr.mxu0 0.0
    %4472 = vmatpush1.msra.mxu0 0.0
    %4473 = vmatprep.subr.mxu0 0.0
    %4474 = vmatpush1.msra.mxu0 0.0
    %4475 = vmatprep.subr.mxu0 0.0
    %4476 = vmatpush1.msra.mxu0 0.0
    %4477 = vmatprep.subr.mxu0 0.0
    %4478 = vmatpush1.msra.mxu0 0.0
    %4479 = vmatprep.subr.mxu0 0.0
    %4480 = vmatpush1.msra.mxu0 0.0
    %4481 = vmatprep.subr.mxu0 0.0
    %4482 = vmatpush1.msra.mxu0 0.0
    %4483 = vmatprep.subr.mxu0 0.0
    %4484 = vmatpush1.msra.mxu0 0.0
    %4485 = vmatprep.subr.mxu0 0.0
    %4486 = vmatpush1.msra.mxu0 0.0
    %4487 = vmatprep.subr.mxu0 0.0
    %4488 = vmatpush1.msra.mxu0 0.0
    %4489 = vmatprep.subr.mxu0 0.0
    %4490 = vmatpush1.msra.mxu0 0.0
    %4491 = vmatprep.subr.mxu0 0.0
    %4492 = vmatpush1.msra.mxu0 0.0
    %4493 = vmatprep.subr.mxu0 0.0
    %4494 = vmatpush1.msra.mxu0 0.0
    %4495 = vmatprep.subr.mxu0 0.0
    %4496 = vmatpush1.msra.mxu0 0.0
    %4497 = vmatprep.subr.mxu0 0.0
    %4498 = vmatpush1.msra.mxu0 0.0
    %4499 = vmatprep.subr.mxu0 0.0
    %4500 = vmatpush1.msra.mxu0 0.0
    %4501 = vmatprep.subr.mxu0 0.0
    %4502 = vmatpush1.msra.mxu0 0.0
    %4503 = vmatprep.subr.mxu0 0.0
    %4504 = vmatpush1.msra.mxu0 0.0
    %4505 = vmatprep.subr.mxu0 0.0
    %4506 = vmatpush1.msra.mxu0 0.0
    %4507 = vmatprep.subr.mxu0 0.0
    %4508 = vmatpush1.msra.mxu0 0.0
    %4509 = vmatprep.subr.mxu0 0.0
    %4510 = vmatpush1.msra.mxu0 0.0
    %4511 = vmatprep.subr.mxu0 0.0
    %4512 = vmatpush1.msra.mxu0 0.0
    %4513 = vmatprep.subr.mxu0 0.0
    %4514 = vmatpush1.msra.mxu0 0.0
    %4515 = vmatprep.subr.mxu0 0.0
    %4516 = vmatpush1.msra.mxu0 0.0
    %4517 = vmatprep.subr.mxu0 0.0
    %4518 = vmatpush1.msra.mxu0 0.0
    %4519 = vmatprep.subr.mxu0 0.0
    %4520 = vmatpush1.msra.mxu0 0.0
    %4521 = vmatprep.subr.mxu0 0.0
    %4522 = vmatpush1.msra.mxu0 0.0
    %4523 = vmatprep.mubr.f32.mxu0 0.0
    %4524 = vmatmul.mubr.f32.gmra.mrb[0].mxu0 %v4448
    %v4525 = vpop.f32.mrb[0].mxu0
    %v4526 = vadd.f32 0.0, %v4525
    %v4527 = vpop.f32.mrb[0].mxu0
    %4528 = vmatprep.mubr.f32.mxu0 0.0
    %4529 = vmatmul.mubr.f32.gmra.mrb[0].mxu0 %v4451
    %v4530 = vpop.f32.mrb[0].mxu0
    %v4531 = vadd.f32 0.0, %v4530
    %v4532 = vpop.f32.mrb[0].mxu0
    %4533 = vmatprep.mubr.f32.mxu0 0.0
    %4534 = vmatmul.mubr.f32.gmra.mrb[0].mxu0 %v4454
    %v4535 = vpop.f32.mrb[0].mxu0
    %v4536 = vadd.f32 0.0, %v4535
    %v4537 = vpop.f32.mrb[0].mxu0
    %4538 = vmatprep.mubr.f32.mxu0 0.0
    %4539 = vmatmul.mubr.f32.gmra.mrb[0].mxu0 %v4457
    %v4540 = vpop.f32.mrb[0].mxu0
    %v4541 = vadd.f32 0.0, %v4540
    %v4542 = vpop.f32.mrb[0].mxu0
    %4543 = vdwg.mxu0
    %v4545 = vsel %vm265, %v4004, 0
    %v4548 = vsel %vm265, %v4009, 0
    %v4551 = vsel %vm265, %v4091, 0
    %v4554 = vsel %vm265, %v4096, 0
    %4556 = vmatprep.subr.mxu0 0.0
    %4557 = vmatpush1.msra.mxu0 %v2673
    %4558 = vmatprep.subr.mxu0 0.0
    %4559 = vmatpush1.msra.mxu0 0.0
    %4560 = vmatprep.subr.mxu0 0.0
    %4561 = vmatpush1.msra.mxu0 0.0
    %4562 = vmatprep.subr.mxu0 0.0
    %4563 = vmatpush1.msra.mxu0 0.0
    %4564 = vmatprep.subr.mxu0 0.0
    %4565 = vmatpush1.msra.mxu0 0.0
    %4566 = vmatprep.subr.mxu0 0.0
    %4567 = vmatpush1.msra.mxu0 0.0
    %4568 = vmatprep.subr.mxu0 0.0
    %4569 = vmatpush1.msra.mxu0 0.0
    %4570 = vmatprep.subr.mxu0 0.0
    %4571 = vmatpush1.msra.mxu0 0.0
    %4572 = vmatprep.subr.mxu0 0.0
    %4573 = vmatpush1.msra.mxu0 0.0
    %4574 = vmatprep.subr.mxu0 0.0
    %4575 = vmatpush1.msra.mxu0 0.0
    %4576 = vmatprep.subr.mxu0 0.0
    %4577 = vmatpush1.msra.mxu0 0.0
    %4578 = vmatprep.subr.mxu0 0.0
    %4579 = vmatpush1.msra.mxu0 0.0
    %4580 = vmatprep.subr.mxu0 0.0
    %4581 = vmatpush1.msra.mxu0 0.0
    %4582 = vmatprep.subr.mxu0 0.0
    %4583 = vmatpush1.msra.mxu0 0.0
    %4584 = vmatprep.subr.mxu0 0.0
    %4585 = vmatpush1.msra.mxu0 0.0
    %4586 = vmatprep.subr.mxu0 0.0
    %4587 = vmatpush1.msra.mxu0 0.0
    %4588 = vmatprep.subr.mxu0 0.0
    %4589 = vmatpush1.msra.mxu0 0.0
    %4590 = vmatprep.subr.mxu0 0.0
    %4591 = vmatpush1.msra.mxu0 0.0
    %4592 = vmatprep.subr.mxu0 0.0
    %4593 = vmatpush1.msra.mxu0 0.0
    %4594 = vmatprep.subr.mxu0 0.0
    %4595 = vmatpush1.msra.mxu0 0.0
    %4596 = vmatprep.subr.mxu0 0.0
    %4597 = vmatpush1.msra.mxu0 0.0
    %4598 = vmatprep.subr.mxu0 0.0
    %4599 = vmatpush1.msra.mxu0 0.0
    %4600 = vmatprep.subr.mxu0 0.0
    %4601 = vmatpush1.msra.mxu0 0.0
    %4602 = vmatprep.subr.mxu0 0.0
    %4603 = vmatpush1.msra.mxu0 0.0
    %4604 = vmatprep.subr.mxu0 0.0
    %4605 = vmatpush1.msra.mxu0 0.0
    %4606 = vmatprep.subr.mxu0 0.0
    %4607 = vmatpush1.msra.mxu0 0.0
    %4608 = vmatprep.subr.mxu0 0.0
    %4609 = vmatpush1.msra.mxu0 0.0
    %4610 = vmatprep.subr.mxu0 0.0
    %4611 = vmatpush1.msra.mxu0 0.0
    %4612 = vmatprep.subr.mxu0 0.0
    %4613 = vmatpush1.msra.mxu0 0.0
    %4614 = vmatprep.subr.mxu0 0.0
    %4615 = vmatpush1.msra.mxu0 0.0
    %4616 = vmatprep.subr.mxu0 0.0
    %4617 = vmatpush1.msra.mxu0 0.0
    %4618 = vmatprep.subr.mxu0 0.0
    %4619 = vmatpush1.msra.mxu0 0.0
    %4620 = vmatprep.mubr.f32.mxu0 0.0
    %4621 = vmatmul.mubr.f32.gmra.mrb[0].mxu0 %v4545
    %v4622 = vpop.f32.mrb[0].mxu0
    %v4623 = vadd.f32 0.0, %v4622
    %v4624 = vpop.f32.mrb[0].mxu0
    %4625 = vmatprep.mubr.f32.mxu0 0.0
    %4626 = vmatmul.mubr.f32.gmra.mrb[0].mxu0 %v4548
    %v4627 = vpop.f32.mrb[0].mxu0
    %v4628 = vadd.f32 0.0, %v4627
    %v4629 = vpop.f32.mrb[0].mxu0
    %4630 = vmatprep.mubr.f32.mxu0 0.0
    %4631 = vmatmul.mubr.f32.gmra.mrb[0].mxu0 %v4551
    %v4632 = vpop.f32.mrb[0].mxu0
    %v4633 = vadd.f32 0.0, %v4632
    %v4634 = vpop.f32.mrb[0].mxu0
    %4635 = vmatprep.mubr.f32.mxu0 0.0
    %4636 = vmatmul.mubr.f32.gmra.mrb[0].mxu0 %v4554
    %v4637 = vpop.f32.mrb[0].mxu0
    %v4638 = vadd.f32 0.0, %v4637
    %v4639 = vpop.f32.mrb[0].mxu0
    %4640 = vdwg.mxu0
    %v4642 = vsel %vm265, %v4178, 0
    %v4645 = vsel %vm265, %v4183, 0
    %v4648 = vsel %vm265, %v4265, 0
    %v4651 = vsel %vm265, %v4270, 0
    %4653 = vmatprep.subr.mxu0 0.0
    %4654 = vmatpush1.msra.mxu0 %v2674
    %4655 = vmatprep.subr.mxu0 0.0
    %4656 = vmatpush1.msra.mxu0 0.0
    %4657 = vmatprep.subr.mxu0 0.0
    %4658 = vmatpush1.msra.mxu0 0.0
    %4659 = vmatprep.subr.mxu0 0.0
    %4660 = vmatpush1.msra.mxu0 0.0
    %4661 = vmatprep.subr.mxu0 0.0
    %4662 = vmatpush1.msra.mxu0 0.0
    %4663 = vmatprep.subr.mxu0 0.0
    %4664 = vmatpush1.msra.mxu0 0.0
    %4665 = vmatprep.subr.mxu0 0.0
    %4666 = vmatpush1.msra.mxu0 0.0
    %4667 = vmatprep.subr.mxu0 0.0
    %4668 = vmatpush1.msra.mxu0 0.0
    %4669 = vmatprep.subr.mxu0 0.0
    %4670 = vmatpush1.msra.mxu0 0.0
    %4671 = vmatprep.subr.mxu0 0.0
    %4672 = vmatpush1.msra.mxu0 0.0
    %4673 = vmatprep.subr.mxu0 0.0
    %4674 = vmatpush1.msra.mxu0 0.0
    %4675 = vmatprep.subr.mxu0 0.0
    %4676 = vmatpush1.msra.mxu0 0.0
    %4677 = vmatprep.subr.mxu0 0.0
    %4678 = vmatpush1.msra.mxu0 0.0
    %4679 = vmatprep.subr.mxu0 0.0
    %4680 = vmatpush1.msra.mxu0 0.0
    %4681 = vmatprep.subr.mxu0 0.0
    %4682 = vmatpush1.msra.mxu0 0.0
    %4683 = vmatprep.subr.mxu0 0.0
    %4684 = vmatpush1.msra.mxu0 0.0
    %4685 = vmatprep.subr.mxu0 0.0
    %4686 = vmatpush1.msra.mxu0 0.0
    %4687 = vmatprep.subr.mxu0 0.0
    %4688 = vmatpush1.msra.mxu0 0.0
    %4689 = vmatprep.subr.mxu0 0.0
    %4690 = vmatpush1.msra.mxu0 0.0
    %4691 = vmatprep.subr.mxu0 0.0
    %4692 = vmatpush1.msra.mxu0 0.0
    %4693 = vmatprep.subr.mxu0 0.0
    %4694 = vmatpush1.msra.mxu0 0.0
    %4695 = vmatprep.subr.mxu0 0.0
    %4696 = vmatpush1.msra.mxu0 0.0
    %4697 = vmatprep.subr.mxu0 0.0
    %4698 = vmatpush1.msra.mxu0 0.0
    %4699 = vmatprep.subr.mxu0 0.0
    %4700 = vmatpush1.msra.mxu0 0.0
    %4701 = vmatprep.subr.mxu0 0.0
    %4702 = vmatpush1.msra.mxu0 0.0
    %4703 = vmatprep.subr.mxu0 0.0
    %4704 = vmatpush1.msra.mxu0 0.0
    %4705 = vmatprep.subr.mxu0 0.0
    %4706 = vmatpush1.msra.mxu0 0.0
    %4707 = vmatprep.subr.mxu0 0.0
    %4708 = vmatpush1.msra.mxu0 0.0
    %4709 = vmatprep.subr.mxu0 0.0
    %4710 = vmatpush1.msra.mxu0 0.0
    %4711 = vmatprep.subr.mxu0 0.0
    %4712 = vmatpush1.msra.mxu0 0.0
    %4713 = vmatprep.subr.mxu0 0.0
    %4714 = vmatpush1.msra.mxu0 0.0
    %4715 = vmatprep.subr.mxu0 0.0
    %4716 = vmatpush1.msra.mxu0 0.0
    %4717 = vmatprep.mubr.f32.mxu0 0.0
    %4718 = vmatmul.mubr.f32.gmra.mrb[0].mxu0 %v4642
    %v4719 = vpop.f32.mrb[0].mxu0
    %v4720 = vadd.f32 0.0, %v4719
    %v4721 = vpop.f32.mrb[0].mxu0
    %4722 = vmatprep.mubr.f32.mxu0 0.0
    %4723 = vmatmul.mubr.f32.gmra.mrb[0].mxu0 %v4645
    %v4724 = vpop.f32.mrb[0].mxu0
    %v4725 = vadd.f32 0.0, %v4724
    %v4726 = vpop.f32.mrb[0].mxu0
    %4727 = vmatprep.mubr.f32.mxu0 0.0
    %4728 = vmatmul.mubr.f32.gmra.mrb[0].mxu0 %v4648
    %v4729 = vpop.f32.mrb[0].mxu0
    %v4730 = vadd.f32 0.0, %v4729
    %v4731 = vpop.f32.mrb[0].mxu0
    %4732 = vmatprep.mubr.f32.mxu0 0.0
    %4733 = vmatmul.mubr.f32.gmra.mrb[0].mxu0 %v4651
    %v4734 = vpop.f32.mrb[0].mxu0
    %v4735 = vadd.f32 0.0, %v4734
    %v4736 = vpop.f32.mrb[0].mxu0
    %4737 = vdwg.mxu0
    %v4739 = vsel %vm265, %v4352, 0
    %v4742 = vsel %vm265, %v4357, 0
    %v4745 = vsel %vm265, %v4439, 0
    %v4748 = vsel %vm265, %v4444, 0
    %4750 = vmatprep.subr.mxu0 0.0
    %4751 = vmatpush1.msra.mxu0 %v2675
    %4752 = vmatprep.subr.mxu0 0.0
    %4753 = vmatpush1.msra.mxu0 0.0
    %4754 = vmatprep.subr.mxu0 0.0
    %4755 = vmatpush1.msra.mxu0 0.0
    %4756 = vmatprep.subr.mxu0 0.0
    %4757 = vmatpush1.msra.mxu0 0.0
    %4758 = vmatprep.subr.mxu0 0.0
    %4759 = vmatpush1.msra.mxu0 0.0
    %4760 = vmatprep.subr.mxu0 0.0
    %4761 = vmatpush1.msra.mxu0 0.0
    %4762 = vmatprep.subr.mxu0 0.0
    %4763 = vmatpush1.msra.mxu0 0.0
    %4764 = vmatprep.subr.mxu0 0.0
    %4765 = vmatpush1.msra.mxu0 0.0
    %4766 = vmatprep.subr.mxu0 0.0
    %4767 = vmatpush1.msra.mxu0 0.0
    %4768 = vmatprep.subr.mxu0 0.0
    %4769 = vmatpush1.msra.mxu0 0.0
    %4770 = vmatprep.subr.mxu0 0.0
    %4771 = vmatpush1.msra.mxu0 0.0
    %4772 = vmatprep.subr.mxu0 0.0
    %4773 = vmatpush1.msra.mxu0 0.0
    %4774 = vmatprep.subr.mxu0 0.0
    %4775 = vmatpush1.msra.mxu0 0.0
    %4776 = vmatprep.subr.mxu0 0.0
    %4777 = vmatpush1.msra.mxu0 0.0
    %4778 = vmatprep.subr.mxu0 0.0
    %4779 = vmatpush1.msra.mxu0 0.0
    %4780 = vmatprep.subr.mxu0 0.0
    %4781 = vmatpush1.msra.mxu0 0.0
    %4782 = vmatprep.subr.mxu0 0.0
    %4783 = vmatpush1.msra.mxu0 0.0
    %4784 = vmatprep.subr.mxu0 0.0
    %4785 = vmatpush1.msra.mxu0 0.0
    %4786 = vmatprep.subr.mxu0 0.0
    %4787 = vmatpush1.msra.mxu0 0.0
    %4788 = vmatprep.subr.mxu0 0.0
    %4789 = vmatpush1.msra.mxu0 0.0
    %4790 = vmatprep.subr.mxu0 0.0
    %4791 = vmatpush1.msra.mxu0 0.0
    %4792 = vmatprep.subr.mxu0 0.0
    %4793 = vmatpush1.msra.mxu0 0.0
    %4794 = vmatprep.subr.mxu0 0.0
    %4795 = vmatpush1.msra.mxu0 0.0
    %4796 = vmatprep.subr.mxu0 0.0
    %4797 = vmatpush1.msra.mxu0 0.0
    %4798 = vmatprep.subr.mxu0 0.0
    %4799 = vmatpush1.msra.mxu0 0.0
    %4800 = vmatprep.subr.mxu0 0.0
    %4801 = vmatpush1.msra.mxu0 0.0
    %4802 = vmatprep.subr.mxu0 0.0
    %4803 = vmatpush1.msra.mxu0 0.0
    %4804 = vmatprep.subr.mxu0 0.0
    %4805 = vmatpush1.msra.mxu0 0.0
    %4806 = vmatprep.subr.mxu0 0.0
    %4807 = vmatpush1.msra.mxu0 0.0
    %4808 = vmatprep.subr.mxu0 0.0
    %4809 = vmatpush1.msra.mxu0 0.0
    %4810 = vmatprep.subr.mxu0 0.0
    %4811 = vmatpush1.msra.mxu0 0.0
    %4812 = vmatprep.subr.mxu0 0.0
    %4813 = vmatpush1.msra.mxu0 0.0
    %4814 = vmatprep.mubr.f32.mxu0 0.0
    %4815 = vmatmul.mubr.f32.gmra.mrb[0].mxu0 %v4739
    %v4816 = vpop.f32.mrb[0].mxu0
    %v4817 = vadd.f32 0.0, %v4816
    %v4818 = vpop.f32.mrb[0].mxu0
    %4819 = vmatprep.mubr.f32.mxu0 0.0
    %4820 = vmatmul.mubr.f32.gmra.mrb[0].mxu0 %v4742
    %v4821 = vpop.f32.mrb[0].mxu0
    %v4822 = vadd.f32 0.0, %v4821
    %v4823 = vpop.f32.mrb[0].mxu0
    %4824 = vmatprep.mubr.f32.mxu0 0.0
    %4825 = vmatmul.mubr.f32.gmra.mrb[0].mxu0 %v4745
    %v4826 = vpop.f32.mrb[0].mxu0
    %v4827 = vadd.f32 0.0, %v4826
    %v4828 = vpop.f32.mrb[0].mxu0
    %4829 = vmatprep.mubr.f32.mxu0 0.0
    %4830 = vmatmul.mubr.f32.gmra.mrb[0].mxu0 %v4748
    %v4831 = vpop.f32.mrb[0].mxu0
    %v4832 = vadd.f32 0.0, %v4831
    %v4833 = vpop.f32.mrb[0].mxu0
    %4834 = vdwg.mxu0
    %v4835 = vsel %vm99, %v4526, 0.0
    %v4836 = vsel %vm99, %v4623, 0.0
    %v4837 = vadd.f32 %v4835, %v4836
    %v4838 = vsel %vm99, %v4720, 0.0
    %v4839 = vadd.f32 %v4837, %v4838
    %v4840 = vsel %vm99, %v4817, 0.0
    %v4841 = vadd.f32 %v4839, %v4840
    %v4842 = vsel %vm99, %v4531, 0.0
    %v4843 = vsel %vm99, %v4628, 0.0
    %v4844 = vadd.f32 %v4842, %v4843
    %v4845 = vsel %vm99, %v4725, 0.0
    %v4846 = vadd.f32 %v4844, %v4845
    %v4847 = vsel %vm99, %v4822, 0.0
    %v4848 = vadd.f32 %v4846, %v4847
    %v4849 = vsel %vm99, %v4536, 0.0
    %v4850 = vsel %vm99, %v4633, 0.0
    %v4851 = vadd.f32 %v4849, %v4850
    %v4852 = vsel %vm99, %v4730, 0.0
    %v4853 = vadd.f32 %v4851, %v4852
    %v4854 = vsel %vm99, %v4827, 0.0
    %v4855 = vadd.f32 %v4853, %v4854
    %v4856 = vsel %vm99, %v4541, 0.0
    %v4857 = vsel %vm99, %v4638, 0.0
    %v4858 = vadd.f32 %v4856, %v4857
    %v4859 = vsel %vm99, %v4735, 0.0
    %v4860 = vadd.f32 %v4858, %v4859
    %v4861 = vsel %vm99, %v4832, 0.0
    %v4862 = vadd.f32 %v4860, %v4861
    %v4864 = vlaneseq
    %v4865 = vshrl.u32 %v4864, 7
    %v4866 = vsub.s32 0, %v4865
    %v4867 = vrot.slane %v2677, %v4866
    %v4869 = vadd.f32 %v4841, %v4867
    %v4870 = vadd.f32 %v4848, %v4867
    %v4871 = vadd.f32 %v4855, %v4867
    %v4872 = vadd.f32 %v4862, %v4867
    %v4873 = vadd.f32 %v2652, %v4869
    %v4874 = vadd.f32 %v2653, %v4870
    %v4875 = vadd.f32 %v2654, %v4871
    %v4876 = vadd.f32 %v2655, %v4872
    %v4877 = vsel %vm99, %v4873, 0.0
    %4878 = vadd.xlane.f32.xlu0 %v4877
    %v4879 = vpop.xlane.xlu0 %4878
    %v4880 = vsel %vm99, %v4874, 0.0
    %4881 = vadd.xlane.f32.xlu0 %v4880
    %v4882 = vpop.xlane.xlu0 %4881
    %v4883 = vsel %vm99, %v4875, 0.0
    %4884 = vadd.xlane.f32.xlu0 %v4883
    %v4885 = vpop.xlane.xlu0 %4884
    %v4886 = vsel %vm99, %v4876, 0.0
    %4887 = vadd.xlane.f32.xlu0 %v4886
    %v4888 = vpop.xlane.xlu0 %4887
    %v4889 = vmul.f32 %v4879, %v2273
    %v4890 = vmul.f32 %v4882, %v2273
    %v4891 = vmul.f32 %v4885, %v2273
    %v4892 = vmul.f32 %v4888, %v2273
    %v4893 = vsub.f32 %v4873, %v4889
    %v4894 = vsub.f32 %v4874, %v4890
    %v4895 = vsub.f32 %v4875, %v4891
    %v4896 = vsub.f32 %v4876, %v4892
    %v4897 = vmul.f32 %v4893, %v4893
    %v4898 = vmul.f32 %v4894, %v4894
    %v4899 = vmul.f32 %v4895, %v4895
    %v4900 = vmul.f32 %v4896, %v4896
    %v4901 = vsel %vm99, %v4897, 0.0
    %4902 = vadd.xlane.f32.xlu0 %v4901
    %v4903 = vpop.xlane.xlu0 %4902
    %v4904 = vsel %vm99, %v4898, 0.0
    %4905 = vadd.xlane.f32.xlu0 %v4904
    %v4906 = vpop.xlane.xlu0 %4905
    %v4907 = vsel %vm99, %v4899, 0.0
    %4908 = vadd.xlane.f32.xlu0 %v4907
    %v4909 = vpop.xlane.xlu0 %4908
    %v4910 = vsel %vm99, %v4900, 0.0
    %4911 = vadd.xlane.f32.xlu0 %v4910
    %v4912 = vpop.xlane.xlu0 %4911
    %v4913 = vmul.f32 %v4903, %v2273
    %v4914 = vmul.f32 %v4906, %v2273
    %v4915 = vmul.f32 %v4909, %v2273
    %v4916 = vmul.f32 %v4912, %v2273
    %v4917 = vadd.f32 %v4913, 1e-05
    %v4918 = vadd.f32 %v4914, 1e-05
    %v4919 = vadd.f32 %v4915, 1e-05
    %v4920 = vadd.f32 %v4916, 1e-05
    %v4921 = vrsqrt.pop %v4917
    %v4922 = vrsqrt.pop %v4918
    %v4923 = vrsqrt.pop %v4919
    %v4924 = vrsqrt.pop %v4920
    %v4925 = vmul.f32 %v4893, %v4921
    %v4926 = vmul.f32 %v4894, %v4922
    %v4927 = vmul.f32 %v4895, %v4923
    %v4928 = vmul.f32 %v4896, %v4924
    %v4930 = vlaneseq
    %v4931 = vshrl.u32 %v4930, 7
    %v4932 = vsub.s32 0, %v4931
    %v4933 = vrot.slane %v2679, %v4932
    %v4935 = vmul.f32 %v4925, %v4933
    %v4936 = vmul.f32 %v4926, %v4933
    %v4937 = vmul.f32 %v4927, %v4933
    %v4938 = vmul.f32 %v4928, %v4933
    %v4940 = vlaneseq
    %v4941 = vshrl.u32 %v4940, 7
    %v4942 = vsub.s32 0, %v4941
    %v4943 = vrot.slane %v2681, %v4942
    %v4945 = vadd.f32 %v4935, %v4943
    %v4946 = vadd.f32 %v4936, %v4943
    %v4947 = vadd.f32 %v4937, %v4943
    %v4948 = vadd.f32 %v4938, %v4943
    %v4950 = vlaneseq
    %v4951 = vshrl.u32 %v4950, 7
    %v4952 = vsub.s32 0, %v4951
    %v4953 = vrot.slane %v2704, %v4952
    %v4956 = vsel %vm99, %v4945, 0
    %v4959 = vsel %vm99, %v4946, 0
    %v4962 = vsel %vm99, %v4947, 0
    %v4965 = vsel %vm99, %v4948, 0
    %v4968 = vsel %vm99, %v2687, 0
    %v4971 = vsel %vm99, %v2688, 0
    %v4974 = vsel %vm99, %v2689, 0
    %v4977 = vsel %vm99, %v2690, 0
    %v4980 = vsel %vm99, %v2691, 0
    %v4983 = vsel %vm99, %v2692, 0
    %v4986 = vsel %vm99, %v2693, 0
    %v4989 = vsel %vm99, %v2694, 0
    %v4992 = vsel %vm99, %v2695, 0
    %v4995 = vsel %vm99, %v2696, 0
    %v4998 = vsel %vm99, %v2697, 0
    %v5001 = vsel %vm99, %v2698, 0
    %v5004 = vsel %vm99, %v2699, 0
    %v5007 = vsel %vm99, %v2700, 0
    %v5010 = vsel %vm99, %v2701, 0
    %v5013 = vsel %vm99, %v2702, 0
    %5015 = vmatprep.subr.mxu0 0.0
    %5016 = vmatpush1.xpose.msra.mxu0 %v4968
    %5017 = vmatprep.subr.mxu0 0.0
    %5018 = vmatpush1.xpose.msra.mxu0 %v4971
    %5019 = vmatprep.subr.mxu0 0.0
    %5020 = vmatpush1.xpose.msra.mxu0 %v4974
    %5021 = vmatprep.subr.mxu0 0.0
    %5022 = vmatpush1.xpose.msra.mxu0 %v4977
    %5023 = vmatprep.subr.mxu0 0.0
    %5024 = vmatpush1.xpose.msra.mxu0 %v4980
    %5025 = vmatprep.subr.mxu0 0.0
    %5026 = vmatpush1.xpose.msra.mxu0 %v4983
    %5027 = vmatprep.subr.mxu0 0.0
    %5028 = vmatpush1.xpose.msra.mxu0 %v4986
    %5029 = vmatprep.subr.mxu0 0.0
    %5030 = vmatpush1.xpose.msra.mxu0 %v4989
    %5031 = vmatprep.subr.mxu0 0.0
    %5032 = vmatpush1.xpose.msra.mxu0 %v4992
    %5033 = vmatprep.subr.mxu0 0.0
    %5034 = vmatpush1.xpose.msra.mxu0 %v4995
    %5035 = vmatprep.subr.mxu0 0.0
    %5036 = vmatpush1.xpose.msra.mxu0 %v4998
    %5037 = vmatprep.subr.mxu0 0.0
    %5038 = vmatpush1.xpose.msra.mxu0 %v5001
    %5039 = vmatprep.subr.mxu0 0.0
    %5040 = vmatpush1.xpose.msra.mxu0 %v5004
    %5041 = vmatprep.subr.mxu0 0.0
    %5042 = vmatpush1.xpose.msra.mxu0 %v5007
    %5043 = vmatprep.subr.mxu0 0.0
    %5044 = vmatpush1.xpose.msra.mxu0 %v5010
    %5045 = vmatprep.subr.mxu0 0.0
    %5046 = vmatpush1.xpose.msra.mxu0 %v5013
    %5047 = vmatprep.subr.mxu0 0.0
    %5048 = vmatpush1.xpose.msra.mxu0 0.0
    %5049 = vmatprep.subr.mxu0 0.0
    %5050 = vmatpush1.xpose.msra.mxu0 0.0
    %5051 = vmatprep.subr.mxu0 0.0
    %5052 = vmatpush1.xpose.msra.mxu0 0.0
    %5053 = vmatprep.subr.mxu0 0.0
    %5054 = vmatpush1.xpose.msra.mxu0 0.0
    %5055 = vmatprep.subr.mxu0 0.0
    %5056 = vmatpush1.xpose.msra.mxu0 0.0
    %5057 = vmatprep.subr.mxu0 0.0
    %5058 = vmatpush1.xpose.msra.mxu0 0.0
    %5059 = vmatprep.subr.mxu0 0.0
    %5060 = vmatpush1.xpose.msra.mxu0 0.0
    %5061 = vmatprep.subr.mxu0 0.0
    %5062 = vmatpush1.xpose.msra.mxu0 0.0
    %5063 = vmatprep.subr.mxu0 0.0
    %5064 = vmatpush1.xpose.msra.mxu0 0.0
    %5065 = vmatprep.subr.mxu0 0.0
    %5066 = vmatpush1.xpose.msra.mxu0 0.0
    %5067 = vmatprep.subr.mxu0 0.0
    %5068 = vmatpush1.xpose.msra.mxu0 0.0
    %5069 = vmatprep.subr.mxu0 0.0
    %5070 = vmatpush1.xpose.msra.mxu0 0.0
    %5071 = vmatprep.subr.mxu0 0.0
    %5072 = vmatpush1.xpose.msra.mxu0 0.0
    %5073 = vmatprep.subr.mxu0 0.0
    %5074 = vmatpush1.xpose.msra.mxu0 0.0
    %5075 = vmatprep.subr.mxu0 0.0
    %5076 = vmatpush1.xpose.msra.mxu0 0.0
    %5077 = vmatprep.subr.mxu0 0.0
    %5078 = vmatpush1.xpose.msra.mxu0 0.0
    %5079 = vmatprep.mubr.f32.mxu0 0.0
    %5080 = vmatmul.mubr.f32.gmra.mrb[0].mxu0 %v4956
    %v5081 = vpop.f32.mrb[0].mxu0
    %v5082 = vadd.f32 %v4953, %v5081
    %v5083 = vpop.f32.mrb[0].mxu0
    %5084 = vmatprep.mubr.f32.mxu0 0.0
    %5085 = vmatmul.mubr.f32.gmra.mrb[0].mxu0 %v4959
    %v5086 = vpop.f32.mrb[0].mxu0
    %v5087 = vadd.f32 %v4953, %v5086
    %v5088 = vpop.f32.mrb[0].mxu0
    %5089 = vmatprep.mubr.f32.mxu0 0.0
    %5090 = vmatmul.mubr.f32.gmra.mrb[0].mxu0 %v4962
    %v5091 = vpop.f32.mrb[0].mxu0
    %v5092 = vadd.f32 %v4953, %v5091
    %v5093 = vpop.f32.mrb[0].mxu0
    %5094 = vmatprep.mubr.f32.mxu0 0.0
    %5095 = vmatmul.mubr.f32.gmra.mrb[0].mxu0 %v4965
    %v5096 = vpop.f32.mrb[0].mxu0
    %v5097 = vadd.f32 %v4953, %v5096
    %v5098 = vpop.f32.mrb[0].mxu0
    %5099 = vdwg.mxu0
    %v5100 = vmax.f32 %v5082, 0.0
    %v5101 = vmax.f32 %v5087, 0.0
    %v5102 = vmax.f32 %v5092, 0.0
    %v5103 = vmax.f32 %v5097, 0.0
    %v5105 = vlaneseq
    %v5106 = vshrl.u32 %v5105, 7
    %v5107 = vsub.s32 0, %v5106
    %v5108 = vrot.slane %v2711, %v5107
    %5110 = vmatprep.subr.mxu0 0.0
    %5111 = vmatpush1.xpose.msra.mxu0 %v2706
    %5112 = vmatprep.subr.mxu0 0.0
    %5113 = vmatpush1.xpose.msra.mxu0 %v2707
    %5114 = vmatprep.subr.mxu0 0.0
    %5115 = vmatpush1.xpose.msra.mxu0 %v2708
    %5116 = vmatprep.subr.mxu0 0.0
    %5117 = vmatpush1.xpose.msra.mxu0 %v2709
    %5118 = vmatprep.subr.mxu0 0.0
    %5119 = vmatpush1.xpose.msra.mxu0 0.0
    %5120 = vmatprep.subr.mxu0 0.0
    %5121 = vmatpush1.xpose.msra.mxu0 0.0
    %5122 = vmatprep.subr.mxu0 0.0
    %5123 = vmatpush1.xpose.msra.mxu0 0.0
    %5124 = vmatprep.subr.mxu0 0.0
    %5125 = vmatpush1.xpose.msra.mxu0 0.0
    %5126 = vmatprep.subr.mxu0 0.0
    %5127 = vmatpush1.xpose.msra.mxu0 0.0
    %5128 = vmatprep.subr.mxu0 0.0
    %5129 = vmatpush1.xpose.msra.mxu0 0.0
    %5130 = vmatprep.subr.mxu0 0.0
    %5131 = vmatpush1.xpose.msra.mxu0 0.0
    %5132 = vmatprep.subr.mxu0 0.0
    %5133 = vmatpush1.xpose.msra.mxu0 0.0
    %5134 = vmatprep.subr.mxu0 0.0
    %5135 = vmatpush1.xpose.msra.mxu0 0.0
    %5136 = vmatprep.subr.mxu0 0.0
    %5137 = vmatpush1.xpose.msra.mxu0 0.0
    %5138 = vmatprep.subr.mxu0 0.0
    %5139 = vmatpush1.xpose.msra.mxu0 0.0
    %5140 = vmatprep.subr.mxu0 0.0
    %5141 = vmatpush1.xpose.msra.mxu0 0.0
    %5142 = vmatprep.subr.mxu0 0.0
    %5143 = vmatpush1.xpose.msra.mxu0 0.0
    %5144 = vmatprep.subr.mxu0 0.0
    %5145 = vmatpush1.xpose.msra.mxu0 0.0
    %5146 = vmatprep.subr.mxu0 0.0
    %5147 = vmatpush1.xpose.msra.mxu0 0.0
    %5148 = vmatprep.subr.mxu0 0.0
    %5149 = vmatpush1.xpose.msra.mxu0 0.0
    %5150 = vmatprep.subr.mxu0 0.0
    %5151 = vmatpush1.xpose.msra.mxu0 0.0
    %5152 = vmatprep.subr.mxu0 0.0
    %5153 = vmatpush1.xpose.msra.mxu0 0.0
    %5154 = vmatprep.subr.mxu0 0.0
    %5155 = vmatpush1.xpose.msra.mxu0 0.0
    %5156 = vmatprep.subr.mxu0 0.0
    %5157 = vmatpush1.xpose.msra.mxu0 0.0
    %5158 = vmatprep.subr.mxu0 0.0
    %5159 = vmatpush1.xpose.msra.mxu0 0.0
    %5160 = vmatprep.subr.mxu0 0.0
    %5161 = vmatpush1.xpose.msra.mxu0 0.0
    %5162 = vmatprep.subr.mxu0 0.0
    %5163 = vmatpush1.xpose.msra.mxu0 0.0
    %5164 = vmatprep.subr.mxu0 0.0
    %5165 = vmatpush1.xpose.msra.mxu0 0.0
    %5166 = vmatprep.subr.mxu0 0.0
    %5167 = vmatpush1.xpose.msra.mxu0 0.0
    %5168 = vmatprep.subr.mxu0 0.0
    %5169 = vmatpush1.xpose.msra.mxu0 0.0
    %5170 = vmatprep.subr.mxu0 0.0
    %5171 = vmatpush1.xpose.msra.mxu0 0.0
    %5172 = vmatprep.subr.mxu0 0.0
    %5173 = vmatpush1.xpose.msra.mxu0 0.0
    %5174 = vmatprep.mubr.f32.mxu0 0.0
    %5175 = vmatmul.mubr.f32.gmra.mrb[0].mxu0 %v5100
    %v5176 = vpop.f32.mrb[0].mxu0
    %v5177 = vadd.f32 %v5108, %v5176
    %v5178 = vpop.f32.mrb[0].mxu0
    %5179 = vmatprep.mubr.f32.mxu0 0.0
    %5180 = vmatmul.mubr.f32.gmra.mrb[0].mxu0 %v5101
    %v5181 = vpop.f32.mrb[0].mxu0
    %v5182 = vadd.f32 %v5108, %v5181
    %v5183 = vpop.f32.mrb[0].mxu0
    %5184 = vmatprep.mubr.f32.mxu0 0.0
    %5185 = vmatmul.mubr.f32.gmra.mrb[0].mxu0 %v5102
    %v5186 = vpop.f32.mrb[0].mxu0
    %v5187 = vadd.f32 %v5108, %v5186
    %v5188 = vpop.f32.mrb[0].mxu0
    %5189 = vmatprep.mubr.f32.mxu0 0.0
    %5190 = vmatmul.mubr.f32.gmra.mrb[0].mxu0 %v5103
    %v5191 = vpop.f32.mrb[0].mxu0
    %v5192 = vadd.f32 %v5108, %v5191
    %v5193 = vpop.f32.mrb[0].mxu0
    %5194 = vdwg.mxu0
    %v5195 = vadd.f32 %v4945, %v5177
    %v5196 = vadd.f32 %v4946, %v5182
    %v5197 = vadd.f32 %v4947, %v5187
    %v5198 = vadd.f32 %v4948, %v5192
    %v5199 = vsel %vm99, %v5195, 0.0
    %5200 = vadd.xlane.f32.xlu0 %v5199
    %v5201 = vpop.xlane.xlu0 %5200
    %v5202 = vsel %vm99, %v5196, 0.0
    %5203 = vadd.xlane.f32.xlu0 %v5202
    %v5204 = vpop.xlane.xlu0 %5203
    %v5205 = vsel %vm99, %v5197, 0.0
    %5206 = vadd.xlane.f32.xlu0 %v5205
    %v5207 = vpop.xlane.xlu0 %5206
    %v5208 = vsel %vm99, %v5198, 0.0
    %5209 = vadd.xlane.f32.xlu0 %v5208
    %v5210 = vpop.xlane.xlu0 %5209
    %v5211 = vmul.f32 %v5201, %v2273
    %v5212 = vmul.f32 %v5204, %v2273
    %v5213 = vmul.f32 %v5207, %v2273
    %v5214 = vmul.f32 %v5210, %v2273
    %v5215 = vsub.f32 %v5195, %v5211
    %v5216 = vsub.f32 %v5196, %v5212
    %v5217 = vsub.f32 %v5197, %v5213
    %v5218 = vsub.f32 %v5198, %v5214
    %v5219 = vmul.f32 %v5215, %v5215
    %v5220 = vmul.f32 %v5216, %v5216
    %v5221 = vmul.f32 %v5217, %v5217
    %v5222 = vmul.f32 %v5218, %v5218
    %v5223 = vsel %vm99, %v5219, 0.0
    %5224 = vadd.xlane.f32.xlu0 %v5223
    %v5225 = vpop.xlane.xlu0 %5224
    %v5226 = vsel %vm99, %v5220, 0.0
    %5227 = vadd.xlane.f32.xlu0 %v5226
    %v5228 = vpop.xlane.xlu0 %5227
    %v5229 = vsel %vm99, %v5221, 0.0
    %5230 = vadd.xlane.f32.xlu0 %v5229
    %v5231 = vpop.xlane.xlu0 %5230
    %v5232 = vsel %vm99, %v5222, 0.0
    %5233 = vadd.xlane.f32.xlu0 %v5232
    %v5234 = vpop.xlane.xlu0 %5233
    %v5235 = vmul.f32 %v5225, %v2273
    %v5236 = vmul.f32 %v5228, %v2273
    %v5237 = vmul.f32 %v5231, %v2273
    %v5238 = vmul.f32 %v5234, %v2273
    %v5239 = vadd.f32 %v5235, 1e-05
    %v5240 = vadd.f32 %v5236, 1e-05
    %v5241 = vadd.f32 %v5237, 1e-05
    %v5242 = vadd.f32 %v5238, 1e-05
    %v5243 = vrsqrt.pop %v5239
    %v5244 = vrsqrt.pop %v5240
    %v5245 = vrsqrt.pop %v5241
    %v5246 = vrsqrt.pop %v5242
    %v5247 = vmul.f32 %v5215, %v5243
    %v5248 = vmul.f32 %v5216, %v5244
    %v5249 = vmul.f32 %v5217, %v5245
    %v5250 = vmul.f32 %v5218, %v5246
    %v5252 = vlaneseq
    %v5253 = vshrl.u32 %v5252, 7
    %v5254 = vsub.s32 0, %v5253
    %v5255 = vrot.slane %v2683, %v5254
    %v5257 = vmul.f32 %v5247, %v5255
    %v5258 = vmul.f32 %v5248, %v5255
    %v5259 = vmul.f32 %v5249, %v5255
    %v5260 = vmul.f32 %v5250, %v5255
    %v5262 = vlaneseq
    %v5263 = vshrl.u32 %v5262, 7
    %v5264 = vsub.s32 0, %v5263
    %v5265 = vrot.slane %v2685, %v5264
    %v5267 = vadd.f32 %v5257, %v5265
    %v5268 = vadd.f32 %v5258, %v5265
    %v5269 = vadd.f32 %v5259, %v5265
    %v5270 = vadd.f32 %v5260, %v5265
    %5271 = vst.msk [vmem:[#allocation2] sm:$0xff] %vm99, %v5267
    %5272 = vst.msk [vmem:[#allocation2 + $0x8] sm:$0xff] %vm99, %v5268
    %5273 = vst.msk [vmem:[#allocation2 + $0x10] sm:$0xff] %vm99, %v5269
    %5274 = vst.msk [vmem:[#allocation2 + $0x18] sm:$0xff] %vm99, %v5270
    // Predicated region
    $region54: #{tpu_custom_call.1} parent=1 // pred_check
      _
    $region55: #{tpu_custom_call.1} parent=1 // pred_check_branch
      %5276 = sbr.rel (0) target = $region57
    $region56: #{tpu_custom_call.1} parent=1 // pred_region
      %s5278 = ssub.s32 512, 512
      %5279 = vsyncadd [#allocation3], %s5278
      %s5280 = sshll.u32 [#allocation2], 4
      %s5281 = int_to_ptr.vmem [resolvable:$true] %s5280
      %5286 = dma.vmem_to_hbm [thread:$0]  %s5281, 512, %s13, [#allocation3], 128, 128, 8
    $region57: #{tpu_custom_call.1} parent=1 // pred_fallthru
      _
    // Predicated region
    $region58: #{tpu_custom_call.1} parent=1 // pred_check
      _
    $region59: #{tpu_custom_call.1} parent=1 // pred_check_branch
      %5288 = sbr.rel (0) target = $region61
    $region60: #{tpu_custom_call.1} parent=1 // pred_region
      %5289 = dma.done [#allocation3], 512
    $region61: #{tpu_custom_call.1} parent=1 // pred_fallthru
      _
    %5290 = vsyncpa [#allocation3], 1

</llo_original>
